<compile_context>
chip_gen: v7x
topology: tpu7x:2x2x1
jax: 0.10.0
libtpu: 0.0.40
codegen_flags: <defaults>
</compile_context>

<pallas_src>
import functools

import jax
import jax.numpy as jnp
from jax.experimental import pallas as pl
from jax.experimental.pallas import tpu as pltpu


# ----------------------------------------------------------------------------
# single-block pallas_call helper (every fused kernel fits easily in VMEM)
# ----------------------------------------------------------------------------
def _single_block_call(kernel, out_shapes, *args):
    multi = isinstance(out_shapes, (tuple, list))
    outs = tuple(out_shapes) if multi else (out_shapes,)

    def _idx(nd):
        return lambda i: (0,) * nd

    out_specs = tuple(pl.BlockSpec(o.shape, _idx(len(o.shape))) for o in outs)
    return pl.pallas_call(
        kernel,
        grid=(1,),
        in_specs=[pl.BlockSpec(a.shape, _idx(a.ndim)) for a in args],
        out_specs=out_specs if multi else out_specs[0],
        out_shape=out_shapes,
        compiler_params=pltpu.CompilerParams(dimension_semantics=("arbitrary",)),
    )(*args)


# ----------------------------------------------------------------------------
# fused kernels
# ----------------------------------------------------------------------------
def _bn(y, g, b):
    # BatchNorm2d training mode: batch mean / biased variance over (N,H,W)=axis 0.
    mean = jnp.mean(y, axis=0, keepdims=True)
    var = jnp.mean(jnp.square(y - mean), axis=0, keepdims=True)
    return (y - mean) * jax.lax.rsqrt(var + 1e-5) * g + b


def _softmax(logits):
    m = jnp.max(logits, axis=-1, keepdims=True)
    e = jnp.exp(logits - m)
    s = jnp.sum(e, axis=-1, keepdims=True)
    return e * pl.reciprocal(s, approx=True)


def _conv_bn_relu_kernel(cols_ref, w_ref, b_ref, g_ref, be_ref, o_ref):
    # conv (as GEMM) + bias + BN + ReLU, all in one kernel.
    y = jnp.dot(cols_ref[...], w_ref[...], preferred_element_type=jnp.float32)
    y = y + b_ref[...]
    y = _bn(y, g_ref[...], be_ref[...])
    o_ref[...] = jnp.maximum(y, 0.0).astype(o_ref.dtype)


def _conv_bias_kernel(cols_ref, w_ref, b_ref, o_ref, orelu_ref):
    # conv (as GEMM) + bias; also emits relu(out) so the next stage's im2col
    # can be built without a separate relu kernel / extra HBM round trip.
    y = jnp.dot(cols_ref[...], w_ref[...], preferred_element_type=jnp.float32)
    y = y + b_ref[...]
    o_ref[...] = y.astype(o_ref.dtype)
    orelu_ref[...] = jnp.maximum(y, 0.0).astype(orelu_ref.dtype)


def _resblock_kernel(x_ref, cols_ref, w3_ref, b3_ref, g1_ref, be1_ref,
                     w1_ref, b1_ref, g2_ref, be2_ref, o_ref, orelu_ref):
    # Full ResBlock body fused: 3x3 conv GEMM + BN + ReLU + 1x1 conv GEMM + BN
    # + residual add.  cols_ref is im2col(relu(x)); x_ref is the residual input.
    h = jnp.dot(cols_ref[...], w3_ref[...], preferred_element_type=jnp.float32)
    h = h + b3_ref[...]
    h = _bn(h, g1_ref[...], be1_ref[...])
    h = jnp.maximum(h, 0.0)
    h = jnp.dot(h, w1_ref[...], preferred_element_type=jnp.float32) + b1_ref[...]
    h = _bn(h, g2_ref[...], be2_ref[...])
    out = x_ref[...] + h
    o_ref[...] = out.astype(o_ref.dtype)
    orelu_ref[...] = jnp.maximum(out, 0.0).astype(orelu_ref.dtype)


def _lstm_kernel(x_ref, wih_ref, whh_ref, b_ref, o_ref, *, seq_len, batch, hidden):
    # x_ref: (T*B, F) time-major.  One GEMM computes all input-gate
    # pre-activations; the serial recurrence then runs fully unrolled with
    # W_hh kept resident in VMEM (no per-step HBM traffic / kernel launches).
    gp = jnp.dot(x_ref[...], wih_ref[...], preferred_element_type=jnp.float32)
    gp = gp + b_ref[...]
    whh = whh_ref[...]
    h = jnp.zeros((batch, hidden), jnp.float32)
    c = jnp.zeros((batch, hidden), jnp.float32)
    for t in range(seq_len):  # static trip count -> unrolled
        g = gp[t * batch:(t + 1) * batch] + jnp.dot(
            h, whh, preferred_element_type=jnp.float32)
        i = jax.nn.sigmoid(g[:, 0:hidden])
        f = jax.nn.sigmoid(g[:, hidden:2 * hidden])
        gg = jnp.tanh(g[:, 2 * hidden:3 * hidden])
        o = jax.nn.sigmoid(g[:, 3 * hidden:4 * hidden])
        c = f * c + i * gg
        h = o * jnp.tanh(c)
        o_ref[t * batch:(t + 1) * batch, :] = h.astype(o_ref.dtype)


def _head_p_kernel(x_ref, w_ref, b_ref, o_ref):
    logits = jnp.dot(x_ref[...], w_ref[...], preferred_element_type=jnp.float32)
    logits = logits + b_ref[...]
    o_ref[...] = _softmax(logits).astype(o_ref.dtype)


def _head_q_kernel(fx_ref, wqx_ref, lc_ref, wqc_ref, b_ref, o_ref):
    # linear over the concatenation [full_x, lstm_out] computed as two partial
    # dots (no concatenated activation is re-read inside the kernel), + softmax.
    logits = (jnp.dot(fx_ref[...], wqx_ref[...], preferred_element_type=jnp.float32)
              + jnp.dot(lc_ref[...], wqc_ref[...], preferred_element_type=jnp.float32)
              + b_ref[...])
    o_ref[...] = _softmax(logits).astype(o_ref.dtype)


# ----------------------------------------------------------------------------
# XLA-side layout glue: im2col patch extraction + weight reshaping
# ----------------------------------------------------------------------------
def im2col(x_nhwc, kh, kw, stride, pad):
    b, h, w, c = x_nhwc.shape
    xp = jnp.pad(x_nhwc, ((0, 0), (pad, pad), (pad, pad), (0, 0)))
    ho = (h + 2 * pad - kh) // stride + 1
    wo = (w + 2 * pad - kw) // stride + 1
    cols = []
    for i in range(kh):
        for j in range(kw):
            cols.append(xp[:, i:i + stride * ho:stride, j:j + stride * wo:stride, :])
    cols = jnp.stack(cols, axis=3)  # (B, Ho, Wo, kh*kw, C)
    return cols.reshape(b * ho * wo, kh * kw * c), ho, wo


def conv_w_to_gemm(w_oihw):
    # torch (Cout, Cin, kh, kw) -> (kh*kw*Cin, Cout) matching im2col layout
    co, ci, kh, kw = w_oihw.shape
    return jnp.transpose(w_oihw, (2, 3, 1, 0)).reshape(kh * kw * ci, co)


def _row(v):
    return v.reshape(1, -1)


# ----------------------------------------------------------------------------
# Encoder forward
# ----------------------------------------------------------------------------
def lstm_stack(lstm_params, c):
    bsz, seq, _ = c.shape
    x = c
    for lp in lstm_params:
        hidden = lp["w_hh"].shape[0]
        feat = x.shape[-1]
        x_tb = jnp.transpose(x, (1, 0, 2)).reshape(seq * bsz, feat)  # time-major
        out2d = _single_block_call(
            functools.partial(_lstm_kernel, seq_len=seq, batch=bsz, hidden=hidden),
            jax.ShapeDtypeStruct((seq * bsz, hidden), jnp.float32),
            x_tb, lp["w_ih"], lp["w_hh"], _row(lp["b_ih"] + lp["b_hh"]),
        )
        x = jnp.transpose(out2d.reshape(seq, bsz, hidden), (1, 0, 2))
    return x  # (B, T, H)


def encoder_forward(params, x_nchw, c, train=True):
    bsz, seq, _ = c.shape

    # ---- LSTM branch -------------------------------------------------------
    out = lstm_stack(params["lstm"], c)                    # (B, T, H)
    hidden = out.shape[-1]
    output_all_c = out.reshape(bsz, seq * hidden)          # torch reshape(B, -1)

    latent = params["lin_p_w"].shape[1]
    alpha_p = _single_block_call(
        _head_p_kernel,
        jax.ShapeDtypeStruct((bsz, latent), jnp.float32),
        output_all_c, params["lin_p_w"], _row(params["lin_p_b"]),
    )

    if not train:
        return None, alpha_p, output_all_c

    # ---- VQVAE conv branch -------------------------------------------------
    # TODO(synk): on v7x this branch could run on the second TensorCore
    # concurrently with the LSTM branch (pl.core_map); kept single-core here.
    dim = params["conv1_w"].shape[0]
    xh = jnp.transpose(x_nchw, (0, 2, 3, 1))               # NCHW -> NHWC

    # conv1 (4x4, stride 2, pad 1) + BN + ReLU, fused
    cols1, h1, w1 = im2col(xh, 4, 4, 2, 1)
    y1 = _single_block_call(
        _conv_bn_relu_kernel,
        jax.ShapeDtypeStruct((cols1.shape[0], dim), jnp.float32),
        cols1, conv_w_to_gemm(params["conv1_w"]), _row(params["conv1_b"]),
        _row(params["bn1_g"]), _row(params["bn1_b"]),
    )
    y1 = y1.reshape(bsz, h1, w1, dim)

    # conv2 (4x4, stride 2, pad 1) + bias, with fused ReLU epilogue
    cols2, h2, w2 = im2col(y1, 4, 4, 2, 1)
    m2 = cols2.shape[0]
    y, y_relu = _single_block_call(
        _conv_bias_kernel,
        (jax.ShapeDtypeStruct((m2, dim), jnp.float32),
         jax.ShapeDtypeStruct((m2, dim), jnp.float32)),
        cols2, conv_w_to_gemm(params["conv2_w"]), _row(params["conv2_b"]),
    )

    # two ResBlocks, each fully fused into one kernel
    for rp in (params["res1"], params["res2"]):
        cols3, _, _ = im2col(y_relu.reshape(bsz, h2, w2, dim), 3, 3, 1, 1)
        y, y_relu = _single_block_call(
            _resblock_kernel,
            (jax.ShapeDtypeStruct((m2, dim), jnp.float32),
             jax.ShapeDtypeStruct((m2, dim), jnp.float32)),
            y, cols3,
            conv_w_to_gemm(rp["conv3_w"]), _row(rp["conv3_b"]),
            _row(rp["bn1_g"]), _row(rp["bn1_b"]),
            conv_w_to_gemm(rp["conv1_w"]), _row(rp["conv1_b"]),
            _row(rp["bn2_g"]), _row(rp["bn2_b"]),
        )

    # restore NCHW ordering before flatten so it matches torch full_x.view(B,-1)
    full_x = jnp.transpose(y.reshape(bsz, h2, w2, dim), (0, 3, 1, 2)).reshape(bsz, -1)
    output_all_cat = jnp.concatenate([full_x, output_all_c], axis=-1)

    nx = full_x.shape[1]
    alpha_q = _single_block_call(
        _head_q_kernel,
        jax.ShapeDtypeStruct((bsz, latent), jnp.float32),
        full_x, params["lin_q_w"][:nx],
        output_all_c, params["lin_q_w"][nx:],
        _row(params["lin_q_b"]),
    )
    return alpha_q, alpha_p, output_all_cat


# ----------------------------------------------------------------------------
# deterministic parameter init (synthetic; shapes follow the torch __init__)
# ----------------------------------------------------------------------------
def init_params(key, dim, input_size, hidden, n_lstms, latent_size):
    keys = iter(jax.random.split(key, 64))

    def nrm(shape, scale=0.1):
        return scale * jax.random.normal(next(keys), shape, jnp.float32)

    def res_params():
        return {
            "conv3_w": nrm((dim, dim, 3, 3)), "conv3_b": nrm((dim,)),
            "bn1_g": jnp.ones((dim,), jnp.float32), "bn1_b": jnp.zeros((dim,), jnp.float32),
            "conv1_w": nrm((dim, dim, 1, 1)), "conv1_b": nrm((dim,)),
            "bn2_g": jnp.ones((dim,), jnp.float32), "bn2_b": jnp.zeros((dim,), jnp.float32),
        }

    lstm = []
    for layer in range(n_lstms):
        feat = input_size if layer == 0 else hidden
        lstm.append({
            "w_ih": nrm((feat, 4 * hidden)),    # stored as W_ih^T
            "w_hh": nrm((hidden, 4 * hidden)),  # stored as W_hh^T
            "b_ih": nrm((4 * hidden,)),
            "b_hh": nrm((4 * hidden,)),
        })

    return {
        "conv1_w": nrm((dim, 1, 4, 4)), "conv1_b": nrm((dim,)),
        "bn1_g": jnp.ones((dim,), jnp.float32), "bn1_b": jnp.zeros((dim,), jnp.float32),
        "conv2_w": nrm((dim, dim, 4, 4)), "conv2_b": nrm((dim,)),
        "res1": res_params(),
        "res2": res_params(),
        "lstm": lstm,
        "lin_p_w": nrm((hidden * 10, latent_size)), "lin_p_b": nrm((latent_size,)),
        "lin_q_w": nrm((5 * 7 * dim + hidden * 10, latent_size)),
        "lin_q_b": nrm((latent_size,)),
    }


if __name__ == "__main__":
    dim = 8
    input_size = 6        # layer_sizes_p[0]
    hidden = 16           # layer_sizes_p[-1]
    n_lstms = 1
    latent_size = 16
    seq = 10              # implied by linear_latent_p input = hidden * 10
    bsz = 2

    key = jax.random.PRNGKey(0)
    kp, kx, kc = jax.random.split(key, 3)
    params = init_params(kp, dim, input_size, hidden, n_lstms, latent_size)

    # x is NCHW like torch; 20x28 input -> 5x7 after two stride-2 convs (5*7*dim)
    x = jax.random.normal(kx, (bsz, 1, 20, 28), jnp.float32)
    c = jax.random.normal(kc, (bsz, seq, input_size), jnp.float32)

    fwd = jax.jit(functools.partial(encoder_forward, train=True))
    alpha_q, alpha_p, output_all_c = fwd(params, x, c)
    jax.block_until_ready((alpha_q, alpha_p, output_all_c))

    assert alpha_q.shape == (bsz, latent_size)
    assert alpha_p.shape == (bsz, latent_size)
    assert output_all_c.shape == (bsz, 5 * 7 * dim + hidden * 10)
    assert bool(jnp.all(jnp.isfinite(alpha_q))) and bool(jnp.all(jnp.isfinite(alpha_p)))
    print("KERNEL_OK")
</pallas_src>

<mosaic_0001>
module attributes {stable_mosaic.version = 11 : i64} {
  func.func @_conv_bn_relu_kernel(%arg0: i32, %arg1: memref<280x16xf32, #tpu.memory_space<vmem>>, %arg2: memref<16x8xf32, #tpu.memory_space<vmem>>, %arg3: memref<1x8xf32, #tpu.memory_space<vmem>>, %arg4: memref<1x8xf32, #tpu.memory_space<vmem>>, %arg5: memref<1x8xf32, #tpu.memory_space<vmem>>, %arg6: memref<280x8xf32, #tpu.memory_space<vmem>>) attributes {dimension_semantics = [#tpu.dimension_semantics<arbitrary>], iteration_bounds = array<i64: 1>, scalar_prefetch = 0 : i64, scratch_operands = 0 : i64, tpu.core_type = #tpu.core_type<tc>, window_params = [{pipeline_mode = #tpu.pipeline_mode<synchronous>, transform_indices = @transform_0, window_bounds = array<i64: 280, 16>}, {pipeline_mode = #tpu.pipeline_mode<synchronous>, transform_indices = @transform_1, window_bounds = array<i64: 16, 8>}, {pipeline_mode = #tpu.pipeline_mode<synchronous>, transform_indices = @transform_2, window_bounds = array<i64: 1, 8>}, {pipeline_mode = #tpu.pipeline_mode<synchronous>, transform_indices = @transform_3, window_bounds = array<i64: 1, 8>}, {pipeline_mode = #tpu.pipeline_mode<synchronous>, transform_indices = @transform_4, window_bounds = array<i64: 1, 8>}, {pipeline_mode = #tpu.pipeline_mode<synchronous>, transform_indices = @transform_5, window_bounds = array<i64: 280, 8>}]} {
    %c0 = arith.constant 0 : index
    %c0_0 = arith.constant 0 : index
    %0 = vector.load %arg1[%c0, %c0_0] : memref<280x16xf32, #tpu.memory_space<vmem>>, vector<280x16xf32>
    %c0_1 = arith.constant 0 : index
    %c0_2 = arith.constant 0 : index
    %1 = vector.load %arg2[%c0_1, %c0_2] : memref<16x8xf32, #tpu.memory_space<vmem>>, vector<16x8xf32>
    %cst = arith.constant dense<0.000000e+00> : vector<280x8xf32>
    %2 = tpu.matmul %0, %1, %cst {dimension_numbers = #tpu.dot_dimension_numbers<[1], [0], [0], [1], [0, 0, 1, 1], [], []>} : vector<280x16xf32>, vector<16x8xf32>, vector<280x8xf32> -> vector<280x8xf32>
    %c0_3 = arith.constant 0 : index
    %c0_4 = arith.constant 0 : index
    %3 = vector.load %arg3[%c0_3, %c0_4] : memref<1x8xf32, #tpu.memory_space<vmem>>, vector<1x8xf32>
    %4 = vector.broadcast %3 : vector<1x8xf32> to vector<280x8xf32>
    %5 = arith.addf %2, %4 : vector<280x8xf32>
    %c0_5 = arith.constant 0 : index
    %c0_6 = arith.constant 0 : index
    %6 = vector.load %arg4[%c0_5, %c0_6] : memref<1x8xf32, #tpu.memory_space<vmem>>, vector<1x8xf32>
    %c0_7 = arith.constant 0 : index
    %c0_8 = arith.constant 0 : index
    %7 = vector.load %arg5[%c0_7, %c0_8] : memref<1x8xf32, #tpu.memory_space<vmem>>, vector<1x8xf32>
    %cst_9 = arith.constant dense<0.000000e+00> : vector<8xf32>
    %8 = vector.multi_reduction <add>, %5, %cst_9 [0] : vector<280x8xf32> to vector<8xf32>
    %9 = vector.shape_cast %8 : vector<8xf32> to vector<1x8xf32>
    %cst_10 = arith.constant 2.800000e+02 : f32
    %10 = vector.broadcast %cst_10 : f32 to vector<1x8xf32>
    %11 = arith.divf %9, %10 : vector<1x8xf32>
    %12 = vector.broadcast %11 : vector<1x8xf32> to vector<280x8xf32>
    %13 = arith.subf %5, %12 : vector<280x8xf32>
    %14 = arith.mulf %13, %13 : vector<280x8xf32>
    %cst_11 = arith.constant dense<0.000000e+00> : vector<8xf32>
    %15 = vector.multi_reduction <add>, %14, %cst_11 [0] : vector<280x8xf32> to vector<8xf32>
    %16 = vector.shape_cast %15 : vector<8xf32> to vector<1x8xf32>
    %cst_12 = arith.constant 2.800000e+02 : f32
    %17 = vector.broadcast %cst_12 : f32 to vector<1x8xf32>
    %18 = arith.divf %16, %17 : vector<1x8xf32>
    %19 = vector.broadcast %11 : vector<1x8xf32> to vector<280x8xf32>
    %20 = arith.subf %5, %19 : vector<280x8xf32>
    %cst_13 = arith.constant 9.99999974E-6 : f32
    %21 = vector.broadcast %cst_13 : f32 to vector<1x8xf32>
    %22 = arith.addf %18, %21 : vector<1x8xf32>
    %23 = math.rsqrt %22 : vector<1x8xf32>
    %24 = vector.broadcast %23 : vector<1x8xf32> to vector<280x8xf32>
    %25 = arith.mulf %20, %24 : vector<280x8xf32>
    %26 = vector.broadcast %6 : vector<1x8xf32> to vector<280x8xf32>
    %27 = arith.mulf %25, %26 : vector<280x8xf32>
    %28 = vector.broadcast %7 : vector<1x8xf32> to vector<280x8xf32>
    %29 = arith.addf %27, %28 : vector<280x8xf32>
    %cst_14 = arith.constant 0.000000e+00 : f32
    %30 = vector.broadcast %cst_14 : f32 to vector<280x8xf32>
    %31 = arith.maximumf %29, %30 : vector<280x8xf32>
    %c0_15 = arith.constant 0 : index
    %c0_16 = arith.constant 0 : index
    %32 = vector.load %arg6[%c0_15, %c0_16] : memref<280x8xf32, #tpu.memory_space<vmem>>, vector<280x8xf32>
    tpu.vector_store %arg6[%c0_15, %c0_16], %31 {strides = array<i32>} : memref<280x8xf32, #tpu.memory_space<vmem>>, vector<280x8xf32>,
    return
  }
  func.func @transform_0(%arg0: i32) -> (i32, i32) {
    %c0_i32 = arith.constant 0 : i32
    %c0_i32_0 = arith.constant 0 : i32
    %c0_i32_1 = arith.constant 0 : i32
    return %c0_i32, %c0_i32_0 : i32, i32
  }
  func.func @transform_1(%arg0: i32) -> (i32, i32) {
    %c0_i32 = arith.constant 0 : i32
    %c0_i32_0 = arith.constant 0 : i32
    %c0_i32_1 = arith.constant 0 : i32
    return %c0_i32, %c0_i32_0 : i32, i32
  }
  func.func @transform_2(%arg0: i32) -> (i32, i32) {
    %c0_i32 = arith.constant 0 : i32
    %c0_i32_0 = arith.constant 0 : i32
    %c0_i32_1 = arith.constant 0 : i32
    return %c0_i32, %c0_i32_0 : i32, i32
  }
  func.func @transform_3(%arg0: i32) -> (i32, i32) {
    %c0_i32 = arith.constant 0 : i32
    %c0_i32_0 = arith.constant 0 : i32
    %c0_i32_1 = arith.constant 0 : i32
    return %c0_i32, %c0_i32_0 : i32, i32
  }
  func.func @transform_4(%arg0: i32) -> (i32, i32) {
    %c0_i32 = arith.constant 0 : i32
    %c0_i32_0 = arith.constant 0 : i32
    %c0_i32_1 = arith.constant 0 : i32
    return %c0_i32, %c0_i32_0 : i32, i32
  }
  func.func @transform_5(%arg0: i32) -> (i32, i32) {
    %c0_i32 = arith.constant 0 : i32
    %c0_i32_0 = arith.constant 0 : i32
    %c0_i32_1 = arith.constant 0 : i32
    return %c0_i32, %c0_i32_0 : i32, i32
  }
}

module attributes {stable_mosaic.version = 11 : i64} {
  func.func @_conv_bias_kernel(%arg0: i32, %arg1: memref<70x128xf32, #tpu.memory_space<vmem>>, %arg2: memref<128x8xf32, #tpu.memory_space<vmem>>, %arg3: memref<1x8xf32, #tpu.memory_space<vmem>>, %arg4: memref<70x8xf32, #tpu.memory_space<vmem>>, %arg5: memref<70x8xf32, #tpu.memory_space<vmem>>) attributes {dimension_semantics = [#tpu.dimension_semantics<arbitrary>], iteration_bounds = array<i64: 1>, scalar_prefetch = 0 : i64, scratch_operands = 0 : i64, tpu.core_type = #tpu.core_type<tc>, window_params = [{pipeline_mode = #tpu.pipeline_mode<synchronous>, transform_indices = @transform_0, window_bounds = array<i64: 70, 128>}, {pipeline_mode = #tpu.pipeline_mode<synchronous>, transform_indices = @transform_1, window_bounds = array<i64: 128, 8>}, {pipeline_mode = #tpu.pipeline_mode<synchronous>, transform_indices = @transform_2, window_bounds = array<i64: 1, 8>}, {pipeline_mode = #tpu.pipeline_mode<synchronous>, transform_indices = @transform_3, window_bounds = array<i64: 70, 8>}, {pipeline_mode = #tpu.pipeline_mode<synchronous>, transform_indices = @transform_4, window_bounds = array<i64: 70, 8>}]} {
    %c0 = arith.constant 0 : index
    %c0_0 = arith.constant 0 : index
    %0 = vector.load %arg1[%c0, %c0_0] : memref<70x128xf32, #tpu.memory_space<vmem>>, vector<70x128xf32>
    %c0_1 = arith.constant 0 : index
    %c0_2 = arith.constant 0 : index
    %1 = vector.load %arg2[%c0_1, %c0_2] : memref<128x8xf32, #tpu.memory_space<vmem>>, vector<128x8xf32>
    %cst = arith.constant dense<0.000000e+00> : vector<70x8xf32>
    %2 = tpu.matmul %0, %1, %cst {dimension_numbers = #tpu.dot_dimension_numbers<[1], [0], [0], [1], [0, 0, 1, 1], [], []>} : vector<70x128xf32>, vector<128x8xf32>, vector<70x8xf32> -> vector<70x8xf32>
    %c0_3 = arith.constant 0 : index
    %c0_4 = arith.constant 0 : index
    %3 = vector.load %arg3[%c0_3, %c0_4] : memref<1x8xf32, #tpu.memory_space<vmem>>, vector<1x8xf32>
    %4 = vector.broadcast %3 : vector<1x8xf32> to vector<70x8xf32>
    %5 = arith.addf %2, %4 : vector<70x8xf32>
    %c0_5 = arith.constant 0 : index
    %c0_6 = arith.constant 0 : index
    %6 = vector.load %arg4[%c0_5, %c0_6] : memref<70x8xf32, #tpu.memory_space<vmem>>, vector<70x8xf32>
    tpu.vector_store %arg4[%c0_5, %c0_6], %5 {strides = array<i32>} : memref<70x8xf32, #tpu.memory_space<vmem>>, vector<70x8xf32>,
    %cst_7 = arith.constant 0.000000e+00 : f32
    %7 = vector.broadcast %cst_7 : f32 to vector<70x8xf32>
    %8 = arith.maximumf %5, %7 : vector<70x8xf32>
    %c0_8 = arith.constant 0 : index
    %c0_9 = arith.constant 0 : index
    %9 = vector.load %arg5[%c0_8, %c0_9] : memref<70x8xf32, #tpu.memory_space<vmem>>, vector<70x8xf32>
    tpu.vector_store %arg5[%c0_8, %c0_9], %8 {strides = array<i32>} : memref<70x8xf32, #tpu.memory_space<vmem>>, vector<70x8xf32>,
    return
  }
  func.func @transform_0(%arg0: i32) -> (i32, i32) {
    %c0_i32 = arith.constant 0 : i32
    %c0_i32_0 = arith.constant 0 : i32
    %c0_i32_1 = arith.constant 0 : i32
    return %c0_i32, %c0_i32_0 : i32, i32
  }
  func.func @transform_1(%arg0: i32) -> (i32, i32) {
    %c0_i32 = arith.constant 0 : i32
    %c0_i32_0 = arith.constant 0 : i32
    %c0_i32_1 = arith.constant 0 : i32
    return %c0_i32, %c0_i32_0 : i32, i32
  }
  func.func @transform_2(%arg0: i32) -> (i32, i32) {
    %c0_i32 = arith.constant 0 : i32
    %c0_i32_0 = arith.constant 0 : i32
    %c0_i32_1 = arith.constant 0 : i32
    return %c0_i32, %c0_i32_0 : i32, i32
  }
  func.func @transform_3(%arg0: i32) -> (i32, i32) {
    %c0_i32 = arith.constant 0 : i32
    %c0_i32_0 = arith.constant 0 : i32
    %c0_i32_1 = arith.constant 0 : i32
    return %c0_i32, %c0_i32_0 : i32, i32
  }
  func.func @transform_4(%arg0: i32) -> (i32, i32) {
    %c0_i32 = arith.constant 0 : i32
    %c0_i32_0 = arith.constant 0 : i32
    %c0_i32_1 = arith.constant 0 : i32
    return %c0_i32, %c0_i32_0 : i32, i32
  }
}

module attributes {stable_mosaic.version = 11 : i64} {
  func.func @_resblock_kernel(%arg0: i32, %arg1: memref<70x8xf32, #tpu.memory_space<vmem>>, %arg2: memref<70x72xf32, #tpu.memory_space<vmem>>, %arg3: memref<72x8xf32, #tpu.memory_space<vmem>>, %arg4: memref<1x8xf32, #tpu.memory_space<vmem>>, %arg5: memref<1x8xf32, #tpu.memory_space<vmem>>, %arg6: memref<1x8xf32, #tpu.memory_space<vmem>>, %arg7: memref<8x8xf32, #tpu.memory_space<vmem>>, %arg8: memref<1x8xf32, #tpu.memory_space<vmem>>, %arg9: memref<1x8xf32, #tpu.memory_space<vmem>>, %arg10: memref<1x8xf32, #tpu.memory_space<vmem>>, %arg11: memref<70x8xf32, #tpu.memory_space<vmem>>, %arg12: memref<70x8xf32, #tpu.memory_space<vmem>>) attributes {dimension_semantics = [#tpu.dimension_semantics<arbitrary>], iteration_bounds = array<i64: 1>, scalar_prefetch = 0 : i64, scratch_operands = 0 : i64, tpu.core_type = #tpu.core_type<tc>, window_params = [{pipeline_mode = #tpu.pipeline_mode<synchronous>, transform_indices = @transform_0, window_bounds = array<i64: 70, 8>}, {pipeline_mode = #tpu.pipeline_mode<synchronous>, transform_indices = @transform_1, window_bounds = array<i64: 70, 72>}, {pipeline_mode = #tpu.pipeline_mode<synchronous>, transform_indices = @transform_2, window_bounds = array<i64: 72, 8>}, {pipeline_mode = #tpu.pipeline_mode<synchronous>, transform_indices = @transform_3, window_bounds = array<i64: 1, 8>}, {pipeline_mode = #tpu.pipeline_mode<synchronous>, transform_indices = @transform_4, window_bounds = array<i64: 1, 8>}, {pipeline_mode = #tpu.pipeline_mode<synchronous>, transform_indices = @transform_5, window_bounds = array<i64: 1, 8>}, {pipeline_mode = #tpu.pipeline_mode<synchronous>, transform_indices = @transform_6, window_bounds = array<i64: 8, 8>}, {pipeline_mode = #tpu.pipeline_mode<synchronous>, transform_indices = @transform_7, window_bounds = array<i64: 1, 8>}, {pipeline_mode = #tpu.pipeline_mode<synchronous>, transform_indices = @transform_8, window_bounds = array<i64: 1, 8>}, {pipeline_mode = #tpu.pipeline_mode<synchronous>, transform_indices = @transform_9, window_bounds = array<i64: 1, 8>}, {pipeline_mode = #tpu.pipeline_mode<synchronous>, transform_indices = @transform_10, window_bounds = array<i64: 70, 8>}, {pipeline_mode = #tpu.pipeline_mode<synchronous>, transform_indices = @transform_11, window_bounds = array<i64: 70, 8>}]} {
    %c0 = arith.constant 0 : index
    %c0_0 = arith.constant 0 : index
    %0 = vector.load %arg2[%c0, %c0_0] : memref<70x72xf32, #tpu.memory_space<vmem>>, vector<70x72xf32>
    %c0_1 = arith.constant 0 : index
    %c0_2 = arith.constant 0 : index
    %1 = vector.load %arg3[%c0_1, %c0_2] : memref<72x8xf32, #tpu.memory_space<vmem>>, vector<72x8xf32>
    %cst = arith.constant dense<0.000000e+00> : vector<70x8xf32>
    %2 = tpu.matmul %0, %1, %cst {dimension_numbers = #tpu.dot_dimension_numbers<[1], [0], [0], [1], [0, 0, 1, 1], [], []>} : vector<70x72xf32>, vector<72x8xf32>, vector<70x8xf32> -> vector<70x8xf32>
    %c0_3 = arith.constant 0 : index
    %c0_4 = arith.constant 0 : index
    %3 = vector.load %arg4[%c0_3, %c0_4] : memref<1x8xf32, #tpu.memory_space<vmem>>, vector<1x8xf32>
    %4 = vector.broadcast %3 : vector<1x8xf32> to vector<70x8xf32>
    %5 = arith.addf %2, %4 : vector<70x8xf32>
    %c0_5 = arith.constant 0 : index
    %c0_6 = arith.constant 0 : index
    %6 = vector.load %arg5[%c0_5, %c0_6] : memref<1x8xf32, #tpu.memory_space<vmem>>, vector<1x8xf32>
    %c0_7 = arith.constant 0 : index
    %c0_8 = arith.constant 0 : index
    %7 = vector.load %arg6[%c0_7, %c0_8] : memref<1x8xf32, #tpu.memory_space<vmem>>, vector<1x8xf32>
    %cst_9 = arith.constant dense<0.000000e+00> : vector<8xf32>
    %8 = vector.multi_reduction <add>, %5, %cst_9 [0] : vector<70x8xf32> to vector<8xf32>
    %9 = vector.shape_cast %8 : vector<8xf32> to vector<1x8xf32>
    %cst_10 = arith.constant 7.000000e+01 : f32
    %10 = vector.broadcast %cst_10 : f32 to vector<1x8xf32>
    %11 = arith.divf %9, %10 : vector<1x8xf32>
    %12 = vector.broadcast %11 : vector<1x8xf32> to vector<70x8xf32>
    %13 = arith.subf %5, %12 : vector<70x8xf32>
    %14 = arith.mulf %13, %13 : vector<70x8xf32>
    %cst_11 = arith.constant dense<0.000000e+00> : vector<8xf32>
    %15 = vector.multi_reduction <add>, %14, %cst_11 [0] : vector<70x8xf32> to vector<8xf32>
    %16 = vector.shape_cast %15 : vector<8xf32> to vector<1x8xf32>
    %cst_12 = arith.constant 7.000000e+01 : f32
    %17 = vector.broadcast %cst_12 : f32 to vector<1x8xf32>
    %18 = arith.divf %16, %17 : vector<1x8xf32>
    %19 = vector.broadcast %11 : vector<1x8xf32> to vector<70x8xf32>
    %20 = arith.subf %5, %19 : vector<70x8xf32>
    %cst_13 = arith.constant 9.99999974E-6 : f32
    %21 = vector.broadcast %cst_13 : f32 to vector<1x8xf32>
    %22 = arith.addf %18, %21 : vector<1x8xf32>
    %23 = math.rsqrt %22 : vector<1x8xf32>
    %24 = vector.broadcast %23 : vector<1x8xf32> to vector<70x8xf32>
    %25 = arith.mulf %20, %24 : vector<70x8xf32>
    %26 = vector.broadcast %6 : vector<1x8xf32> to vector<70x8xf32>
    %27 = arith.mulf %25, %26 : vector<70x8xf32>
    %28 = vector.broadcast %7 : vector<1x8xf32> to vector<70x8xf32>
    %29 = arith.addf %27, %28 : vector<70x8xf32>
    %cst_14 = arith.constant 0.000000e+00 : f32
    %30 = vector.broadcast %cst_14 : f32 to vector<70x8xf32>
    %31 = arith.maximumf %29, %30 : vector<70x8xf32>
    %c0_15 = arith.constant 0 : index
    %c0_16 = arith.constant 0 : index
    %32 = vector.load %arg7[%c0_15, %c0_16] : memref<8x8xf32, #tpu.memory_space<vmem>>, vector<8x8xf32>
    %cst_17 = arith.constant dense<0.000000e+00> : vector<70x8xf32>
    %33 = tpu.matmul %31, %32, %cst_17 {dimension_numbers = #tpu.dot_dimension_numbers<[1], [0], [0], [1], [0, 0, 1, 1], [], []>} : vector<70x8xf32>, vector<8x8xf32>, vector<70x8xf32> -> vector<70x8xf32>
    %c0_18 = arith.constant 0 : index
    %c0_19 = arith.constant 0 : index
    %34 = vector.load %arg8[%c0_18, %c0_19] : memref<1x8xf32, #tpu.memory_space<vmem>>, vector<1x8xf32>
    %35 = vector.broadcast %34 : vector<1x8xf32> to vector<70x8xf32>
    %36 = arith.addf %33, %35 : vector<70x8xf32>
    %c0_20 = arith.constant 0 : index
    %c0_21 = arith.constant 0 : index
    %37 = vector.load %arg9[%c0_20, %c0_21] : memref<1x8xf32, #tpu.memory_space<vmem>>, vector<1x8xf32>
    %c0_22 = arith.constant 0 : index
    %c0_23 = arith.constant 0 : index
    %38 = vector.load %arg10[%c0_22, %c0_23] : memref<1x8xf32, #tpu.memory_space<vmem>>, vector<1x8xf32>
    %cst_24 = arith.constant dense<0.000000e+00> : vector<8xf32>
    %39 = vector.multi_reduction <add>, %36, %cst_24 [0] : vector<70x8xf32> to vector<8xf32>
    %40 = vector.shape_cast %39 : vector<8xf32> to vector<1x8xf32>
    %cst_25 = arith.constant 7.000000e+01 : f32
    %41 = vector.broadcast %cst_25 : f32 to vector<1x8xf32>
    %42 = arith.divf %40, %41 : vector<1x8xf32>
    %43 = vector.broadcast %42 : vector<1x8xf32> to vector<70x8xf32>
    %44 = arith.subf %36, %43 : vector<70x8xf32>
    %45 = arith.mulf %44, %44 : vector<70x8xf32>
    %cst_26 = arith.constant dense<0.000000e+00> : vector<8xf32>
    %46 = vector.multi_reduction <add>, %45, %cst_26 [0] : vector<70x8xf32> to vector<8xf32>
    %47 = vector.shape_cast %46 : vector<8xf32> to vector<1x8xf32>
    %cst_27 = arith.constant 7.000000e+01 : f32
    %48 = vector.broadcast %cst_27 : f32 to vector<1x8xf32>
    %49 = arith.divf %47, %48 : vector<1x8xf32>
    %50 = vector.broadcast %42 : vector<1x8xf32> to vector<70x8xf32>
    %51 = arith.subf %36, %50 : vector<70x8xf32>
    %cst_28 = arith.constant 9.99999974E-6 : f32
    %52 = vector.broadcast %cst_28 : f32 to vector<1x8xf32>
    %53 = arith.addf %49, %52 : vector<1x8xf32>
    %54 = math.rsqrt %53 : vector<1x8xf32>
    %55 = vector.broadcast %54 : vector<1x8xf32> to vector<70x8xf32>
    %56 = arith.mulf %51, %55 : vector<70x8xf32>
    %57 = vector.broadcast %37 : vector<1x8xf32> to vector<70x8xf32>
    %58 = arith.mulf %56, %57 : vector<70x8xf32>
    %59 = vector.broadcast %38 : vector<1x8xf32> to vector<70x8xf32>
    %60 = arith.addf %58, %59 : vector<70x8xf32>
    %c0_29 = arith.constant 0 : index
    %c0_30 = arith.constant 0 : index
    %61 = vector.load %arg1[%c0_29, %c0_30] : memref<70x8xf32, #tpu.memory_space<vmem>>, vector<70x8xf32>
    %62 = arith.addf %61, %60 : vector<70x8xf32>
    %c0_31 = arith.constant 0 : index
    %c0_32 = arith.constant 0 : index
    %63 = vector.load %arg11[%c0_31, %c0_32] : memref<70x8xf32, #tpu.memory_space<vmem>>, vector<70x8xf32>
    tpu.vector_store %arg11[%c0_31, %c0_32], %62 {strides = array<i32>} : memref<70x8xf32, #tpu.memory_space<vmem>>, vector<70x8xf32>,
    %cst_33 = arith.constant 0.000000e+00 : f32
    %64 = vector.broadcast %cst_33 : f32 to vector<70x8xf32>
    %65 = arith.maximumf %62, %64 : vector<70x8xf32>
    %c0_34 = arith.constant 0 : index
    %c0_35 = arith.constant 0 : index
    %66 = vector.load %arg12[%c0_34, %c0_35] : memref<70x8xf32, #tpu.memory_space<vmem>>, vector<70x8xf32>
    tpu.vector_store %arg12[%c0_34, %c0_35], %65 {strides = array<i32>} : memref<70x8xf32, #tpu.memory_space<vmem>>, vector<70x8xf32>,
    return
  }
  func.func @transform_0(%arg0: i32) -> (i32, i32) {
    %c0_i32 = arith.constant 0 : i32
    %c0_i32_0 = arith.constant 0 : i32
    %c0_i32_1 = arith.constant 0 : i32
    return %c0_i32, %c0_i32_0 : i32, i32
  }
  func.func @transform_1(%arg0: i32) -> (i32, i32) {
    %c0_i32 = arith.constant 0 : i32
    %c0_i32_0 = arith.constant 0 : i32
    %c0_i32_1 = arith.constant 0 : i32
    return %c0_i32, %c0_i32_0 : i32, i32
  }
  func.func @transform_2(%arg0: i32) -> (i32, i32) {
    %c0_i32 = arith.constant 0 : i32
    %c0_i32_0 = arith.constant 0 : i32
    %c0_i32_1 = arith.constant 0 : i32
    return %c0_i32, %c0_i32_0 : i32, i32
  }
  func.func @transform_3(%arg0: i32) -> (i32, i32) {
    %c0_i32 = arith.constant 0 : i32
    %c0_i32_0 = arith.constant 0 : i32
    %c0_i32_1 = arith.constant 0 : i32
    return %c0_i32, %c0_i32_0 : i32, i32
  }
  func.func @transform_4(%arg0: i32) -> (i32, i32) {
    %c0_i32 = arith.constant 0 : i32
    %c0_i32_0 = arith.constant 0 : i32
    %c0_i32_1 = arith.constant 0 : i32
    return %c0_i32, %c0_i32_0 : i32, i32
  }
  func.func @transform_5(%arg0: i32) -> (i32, i32) {
    %c0_i32 = arith.constant 0 : i32
    %c0_i32_0 = arith.constant 0 : i32
    %c0_i32_1 = arith.constant 0 : i32
    return %c0_i32, %c0_i32_0 : i32, i32
  }
  func.func @transform_6(%arg0: i32) -> (i32, i32) {
    %c0_i32 = arith.constant 0 : i32
    %c0_i32_0 = arith.constant 0 : i32
    %c0_i32_1 = arith.constant 0 : i32
    return %c0_i32, %c0_i32_0 : i32, i32
  }
  func.func @transform_7(%arg0: i32) -> (i32, i32) {
    %c0_i32 = arith.constant 0 : i32
    %c0_i32_0 = arith.constant 0 : i32
    %c0_i32_1 = arith.constant 0 : i32
    return %c0_i32, %c0_i32_0 : i32, i32
  }
  func.func @transform_8(%arg0: i32) -> (i32, i32) {
    %c0_i32 = arith.constant 0 : i32
    %c0_i32_0 = arith.constant 0 : i32
    %c0_i32_1 = arith.constant 0 : i32
    return %c0_i32, %c0_i32_0 : i32, i32
  }
  func.func @transform_9(%arg0: i32) -> (i32, i32) {
    %c0_i32 = arith.constant 0 : i32
    %c0_i32_0 = arith.constant 0 : i32
    %c0_i32_1 = arith.constant 0 : i32
    return %c0_i32, %c0_i32_0 : i32, i32
  }
  func.func @transform_10(%arg0: i32) -> (i32, i32) {
    %c0_i32 = arith.constant 0 : i32
    %c0_i32_0 = arith.constant 0 : i32
    %c0_i32_1 = arith.constant 0 : i32
    return %c0_i32, %c0_i32_0 : i32, i32
  }
  func.func @transform_11(%arg0: i32) -> (i32, i32) {
    %c0_i32 = arith.constant 0 : i32
    %c0_i32_0 = arith.constant 0 : i32
    %c0_i32_1 = arith.constant 0 : i32
    return %c0_i32, %c0_i32_0 : i32, i32
  }
}

module attributes {stable_mosaic.version = 11 : i64} {
  func.func @_resblock_kernel(%arg0: i32, %arg1: memref<70x8xf32, #tpu.memory_space<vmem>>, %arg2: memref<70x72xf32, #tpu.memory_space<vmem>>, %arg3: memref<72x8xf32, #tpu.memory_space<vmem>>, %arg4: memref<1x8xf32, #tpu.memory_space<vmem>>, %arg5: memref<1x8xf32, #tpu.memory_space<vmem>>, %arg6: memref<1x8xf32, #tpu.memory_space<vmem>>, %arg7: memref<8x8xf32, #tpu.memory_space<vmem>>, %arg8: memref<1x8xf32, #tpu.memory_space<vmem>>, %arg9: memref<1x8xf32, #tpu.memory_space<vmem>>, %arg10: memref<1x8xf32, #tpu.memory_space<vmem>>, %arg11: memref<70x8xf32, #tpu.memory_space<vmem>>, %arg12: memref<70x8xf32, #tpu.memory_space<vmem>>) attributes {dimension_semantics = [#tpu.dimension_semantics<arbitrary>], iteration_bounds = array<i64: 1>, scalar_prefetch = 0 : i64, scratch_operands = 0 : i64, tpu.core_type = #tpu.core_type<tc>, window_params = [{pipeline_mode = #tpu.pipeline_mode<synchronous>, transform_indices = @transform_0, window_bounds = array<i64: 70, 8>}, {pipeline_mode = #tpu.pipeline_mode<synchronous>, transform_indices = @transform_1, window_bounds = array<i64: 70, 72>}, {pipeline_mode = #tpu.pipeline_mode<synchronous>, transform_indices = @transform_2, window_bounds = array<i64: 72, 8>}, {pipeline_mode = #tpu.pipeline_mode<synchronous>, transform_indices = @transform_3, window_bounds = array<i64: 1, 8>}, {pipeline_mode = #tpu.pipeline_mode<synchronous>, transform_indices = @transform_4, window_bounds = array<i64: 1, 8>}, {pipeline_mode = #tpu.pipeline_mode<synchronous>, transform_indices = @transform_5, window_bounds = array<i64: 1, 8>}, {pipeline_mode = #tpu.pipeline_mode<synchronous>, transform_indices = @transform_6, window_bounds = array<i64: 8, 8>}, {pipeline_mode = #tpu.pipeline_mode<synchronous>, transform_indices = @transform_7, window_bounds = array<i64: 1, 8>}, {pipeline_mode = #tpu.pipeline_mode<synchronous>, transform_indices = @transform_8, window_bounds = array<i64: 1, 8>}, {pipeline_mode = #tpu.pipeline_mode<synchronous>, transform_indices = @transform_9, window_bounds = array<i64: 1, 8>}, {pipeline_mode = #tpu.pipeline_mode<synchronous>, transform_indices = @transform_10, window_bounds = array<i64: 70, 8>}, {pipeline_mode = #tpu.pipeline_mode<synchronous>, transform_indices = @transform_11, window_bounds = array<i64: 70, 8>}]} {
    %c0 = arith.constant 0 : index
    %c0_0 = arith.constant 0 : index
    %0 = vector.load %arg2[%c0, %c0_0] : memref<70x72xf32, #tpu.memory_space<vmem>>, vector<70x72xf32>
    %c0_1 = arith.constant 0 : index
    %c0_2 = arith.constant 0 : index
    %1 = vector.load %arg3[%c0_1, %c0_2] : memref<72x8xf32, #tpu.memory_space<vmem>>, vector<72x8xf32>
    %cst = arith.constant dense<0.000000e+00> : vector<70x8xf32>
    %2 = tpu.matmul %0, %1, %cst {dimension_numbers = #tpu.dot_dimension_numbers<[1], [0], [0], [1], [0, 0, 1, 1], [], []>} : vector<70x72xf32>, vector<72x8xf32>, vector<70x8xf32> -> vector<70x8xf32>
    %c0_3 = arith.constant 0 : index
    %c0_4 = arith.constant 0 : index
    %3 = vector.load %arg4[%c0_3, %c0_4] : memref<1x8xf32, #tpu.memory_space<vmem>>, vector<1x8xf32>
    %4 = vector.broadcast %3 : vector<1x8xf32> to vector<70x8xf32>
    %5 = arith.addf %2, %4 : vector<70x8xf32>
    %c0_5 = arith.constant 0 : index
    %c0_6 = arith.constant 0 : index
    %6 = vector.load %arg5[%c0_5, %c0_6] : memref<1x8xf32, #tpu.memory_space<vmem>>, vector<1x8xf32>
    %c0_7 = arith.constant 0 : index
    %c0_8 = arith.constant 0 : index
    %7 = vector.load %arg6[%c0_7, %c0_8] : memref<1x8xf32, #tpu.memory_space<vmem>>, vector<1x8xf32>
    %cst_9 = arith.constant dense<0.000000e+00> : vector<8xf32>
    %8 = vector.multi_reduction <add>, %5, %cst_9 [0] : vector<70x8xf32> to vector<8xf32>
    %9 = vector.shape_cast %8 : vector<8xf32> to vector<1x8xf32>
    %cst_10 = arith.constant 7.000000e+01 : f32
    %10 = vector.broadcast %cst_10 : f32 to vector<1x8xf32>
    %11 = arith.divf %9, %10 : vector<1x8xf32>
    %12 = vector.broadcast %11 : vector<1x8xf32> to vector<70x8xf32>
    %13 = arith.subf %5, %12 : vector<70x8xf32>
    %14 = arith.mulf %13, %13 : vector<70x8xf32>
    %cst_11 = arith.constant dense<0.000000e+00> : vector<8xf32>
    %15 = vector.multi_reduction <add>, %14, %cst_11 [0] : vector<70x8xf32> to vector<8xf32>
    %16 = vector.shape_cast %15 : vector<8xf32> to vector<1x8xf32>
    %cst_12 = arith.constant 7.000000e+01 : f32
    %17 = vector.broadcast %cst_12 : f32 to vector<1x8xf32>
    %18 = arith.divf %16, %17 : vector<1x8xf32>
    %19 = vector.broadcast %11 : vector<1x8xf32> to vector<70x8xf32>
    %20 = arith.subf %5, %19 : vector<70x8xf32>
    %cst_13 = arith.constant 9.99999974E-6 : f32
    %21 = vector.broadcast %cst_13 : f32 to vector<1x8xf32>
    %22 = arith.addf %18, %21 : vector<1x8xf32>
    %23 = math.rsqrt %22 : vector<1x8xf32>
    %24 = vector.broadcast %23 : vector<1x8xf32> to vector<70x8xf32>
    %25 = arith.mulf %20, %24 : vector<70x8xf32>
    %26 = vector.broadcast %6 : vector<1x8xf32> to vector<70x8xf32>
    %27 = arith.mulf %25, %26 : vector<70x8xf32>
    %28 = vector.broadcast %7 : vector<1x8xf32> to vector<70x8xf32>
    %29 = arith.addf %27, %28 : vector<70x8xf32>
    %cst_14 = arith.constant 0.000000e+00 : f32
    %30 = vector.broadcast %cst_14 : f32 to vector<70x8xf32>
    %31 = arith.maximumf %29, %30 : vector<70x8xf32>
    %c0_15 = arith.constant 0 : index
    %c0_16 = arith.constant 0 : index
    %32 = vector.load %arg7[%c0_15, %c0_16] : memref<8x8xf32, #tpu.memory_space<vmem>>, vector<8x8xf32>
    %cst_17 = arith.constant dense<0.000000e+00> : vector<70x8xf32>
    %33 = tpu.matmul %31, %32, %cst_17 {dimension_numbers = #tpu.dot_dimension_numbers<[1], [0], [0], [1], [0, 0, 1, 1], [], []>} : vector<70x8xf32>, vector<8x8xf32>, vector<70x8xf32> -> vector<70x8xf32>
    %c0_18 = arith.constant 0 : index
    %c0_19 = arith.constant 0 : index
    %34 = vector.load %arg8[%c0_18, %c0_19] : memref<1x8xf32, #tpu.memory_space<vmem>>, vector<1x8xf32>
    %35 = vector.broadcast %34 : vector<1x8xf32> to vector<70x8xf32>
    %36 = arith.addf %33, %35 : vector<70x8xf32>
    %c0_20 = arith.constant 0 : index
    %c0_21 = arith.constant 0 : index
    %37 = vector.load %arg9[%c0_20, %c0_21] : memref<1x8xf32, #tpu.memory_space<vmem>>, vector<1x8xf32>
    %c0_22 = arith.constant 0 : index
    %c0_23 = arith.constant 0 : index
    %38 = vector.load %arg10[%c0_22, %c0_23] : memref<1x8xf32, #tpu.memory_space<vmem>>, vector<1x8xf32>
    %cst_24 = arith.constant dense<0.000000e+00> : vector<8xf32>
    %39 = vector.multi_reduction <add>, %36, %cst_24 [0] : vector<70x8xf32> to vector<8xf32>
    %40 = vector.shape_cast %39 : vector<8xf32> to vector<1x8xf32>
    %cst_25 = arith.constant 7.000000e+01 : f32
    %41 = vector.broadcast %cst_25 : f32 to vector<1x8xf32>
    %42 = arith.divf %40, %41 : vector<1x8xf32>
    %43 = vector.broadcast %42 : vector<1x8xf32> to vector<70x8xf32>
    %44 = arith.subf %36, %43 : vector<70x8xf32>
    %45 = arith.mulf %44, %44 : vector<70x8xf32>
    %cst_26 = arith.constant dense<0.000000e+00> : vector<8xf32>
    %46 = vector.multi_reduction <add>, %45, %cst_26 [0] : vector<70x8xf32> to vector<8xf32>
    %47 = vector.shape_cast %46 : vector<8xf32> to vector<1x8xf32>
    %cst_27 = arith.constant 7.000000e+01 : f32
    %48 = vector.broadcast %cst_27 : f32 to vector<1x8xf32>
    %49 = arith.divf %47, %48 : vector<1x8xf32>
    %50 = vector.broadcast %42 : vector<1x8xf32> to vector<70x8xf32>
    %51 = arith.subf %36, %50 : vector<70x8xf32>
    %cst_28 = arith.constant 9.99999974E-6 : f32
    %52 = vector.broadcast %cst_28 : f32 to vector<1x8xf32>
    %53 = arith.addf %49, %52 : vector<1x8xf32>
    %54 = math.rsqrt %53 : vector<1x8xf32>
    %55 = vector.broadcast %54 : vector<1x8xf32> to vector<70x8xf32>
    %56 = arith.mulf %51, %55 : vector<70x8xf32>
    %57 = vector.broadcast %37 : vector<1x8xf32> to vector<70x8xf32>
    %58 = arith.mulf %56, %57 : vector<70x8xf32>
    %59 = vector.broadcast %38 : vector<1x8xf32> to vector<70x8xf32>
    %60 = arith.addf %58, %59 : vector<70x8xf32>
    %c0_29 = arith.constant 0 : index
    %c0_30 = arith.constant 0 : index
    %61 = vector.load %arg1[%c0_29, %c0_30] : memref<70x8xf32, #tpu.memory_space<vmem>>, vector<70x8xf32>
    %62 = arith.addf %61, %60 : vector<70x8xf32>
    %c0_31 = arith.constant 0 : index
    %c0_32 = arith.constant 0 : index
    %63 = vector.load %arg11[%c0_31, %c0_32] : memref<70x8xf32, #tpu.memory_space<vmem>>, vector<70x8xf32>
    tpu.vector_store %arg11[%c0_31, %c0_32], %62 {strides = array<i32>} : memref<70x8xf32, #tpu.memory_space<vmem>>, vector<70x8xf32>,
    %cst_33 = arith.constant 0.000000e+00 : f32
    %64 = vector.broadcast %cst_33 : f32 to vector<70x8xf32>
    %65 = arith.maximumf %62, %64 : vector<70x8xf32>
    %c0_34 = arith.constant 0 : index
    %c0_35 = arith.constant 0 : index
    %66 = vector.load %arg12[%c0_34, %c0_35] : memref<70x8xf32, #tpu.memory_space<vmem>>, vector<70x8xf32>
    tpu.vector_store %arg12[%c0_34, %c0_35], %65 {strides = array<i32>} : memref<70x8xf32, #tpu.memory_space<vmem>>, vector<70x8xf32>,
    return
  }
  func.func @transform_0(%arg0: i32) -> (i32, i32) {
    %c0_i32 = arith.constant 0 : i32
    %c0_i32_0 = arith.constant 0 : i32
    %c0_i32_1 = arith.constant 0 : i32
    return %c0_i32, %c0_i32_0 : i32, i32
  }
  func.func @transform_1(%arg0: i32) -> (i32, i32) {
    %c0_i32 = arith.constant 0 : i32
    %c0_i32_0 = arith.constant 0 : i32
    %c0_i32_1 = arith.constant 0 : i32
    return %c0_i32, %c0_i32_0 : i32, i32
  }
  func.func @transform_2(%arg0: i32) -> (i32, i32) {
    %c0_i32 = arith.constant 0 : i32
    %c0_i32_0 = arith.constant 0 : i32
    %c0_i32_1 = arith.constant 0 : i32
    return %c0_i32, %c0_i32_0 : i32, i32
  }
  func.func @transform_3(%arg0: i32) -> (i32, i32) {
    %c0_i32 = arith.constant 0 : i32
    %c0_i32_0 = arith.constant 0 : i32
    %c0_i32_1 = arith.constant 0 : i32
    return %c0_i32, %c0_i32_0 : i32, i32
  }
  func.func @transform_4(%arg0: i32) -> (i32, i32) {
    %c0_i32 = arith.constant 0 : i32
    %c0_i32_0 = arith.constant 0 : i32
    %c0_i32_1 = arith.constant 0 : i32
    return %c0_i32, %c0_i32_0 : i32, i32
  }
  func.func @transform_5(%arg0: i32) -> (i32, i32) {
    %c0_i32 = arith.constant 0 : i32
    %c0_i32_0 = arith.constant 0 : i32
    %c0_i32_1 = arith.constant 0 : i32
    return %c0_i32, %c0_i32_0 : i32, i32
  }
  func.func @transform_6(%arg0: i32) -> (i32, i32) {
    %c0_i32 = arith.constant 0 : i32
    %c0_i32_0 = arith.constant 0 : i32
    %c0_i32_1 = arith.constant 0 : i32
    return %c0_i32, %c0_i32_0 : i32, i32
  }
  func.func @transform_7(%arg0: i32) -> (i32, i32) {
    %c0_i32 = arith.constant 0 : i32
    %c0_i32_0 = arith.constant 0 : i32
    %c0_i32_1 = arith.constant 0 : i32
    return %c0_i32, %c0_i32_0 : i32, i32
  }
  func.func @transform_8(%arg0: i32) -> (i32, i32) {
    %c0_i32 = arith.constant 0 : i32
    %c0_i32_0 = arith.constant 0 : i32
    %c0_i32_1 = arith.constant 0 : i32
    return %c0_i32, %c0_i32_0 : i32, i32
  }
  func.func @transform_9(%arg0: i32) -> (i32, i32) {
    %c0_i32 = arith.constant 0 : i32
    %c0_i32_0 = arith.constant 0 : i32
    %c0_i32_1 = arith.constant 0 : i32
    return %c0_i32, %c0_i32_0 : i32, i32
  }
  func.func @transform_10(%arg0: i32) -> (i32, i32) {
    %c0_i32 = arith.constant 0 : i32
    %c0_i32_0 = arith.constant 0 : i32
    %c0_i32_1 = arith.constant 0 : i32
    return %c0_i32, %c0_i32_0 : i32, i32
  }
  func.func @transform_11(%arg0: i32) -> (i32, i32) {
    %c0_i32 = arith.constant 0 : i32
    %c0_i32_0 = arith.constant 0 : i32
    %c0_i32_1 = arith.constant 0 : i32
    return %c0_i32, %c0_i32_0 : i32, i32
  }
}

module attributes {stable_mosaic.version = 11 : i64} {
  func.func @_lstm_kernel(%arg0: i32, %arg1: memref<20x6xf32, #tpu.memory_space<vmem>>, %arg2: memref<6x64xf32, #tpu.memory_space<vmem>>, %arg3: memref<16x64xf32, #tpu.memory_space<vmem>>, %arg4: memref<1x64xf32, #tpu.memory_space<vmem>>, %arg5: memref<20x16xf32, #tpu.memory_space<vmem>>) attributes {dimension_semantics = [#tpu.dimension_semantics<arbitrary>], iteration_bounds = array<i64: 1>, scalar_prefetch = 0 : i64, scratch_operands = 0 : i64, tpu.core_type = #tpu.core_type<tc>, window_params = [{pipeline_mode = #tpu.pipeline_mode<synchronous>, transform_indices = @transform_0, window_bounds = array<i64: 20, 6>}, {pipeline_mode = #tpu.pipeline_mode<synchronous>, transform_indices = @transform_1, window_bounds = array<i64: 6, 64>}, {pipeline_mode = #tpu.pipeline_mode<synchronous>, transform_indices = @transform_2, window_bounds = array<i64: 16, 64>}, {pipeline_mode = #tpu.pipeline_mode<synchronous>, transform_indices = @transform_3, window_bounds = array<i64: 1, 64>}, {pipeline_mode = #tpu.pipeline_mode<synchronous>, transform_indices = @transform_4, window_bounds = array<i64: 20, 16>}]} {
    %c0 = arith.constant 0 : index
    %c0_0 = arith.constant 0 : index
    %0 = vector.load %arg1[%c0, %c0_0] : memref<20x6xf32, #tpu.memory_space<vmem>>, vector<20x6xf32>
    %c0_1 = arith.constant 0 : index
    %c0_2 = arith.constant 0 : index
    %1 = vector.load %arg2[%c0_1, %c0_2] : memref<6x64xf32, #tpu.memory_space<vmem>>, vector<6x64xf32>
    %cst = arith.constant dense<0.000000e+00> : vector<20x64xf32>
    %2 = tpu.matmul %0, %1, %cst {dimension_numbers = #tpu.dot_dimension_numbers<[1], [0], [0], [1], [0, 0, 1, 1], [], []>} : vector<20x6xf32>, vector<6x64xf32>, vector<20x64xf32> -> vector<20x64xf32>
    %c0_3 = arith.constant 0 : index
    %c0_4 = arith.constant 0 : index
    %3 = vector.load %arg4[%c0_3, %c0_4] : memref<1x64xf32, #tpu.memory_space<vmem>>, vector<1x64xf32>
    %4 = vector.broadcast %3 : vector<1x64xf32> to vector<20x64xf32>
    %5 = arith.addf %2, %4 : vector<20x64xf32>
    %c0_5 = arith.constant 0 : index
    %c0_6 = arith.constant 0 : index
    %6 = vector.load %arg3[%c0_5, %c0_6] : memref<16x64xf32, #tpu.memory_space<vmem>>, vector<16x64xf32>
    %cst_7 = arith.constant 0.000000e+00 : f32
    %7 = vector.broadcast %cst_7 : f32 to vector<2x16xf32>
    %cst_8 = arith.constant 0.000000e+00 : f32
    %8 = vector.broadcast %cst_8 : f32 to vector<2x16xf32>
    %9 = vector.extract_strided_slice %5 {offsets = [0, 0], sizes = [2, 64], strides = [1, 1]} : vector<20x64xf32> to vector<2x64xf32>
    %cst_9 = arith.constant dense<0.000000e+00> : vector<2x64xf32>
    %10 = tpu.matmul %7, %6, %cst_9 {dimension_numbers = #tpu.dot_dimension_numbers<[1], [0], [0], [1], [0, 0, 1, 1], [], []>} : vector<2x16xf32>, vector<16x64xf32>, vector<2x64xf32> -> vector<2x64xf32>
    %11 = arith.addf %9, %10 : vector<2x64xf32>
    %12 = vector.extract_strided_slice %11 {offsets = [0, 0], sizes = [2, 16], strides = [1, 1]} : vector<2x64xf32> to vector<2x16xf32>
    %13 = arith.negf %12 : vector<2x16xf32>
    %14 = math.exp %13 : vector<2x16xf32>
    %cst_10 = arith.constant 1.000000e+00 : f32
    %15 = vector.broadcast %cst_10 : f32 to vector<2x16xf32>
    %16 = arith.addf %15, %14 : vector<2x16xf32>
    %17 = arith.divf %15, %16 : vector<2x16xf32>
    %18 = vector.extract_strided_slice %11 {offsets = [0, 16], sizes = [2, 16], strides = [1, 1]} : vector<2x64xf32> to vector<2x16xf32>
    %19 = arith.negf %18 : vector<2x16xf32>
    %20 = math.exp %19 : vector<2x16xf32>
    %cst_11 = arith.constant 1.000000e+00 : f32
    %21 = vector.broadcast %cst_11 : f32 to vector<2x16xf32>
    %22 = arith.addf %21, %20 : vector<2x16xf32>
    %23 = arith.divf %21, %22 : vector<2x16xf32>
    %24 = vector.extract_strided_slice %11 {offsets = [0, 32], sizes = [2, 16], strides = [1, 1]} : vector<2x64xf32> to vector<2x16xf32>
    %25 = math.tanh %24 : vector<2x16xf32>
    %26 = vector.extract_strided_slice %11 {offsets = [0, 48], sizes = [2, 16], strides = [1, 1]} : vector<2x64xf32> to vector<2x16xf32>
    %27 = arith.negf %26 : vector<2x16xf32>
    %28 = math.exp %27 : vector<2x16xf32>
    %cst_12 = arith.constant 1.000000e+00 : f32
    %29 = vector.broadcast %cst_12 : f32 to vector<2x16xf32>
    %30 = arith.addf %29, %28 : vector<2x16xf32>
    %31 = arith.divf %29, %30 : vector<2x16xf32>
    %32 = arith.mulf %23, %8 : vector<2x16xf32>
    %33 = arith.mulf %17, %25 : vector<2x16xf32>
    %34 = arith.addf %32, %33 : vector<2x16xf32>
    %35 = math.tanh %34 : vector<2x16xf32>
    %36 = arith.mulf %31, %35 : vector<2x16xf32>
    %c0_13 = arith.constant 0 : index
    %c0_14 = arith.constant 0 : index
    %37 = vector.load %arg5[%c0_13, %c0_14] : memref<20x16xf32, #tpu.memory_space<vmem>>, vector<2x16xf32>
    tpu.vector_store %arg5[%c0_13, %c0_14], %36 {strides = array<i32>} : memref<20x16xf32, #tpu.memory_space<vmem>>, vector<2x16xf32>,
    %38 = vector.extract_strided_slice %5 {offsets = [2, 0], sizes = [2, 64], strides = [1, 1]} : vector<20x64xf32> to vector<2x64xf32>
    %cst_15 = arith.constant dense<0.000000e+00> : vector<2x64xf32>
    %39 = tpu.matmul %36, %6, %cst_15 {dimension_numbers = #tpu.dot_dimension_numbers<[1], [0], [0], [1], [0, 0, 1, 1], [], []>} : vector<2x16xf32>, vector<16x64xf32>, vector<2x64xf32> -> vector<2x64xf32>
    %40 = arith.addf %38, %39 : vector<2x64xf32>
    %41 = vector.extract_strided_slice %40 {offsets = [0, 0], sizes = [2, 16], strides = [1, 1]} : vector<2x64xf32> to vector<2x16xf32>
    %42 = arith.negf %41 : vector<2x16xf32>
    %43 = math.exp %42 : vector<2x16xf32>
    %cst_16 = arith.constant 1.000000e+00 : f32
    %44 = vector.broadcast %cst_16 : f32 to vector<2x16xf32>
    %45 = arith.addf %44, %43 : vector<2x16xf32>
    %46 = arith.divf %44, %45 : vector<2x16xf32>
    %47 = vector.extract_strided_slice %40 {offsets = [0, 16], sizes = [2, 16], strides = [1, 1]} : vector<2x64xf32> to vector<2x16xf32>
    %48 = arith.negf %47 : vector<2x16xf32>
    %49 = math.exp %48 : vector<2x16xf32>
    %cst_17 = arith.constant 1.000000e+00 : f32
    %50 = vector.broadcast %cst_17 : f32 to vector<2x16xf32>
    %51 = arith.addf %50, %49 : vector<2x16xf32>
    %52 = arith.divf %50, %51 : vector<2x16xf32>
    %53 = vector.extract_strided_slice %40 {offsets = [0, 32], sizes = [2, 16], strides = [1, 1]} : vector<2x64xf32> to vector<2x16xf32>
    %54 = math.tanh %53 : vector<2x16xf32>
    %55 = vector.extract_strided_slice %40 {offsets = [0, 48], sizes = [2, 16], strides = [1, 1]} : vector<2x64xf32> to vector<2x16xf32>
    %56 = arith.negf %55 : vector<2x16xf32>
    %57 = math.exp %56 : vector<2x16xf32>
    %cst_18 = arith.constant 1.000000e+00 : f32
    %58 = vector.broadcast %cst_18 : f32 to vector<2x16xf32>
    %59 = arith.addf %58, %57 : vector<2x16xf32>
    %60 = arith.divf %58, %59 : vector<2x16xf32>
    %61 = arith.mulf %52, %34 : vector<2x16xf32>
    %62 = arith.mulf %46, %54 : vector<2x16xf32>
    %63 = arith.addf %61, %62 : vector<2x16xf32>
    %64 = math.tanh %63 : vector<2x16xf32>
    %65 = arith.mulf %60, %64 : vector<2x16xf32>
    %c2 = arith.constant 2 : index
    %c0_19 = arith.constant 0 : index
    %66 = vector.load %arg5[%c2, %c0_19] : memref<20x16xf32, #tpu.memory_space<vmem>>, vector<2x16xf32>
    tpu.vector_store %arg5[%c2, %c0_19], %65 {strides = array<i32>} : memref<20x16xf32, #tpu.memory_space<vmem>>, vector<2x16xf32>,
    %67 = vector.extract_strided_slice %5 {offsets = [4, 0], sizes = [2, 64], strides = [1, 1]} : vector<20x64xf32> to vector<2x64xf32>
    %cst_20 = arith.constant dense<0.000000e+00> : vector<2x64xf32>
    %68 = tpu.matmul %65, %6, %cst_20 {dimension_numbers = #tpu.dot_dimension_numbers<[1], [0], [0], [1], [0, 0, 1, 1], [], []>} : vector<2x16xf32>, vector<16x64xf32>, vector<2x64xf32> -> vector<2x64xf32>
    %69 = arith.addf %67, %68 : vector<2x64xf32>
    %70 = vector.extract_strided_slice %69 {offsets = [0, 0], sizes = [2, 16], strides = [1, 1]} : vector<2x64xf32> to vector<2x16xf32>
    %71 = arith.negf %70 : vector<2x16xf32>
    %72 = math.exp %71 : vector<2x16xf32>
    %cst_21 = arith.constant 1.000000e+00 : f32
    %73 = vector.broadcast %cst_21 : f32 to vector<2x16xf32>
    %74 = arith.addf %73, %72 : vector<2x16xf32>
    %75 = arith.divf %73, %74 : vector<2x16xf32>
    %76 = vector.extract_strided_slice %69 {offsets = [0, 16], sizes = [2, 16], strides = [1, 1]} : vector<2x64xf32> to vector<2x16xf32>
    %77 = arith.negf %76 : vector<2x16xf32>
    %78 = math.exp %77 : vector<2x16xf32>
    %cst_22 = arith.constant 1.000000e+00 : f32
    %79 = vector.broadcast %cst_22 : f32 to vector<2x16xf32>
    %80 = arith.addf %79, %78 : vector<2x16xf32>
    %81 = arith.divf %79, %80 : vector<2x16xf32>
    %82 = vector.extract_strided_slice %69 {offsets = [0, 32], sizes = [2, 16], strides = [1, 1]} : vector<2x64xf32> to vector<2x16xf32>
    %83 = math.tanh %82 : vector<2x16xf32>
    %84 = vector.extract_strided_slice %69 {offsets = [0, 48], sizes = [2, 16], strides = [1, 1]} : vector<2x64xf32> to vector<2x16xf32>
    %85 = arith.negf %84 : vector<2x16xf32>
    %86 = math.exp %85 : vector<2x16xf32>
    %cst_23 = arith.constant 1.000000e+00 : f32
    %87 = vector.broadcast %cst_23 : f32 to vector<2x16xf32>
    %88 = arith.addf %87, %86 : vector<2x16xf32>
    %89 = arith.divf %87, %88 : vector<2x16xf32>
    %90 = arith.mulf %81, %63 : vector<2x16xf32>
    %91 = arith.mulf %75, %83 : vector<2x16xf32>
    %92 = arith.addf %90, %91 : vector<2x16xf32>
    %93 = math.tanh %92 : vector<2x16xf32>
    %94 = arith.mulf %89, %93 : vector<2x16xf32>
    %c4 = arith.constant 4 : index
    %c0_24 = arith.constant 0 : index
    %95 = vector.load %arg5[%c4, %c0_24] : memref<20x16xf32, #tpu.memory_space<vmem>>, vector<2x16xf32>
    tpu.vector_store %arg5[%c4, %c0_24], %94 {strides = array<i32>} : memref<20x16xf32, #tpu.memory_space<vmem>>, vector<2x16xf32>,
    %96 = vector.extract_strided_slice %5 {offsets = [6, 0], sizes = [2, 64], strides = [1, 1]} : vector<20x64xf32> to vector<2x64xf32>
    %cst_25 = arith.constant dense<0.000000e+00> : vector<2x64xf32>
    %97 = tpu.matmul %94, %6, %cst_25 {dimension_numbers = #tpu.dot_dimension_numbers<[1], [0], [0], [1], [0, 0, 1, 1], [], []>} : vector<2x16xf32>, vector<16x64xf32>, vector<2x64xf32> -> vector<2x64xf32>
    %98 = arith.addf %96, %97 : vector<2x64xf32>
    %99 = vector.extract_strided_slice %98 {offsets = [0, 0], sizes = [2, 16], strides = [1, 1]} : vector<2x64xf32> to vector<2x16xf32>
    %100 = arith.negf %99 : vector<2x16xf32>
    %101 = math.exp %100 : vector<2x16xf32>
    %cst_26 = arith.constant 1.000000e+00 : f32
    %102 = vector.broadcast %cst_26 : f32 to vector<2x16xf32>
    %103 = arith.addf %102, %101 : vector<2x16xf32>
    %104 = arith.divf %102, %103 : vector<2x16xf32>
    %105 = vector.extract_strided_slice %98 {offsets = [0, 16], sizes = [2, 16], strides = [1, 1]} : vector<2x64xf32> to vector<2x16xf32>
    %106 = arith.negf %105 : vector<2x16xf32>
    %107 = math.exp %106 : vector<2x16xf32>
    %cst_27 = arith.constant 1.000000e+00 : f32
    %108 = vector.broadcast %cst_27 : f32 to vector<2x16xf32>
    %109 = arith.addf %108, %107 : vector<2x16xf32>
    %110 = arith.divf %108, %109 : vector<2x16xf32>
    %111 = vector.extract_strided_slice %98 {offsets = [0, 32], sizes = [2, 16], strides = [1, 1]} : vector<2x64xf32> to vector<2x16xf32>
    %112 = math.tanh %111 : vector<2x16xf32>
    %113 = vector.extract_strided_slice %98 {offsets = [0, 48], sizes = [2, 16], strides = [1, 1]} : vector<2x64xf32> to vector<2x16xf32>
    %114 = arith.negf %113 : vector<2x16xf32>
    %115 = math.exp %114 : vector<2x16xf32>
    %cst_28 = arith.constant 1.000000e+00 : f32
    %116 = vector.broadcast %cst_28 : f32 to vector<2x16xf32>
    %117 = arith.addf %116, %115 : vector<2x16xf32>
    %118 = arith.divf %116, %117 : vector<2x16xf32>
    %119 = arith.mulf %110, %92 : vector<2x16xf32>
    %120 = arith.mulf %104, %112 : vector<2x16xf32>
    %121 = arith.addf %119, %120 : vector<2x16xf32>
    %122 = math.tanh %121 : vector<2x16xf32>
    %123 = arith.mulf %118, %122 : vector<2x16xf32>
    %c6 = arith.constant 6 : index
    %c0_29 = arith.constant 0 : index
    %124 = vector.load %arg5[%c6, %c0_29] : memref<20x16xf32, #tpu.memory_space<vmem>>, vector<2x16xf32>
    tpu.vector_store %arg5[%c6, %c0_29], %123 {strides = array<i32>} : memref<20x16xf32, #tpu.memory_space<vmem>>, vector<2x16xf32>,
    %125 = vector.extract_strided_slice %5 {offsets = [8, 0], sizes = [2, 64], strides = [1, 1]} : vector<20x64xf32> to vector<2x64xf32>
    %cst_30 = arith.constant dense<0.000000e+00> : vector<2x64xf32>
    %126 = tpu.matmul %123, %6, %cst_30 {dimension_numbers = #tpu.dot_dimension_numbers<[1], [0], [0], [1], [0, 0, 1, 1], [], []>} : vector<2x16xf32>, vector<16x64xf32>, vector<2x64xf32> -> vector<2x64xf32>
    %127 = arith.addf %125, %126 : vector<2x64xf32>
    %128 = vector.extract_strided_slice %127 {offsets = [0, 0], sizes = [2, 16], strides = [1, 1]} : vector<2x64xf32> to vector<2x16xf32>
    %129 = arith.negf %128 : vector<2x16xf32>
    %130 = math.exp %129 : vector<2x16xf32>
    %cst_31 = arith.constant 1.000000e+00 : f32
    %131 = vector.broadcast %cst_31 : f32 to vector<2x16xf32>
    %132 = arith.addf %131, %130 : vector<2x16xf32>
    %133 = arith.divf %131, %132 : vector<2x16xf32>
    %134 = vector.extract_strided_slice %127 {offsets = [0, 16], sizes = [2, 16], strides = [1, 1]} : vector<2x64xf32> to vector<2x16xf32>
    %135 = arith.negf %134 : vector<2x16xf32>
    %136 = math.exp %135 : vector<2x16xf32>
    %cst_32 = arith.constant 1.000000e+00 : f32
    %137 = vector.broadcast %cst_32 : f32 to vector<2x16xf32>
    %138 = arith.addf %137, %136 : vector<2x16xf32>
    %139 = arith.divf %137, %138 : vector<2x16xf32>
    %140 = vector.extract_strided_slice %127 {offsets = [0, 32], sizes = [2, 16], strides = [1, 1]} : vector<2x64xf32> to vector<2x16xf32>
    %141 = math.tanh %140 : vector<2x16xf32>
    %142 = vector.extract_strided_slice %127 {offsets = [0, 48], sizes = [2, 16], strides = [1, 1]} : vector<2x64xf32> to vector<2x16xf32>
    %143 = arith.negf %142 : vector<2x16xf32>
    %144 = math.exp %143 : vector<2x16xf32>
    %cst_33 = arith.constant 1.000000e+00 : f32
    %145 = vector.broadcast %cst_33 : f32 to vector<2x16xf32>
    %146 = arith.addf %145, %144 : vector<2x16xf32>
    %147 = arith.divf %145, %146 : vector<2x16xf32>
    %148 = arith.mulf %139, %121 : vector<2x16xf32>
    %149 = arith.mulf %133, %141 : vector<2x16xf32>
    %150 = arith.addf %148, %149 : vector<2x16xf32>
    %151 = math.tanh %150 : vector<2x16xf32>
    %152 = arith.mulf %147, %151 : vector<2x16xf32>
    %c8 = arith.constant 8 : index
    %c0_34 = arith.constant 0 : index
    %153 = vector.load %arg5[%c8, %c0_34] : memref<20x16xf32, #tpu.memory_space<vmem>>, vector<2x16xf32>
    tpu.vector_store %arg5[%c8, %c0_34], %152 {strides = array<i32>} : memref<20x16xf32, #tpu.memory_space<vmem>>, vector<2x16xf32>,
    %154 = vector.extract_strided_slice %5 {offsets = [10, 0], sizes = [2, 64], strides = [1, 1]} : vector<20x64xf32> to vector<2x64xf32>
    %cst_35 = arith.constant dense<0.000000e+00> : vector<2x64xf32>
    %155 = tpu.matmul %152, %6, %cst_35 {dimension_numbers = #tpu.dot_dimension_numbers<[1], [0], [0], [1], [0, 0, 1, 1], [], []>} : vector<2x16xf32>, vector<16x64xf32>, vector<2x64xf32> -> vector<2x64xf32>
    %156 = arith.addf %154, %155 : vector<2x64xf32>
    %157 = vector.extract_strided_slice %156 {offsets = [0, 0], sizes = [2, 16], strides = [1, 1]} : vector<2x64xf32> to vector<2x16xf32>
    %158 = arith.negf %157 : vector<2x16xf32>
    %159 = math.exp %158 : vector<2x16xf32>
    %cst_36 = arith.constant 1.000000e+00 : f32
    %160 = vector.broadcast %cst_36 : f32 to vector<2x16xf32>
    %161 = arith.addf %160, %159 : vector<2x16xf32>
    %162 = arith.divf %160, %161 : vector<2x16xf32>
    %163 = vector.extract_strided_slice %156 {offsets = [0, 16], sizes = [2, 16], strides = [1, 1]} : vector<2x64xf32> to vector<2x16xf32>
    %164 = arith.negf %163 : vector<2x16xf32>
    %165 = math.exp %164 : vector<2x16xf32>
    %cst_37 = arith.constant 1.000000e+00 : f32
    %166 = vector.broadcast %cst_37 : f32 to vector<2x16xf32>
    %167 = arith.addf %166, %165 : vector<2x16xf32>
    %168 = arith.divf %166, %167 : vector<2x16xf32>
    %169 = vector.extract_strided_slice %156 {offsets = [0, 32], sizes = [2, 16], strides = [1, 1]} : vector<2x64xf32> to vector<2x16xf32>
    %170 = math.tanh %169 : vector<2x16xf32>
    %171 = vector.extract_strided_slice %156 {offsets = [0, 48], sizes = [2, 16], strides = [1, 1]} : vector<2x64xf32> to vector<2x16xf32>
    %172 = arith.negf %171 : vector<2x16xf32>
    %173 = math.exp %172 : vector<2x16xf32>
    %cst_38 = arith.constant 1.000000e+00 : f32
    %174 = vector.broadcast %cst_38 : f32 to vector<2x16xf32>
    %175 = arith.addf %174, %173 : vector<2x16xf32>
    %176 = arith.divf %174, %175 : vector<2x16xf32>
    %177 = arith.mulf %168, %150 : vector<2x16xf32>
    %178 = arith.mulf %162, %170 : vector<2x16xf32>
    %179 = arith.addf %177, %178 : vector<2x16xf32>
    %180 = math.tanh %179 : vector<2x16xf32>
    %181 = arith.mulf %176, %180 : vector<2x16xf32>
    %c10 = arith.constant 10 : index
    %c0_39 = arith.constant 0 : index
    %182 = vector.load %arg5[%c10, %c0_39] : memref<20x16xf32, #tpu.memory_space<vmem>>, vector<2x16xf32>
    tpu.vector_store %arg5[%c10, %c0_39], %181 {strides = array<i32>} : memref<20x16xf32, #tpu.memory_space<vmem>>, vector<2x16xf32>,
    %183 = vector.extract_strided_slice %5 {offsets = [12, 0], sizes = [2, 64], strides = [1, 1]} : vector<20x64xf32> to vector<2x64xf32>
    %cst_40 = arith.constant dense<0.000000e+00> : vector<2x64xf32>
    %184 = tpu.matmul %181, %6, %cst_40 {dimension_numbers = #tpu.dot_dimension_numbers<[1], [0], [0], [1], [0, 0, 1, 1], [], []>} : vector<2x16xf32>, vector<16x64xf32>, vector<2x64xf32> -> vector<2x64xf32>
    %185 = arith.addf %183, %184 : vector<2x64xf32>
    %186 = vector.extract_strided_slice %185 {offsets = [0, 0], sizes = [2, 16], strides = [1, 1]} : vector<2x64xf32> to vector<2x16xf32>
    %187 = arith.negf %186 : vector<2x16xf32>
    %188 = math.exp %187 : vector<2x16xf32>
    %cst_41 = arith.constant 1.000000e+00 : f32
    %189 = vector.broadcast %cst_41 : f32 to vector<2x16xf32>
    %190 = arith.addf %189, %188 : vector<2x16xf32>
    %191 = arith.divf %189, %190 : vector<2x16xf32>
    %192 = vector.extract_strided_slice %185 {offsets = [0, 16], sizes = [2, 16], strides = [1, 1]} : vector<2x64xf32> to vector<2x16xf32>
    %193 = arith.negf %192 : vector<2x16xf32>
    %194 = math.exp %193 : vector<2x16xf32>
    %cst_42 = arith.constant 1.000000e+00 : f32
    %195 = vector.broadcast %cst_42 : f32 to vector<2x16xf32>
    %196 = arith.addf %195, %194 : vector<2x16xf32>
    %197 = arith.divf %195, %196 : vector<2x16xf32>
    %198 = vector.extract_strided_slice %185 {offsets = [0, 32], sizes = [2, 16], strides = [1, 1]} : vector<2x64xf32> to vector<2x16xf32>
    %199 = math.tanh %198 : vector<2x16xf32>
    %200 = vector.extract_strided_slice %185 {offsets = [0, 48], sizes = [2, 16], strides = [1, 1]} : vector<2x64xf32> to vector<2x16xf32>
    %201 = arith.negf %200 : vector<2x16xf32>
    %202 = math.exp %201 : vector<2x16xf32>
    %cst_43 = arith.constant 1.000000e+00 : f32
    %203 = vector.broadcast %cst_43 : f32 to vector<2x16xf32>
    %204 = arith.addf %203, %202 : vector<2x16xf32>
    %205 = arith.divf %203, %204 : vector<2x16xf32>
    %206 = arith.mulf %197, %179 : vector<2x16xf32>
    %207 = arith.mulf %191, %199 : vector<2x16xf32>
    %208 = arith.addf %206, %207 : vector<2x16xf32>
    %209 = math.tanh %208 : vector<2x16xf32>
    %210 = arith.mulf %205, %209 : vector<2x16xf32>
    %c12 = arith.constant 12 : index
    %c0_44 = arith.constant 0 : index
    %211 = vector.load %arg5[%c12, %c0_44] : memref<20x16xf32, #tpu.memory_space<vmem>>, vector<2x16xf32>
    tpu.vector_store %arg5[%c12, %c0_44], %210 {strides = array<i32>} : memref<20x16xf32, #tpu.memory_space<vmem>>, vector<2x16xf32>,
    %212 = vector.extract_strided_slice %5 {offsets = [14, 0], sizes = [2, 64], strides = [1, 1]} : vector<20x64xf32> to vector<2x64xf32>
    %cst_45 = arith.constant dense<0.000000e+00> : vector<2x64xf32>
    %213 = tpu.matmul %210, %6, %cst_45 {dimension_numbers = #tpu.dot_dimension_numbers<[1], [0], [0], [1], [0, 0, 1, 1], [], []>} : vector<2x16xf32>, vector<16x64xf32>, vector<2x64xf32> -> vector<2x64xf32>
    %214 = arith.addf %212, %213 : vector<2x64xf32>
    %215 = vector.extract_strided_slice %214 {offsets = [0, 0], sizes = [2, 16], strides = [1, 1]} : vector<2x64xf32> to vector<2x16xf32>
    %216 = arith.negf %215 : vector<2x16xf32>
    %217 = math.exp %216 : vector<2x16xf32>
    %cst_46 = arith.constant 1.000000e+00 : f32
    %218 = vector.broadcast %cst_46 : f32 to vector<2x16xf32>
    %219 = arith.addf %218, %217 : vector<2x16xf32>
    %220 = arith.divf %218, %219 : vector<2x16xf32>
    %221 = vector.extract_strided_slice %214 {offsets = [0, 16], sizes = [2, 16], strides = [1, 1]} : vector<2x64xf32> to vector<2x16xf32>
    %222 = arith.negf %221 : vector<2x16xf32>
    %223 = math.exp %222 : vector<2x16xf32>
    %cst_47 = arith.constant 1.000000e+00 : f32
    %224 = vector.broadcast %cst_47 : f32 to vector<2x16xf32>
    %225 = arith.addf %224, %223 : vector<2x16xf32>
    %226 = arith.divf %224, %225 : vector<2x16xf32>
    %227 = vector.extract_strided_slice %214 {offsets = [0, 32], sizes = [2, 16], strides = [1, 1]} : vector<2x64xf32> to vector<2x16xf32>
    %228 = math.tanh %227 : vector<2x16xf32>
    %229 = vector.extract_strided_slice %214 {offsets = [0, 48], sizes = [2, 16], strides = [1, 1]} : vector<2x64xf32> to vector<2x16xf32>
    %230 = arith.negf %229 : vector<2x16xf32>
    %231 = math.exp %230 : vector<2x16xf32>
    %cst_48 = arith.constant 1.000000e+00 : f32
    %232 = vector.broadcast %cst_48 : f32 to vector<2x16xf32>
    %233 = arith.addf %232, %231 : vector<2x16xf32>
    %234 = arith.divf %232, %233 : vector<2x16xf32>
    %235 = arith.mulf %226, %208 : vector<2x16xf32>
    %236 = arith.mulf %220, %228 : vector<2x16xf32>
    %237 = arith.addf %235, %236 : vector<2x16xf32>
    %238 = math.tanh %237 : vector<2x16xf32>
    %239 = arith.mulf %234, %238 : vector<2x16xf32>
    %c14 = arith.constant 14 : index
    %c0_49 = arith.constant 0 : index
    %240 = vector.load %arg5[%c14, %c0_49] : memref<20x16xf32, #tpu.memory_space<vmem>>, vector<2x16xf32>
    tpu.vector_store %arg5[%c14, %c0_49], %239 {strides = array<i32>} : memref<20x16xf32, #tpu.memory_space<vmem>>, vector<2x16xf32>,
    %241 = vector.extract_strided_slice %5 {offsets = [16, 0], sizes = [2, 64], strides = [1, 1]} : vector<20x64xf32> to vector<2x64xf32>
    %cst_50 = arith.constant dense<0.000000e+00> : vector<2x64xf32>
    %242 = tpu.matmul %239, %6, %cst_50 {dimension_numbers = #tpu.dot_dimension_numbers<[1], [0], [0], [1], [0, 0, 1, 1], [], []>} : vector<2x16xf32>, vector<16x64xf32>, vector<2x64xf32> -> vector<2x64xf32>
    %243 = arith.addf %241, %242 : vector<2x64xf32>
    %244 = vector.extract_strided_slice %243 {offsets = [0, 0], sizes = [2, 16], strides = [1, 1]} : vector<2x64xf32> to vector<2x16xf32>
    %245 = arith.negf %244 : vector<2x16xf32>
    %246 = math.exp %245 : vector<2x16xf32>
    %cst_51 = arith.constant 1.000000e+00 : f32
    %247 = vector.broadcast %cst_51 : f32 to vector<2x16xf32>
    %248 = arith.addf %247, %246 : vector<2x16xf32>
    %249 = arith.divf %247, %248 : vector<2x16xf32>
    %250 = vector.extract_strided_slice %243 {offsets = [0, 16], sizes = [2, 16], strides = [1, 1]} : vector<2x64xf32> to vector<2x16xf32>
    %251 = arith.negf %250 : vector<2x16xf32>
    %252 = math.exp %251 : vector<2x16xf32>
    %cst_52 = arith.constant 1.000000e+00 : f32
    %253 = vector.broadcast %cst_52 : f32 to vector<2x16xf32>
    %254 = arith.addf %253, %252 : vector<2x16xf32>
    %255 = arith.divf %253, %254 : vector<2x16xf32>
    %256 = vector.extract_strided_slice %243 {offsets = [0, 32], sizes = [2, 16], strides = [1, 1]} : vector<2x64xf32> to vector<2x16xf32>
    %257 = math.tanh %256 : vector<2x16xf32>
    %258 = vector.extract_strided_slice %243 {offsets = [0, 48], sizes = [2, 16], strides = [1, 1]} : vector<2x64xf32> to vector<2x16xf32>
    %259 = arith.negf %258 : vector<2x16xf32>
    %260 = math.exp %259 : vector<2x16xf32>
    %cst_53 = arith.constant 1.000000e+00 : f32
    %261 = vector.broadcast %cst_53 : f32 to vector<2x16xf32>
    %262 = arith.addf %261, %260 : vector<2x16xf32>
    %263 = arith.divf %261, %262 : vector<2x16xf32>
    %264 = arith.mulf %255, %237 : vector<2x16xf32>
    %265 = arith.mulf %249, %257 : vector<2x16xf32>
    %266 = arith.addf %264, %265 : vector<2x16xf32>
    %267 = math.tanh %266 : vector<2x16xf32>
    %268 = arith.mulf %263, %267 : vector<2x16xf32>
    %c16 = arith.constant 16 : index
    %c0_54 = arith.constant 0 : index
    %269 = vector.load %arg5[%c16, %c0_54] : memref<20x16xf32, #tpu.memory_space<vmem>>, vector<2x16xf32>
    tpu.vector_store %arg5[%c16, %c0_54], %268 {strides = array<i32>} : memref<20x16xf32, #tpu.memory_space<vmem>>, vector<2x16xf32>,
    %270 = vector.extract_strided_slice %5 {offsets = [18, 0], sizes = [2, 64], strides = [1, 1]} : vector<20x64xf32> to vector<2x64xf32>
    %cst_55 = arith.constant dense<0.000000e+00> : vector<2x64xf32>
    %271 = tpu.matmul %268, %6, %cst_55 {dimension_numbers = #tpu.dot_dimension_numbers<[1], [0], [0], [1], [0, 0, 1, 1], [], []>} : vector<2x16xf32>, vector<16x64xf32>, vector<2x64xf32> -> vector<2x64xf32>
    %272 = arith.addf %270, %271 : vector<2x64xf32>
    %273 = vector.extract_strided_slice %272 {offsets = [0, 0], sizes = [2, 16], strides = [1, 1]} : vector<2x64xf32> to vector<2x16xf32>
    %274 = arith.negf %273 : vector<2x16xf32>
    %275 = math.exp %274 : vector<2x16xf32>
    %cst_56 = arith.constant 1.000000e+00 : f32
    %276 = vector.broadcast %cst_56 : f32 to vector<2x16xf32>
    %277 = arith.addf %276, %275 : vector<2x16xf32>
    %278 = arith.divf %276, %277 : vector<2x16xf32>
    %279 = vector.extract_strided_slice %272 {offsets = [0, 16], sizes = [2, 16], strides = [1, 1]} : vector<2x64xf32> to vector<2x16xf32>
    %280 = arith.negf %279 : vector<2x16xf32>
    %281 = math.exp %280 : vector<2x16xf32>
    %cst_57 = arith.constant 1.000000e+00 : f32
    %282 = vector.broadcast %cst_57 : f32 to vector<2x16xf32>
    %283 = arith.addf %282, %281 : vector<2x16xf32>
    %284 = arith.divf %282, %283 : vector<2x16xf32>
    %285 = vector.extract_strided_slice %272 {offsets = [0, 32], sizes = [2, 16], strides = [1, 1]} : vector<2x64xf32> to vector<2x16xf32>
    %286 = math.tanh %285 : vector<2x16xf32>
    %287 = vector.extract_strided_slice %272 {offsets = [0, 48], sizes = [2, 16], strides = [1, 1]} : vector<2x64xf32> to vector<2x16xf32>
    %288 = arith.negf %287 : vector<2x16xf32>
    %289 = math.exp %288 : vector<2x16xf32>
    %cst_58 = arith.constant 1.000000e+00 : f32
    %290 = vector.broadcast %cst_58 : f32 to vector<2x16xf32>
    %291 = arith.addf %290, %289 : vector<2x16xf32>
    %292 = arith.divf %290, %291 : vector<2x16xf32>
    %293 = arith.mulf %284, %266 : vector<2x16xf32>
    %294 = arith.mulf %278, %286 : vector<2x16xf32>
    %295 = arith.addf %293, %294 : vector<2x16xf32>
    %296 = math.tanh %295 : vector<2x16xf32>
    %297 = arith.mulf %292, %296 : vector<2x16xf32>
    %c18 = arith.constant 18 : index
    %c0_59 = arith.constant 0 : index
    %298 = vector.load %arg5[%c18, %c0_59] : memref<20x16xf32, #tpu.memory_space<vmem>>, vector<2x16xf32>
    tpu.vector_store %arg5[%c18, %c0_59], %297 {strides = array<i32>} : memref<20x16xf32, #tpu.memory_space<vmem>>, vector<2x16xf32>,
    return
  }
  func.func @transform_0(%arg0: i32) -> (i32, i32) {
    %c0_i32 = arith.constant 0 : i32
    %c0_i32_0 = arith.constant 0 : i32
    %c0_i32_1 = arith.constant 0 : i32
    return %c0_i32, %c0_i32_0 : i32, i32
  }
  func.func @transform_1(%arg0: i32) -> (i32, i32) {
    %c0_i32 = arith.constant 0 : i32
    %c0_i32_0 = arith.constant 0 : i32
    %c0_i32_1 = arith.constant 0 : i32
    return %c0_i32, %c0_i32_0 : i32, i32
  }
  func.func @transform_2(%arg0: i32) -> (i32, i32) {
    %c0_i32 = arith.constant 0 : i32
    %c0_i32_0 = arith.constant 0 : i32
    %c0_i32_1 = arith.constant 0 : i32
    return %c0_i32, %c0_i32_0 : i32, i32
  }
  func.func @transform_3(%arg0: i32) -> (i32, i32) {
    %c0_i32 = arith.constant 0 : i32
    %c0_i32_0 = arith.constant 0 : i32
    %c0_i32_1 = arith.constant 0 : i32
    return %c0_i32, %c0_i32_0 : i32, i32
  }
  func.func @transform_4(%arg0: i32) -> (i32, i32) {
    %c0_i32 = arith.constant 0 : i32
    %c0_i32_0 = arith.constant 0 : i32
    %c0_i32_1 = arith.constant 0 : i32
    return %c0_i32, %c0_i32_0 : i32, i32
  }
}

module attributes {stable_mosaic.version = 11 : i64} {
  func.func @_head_q_kernel(%arg0: i32, %arg1: memref<2x280xf32, #tpu.memory_space<vmem>>, %arg2: memref<280x16xf32, #tpu.memory_space<vmem>>, %arg3: memref<2x160xf32, #tpu.memory_space<vmem>>, %arg4: memref<160x16xf32, #tpu.memory_space<vmem>>, %arg5: memref<1x16xf32, #tpu.memory_space<vmem>>, %arg6: memref<2x16xf32, #tpu.memory_space<vmem>>) attributes {dimension_semantics = [#tpu.dimension_semantics<arbitrary>], iteration_bounds = array<i64: 1>, scalar_prefetch = 0 : i64, scratch_operands = 0 : i64, tpu.core_type = #tpu.core_type<tc>, window_params = [{pipeline_mode = #tpu.pipeline_mode<synchronous>, transform_indices = @transform_0, window_bounds = array<i64: 2, 280>}, {pipeline_mode = #tpu.pipeline_mode<synchronous>, transform_indices = @transform_1, window_bounds = array<i64: 280, 16>}, {pipeline_mode = #tpu.pipeline_mode<synchronous>, transform_indices = @transform_2, window_bounds = array<i64: 2, 160>}, {pipeline_mode = #tpu.pipeline_mode<synchronous>, transform_indices = @transform_3, window_bounds = array<i64: 160, 16>}, {pipeline_mode = #tpu.pipeline_mode<synchronous>, transform_indices = @transform_4, window_bounds = array<i64: 1, 16>}, {pipeline_mode = #tpu.pipeline_mode<synchronous>, transform_indices = @transform_5, window_bounds = array<i64: 2, 16>}]} {
    %c0 = arith.constant 0 : index
    %c0_0 = arith.constant 0 : index
    %0 = vector.load %arg1[%c0, %c0_0] : memref<2x280xf32, #tpu.memory_space<vmem>>, vector<2x280xf32>
    %c0_1 = arith.constant 0 : index
    %c0_2 = arith.constant 0 : index
    %1 = vector.load %arg2[%c0_1, %c0_2] : memref<280x16xf32, #tpu.memory_space<vmem>>, vector<280x16xf32>
    %cst = arith.constant dense<0.000000e+00> : vector<2x16xf32>
    %2 = tpu.matmul %0, %1, %cst {dimension_numbers = #tpu.dot_dimension_numbers<[1], [0], [0], [1], [0, 0, 1, 1], [], []>} : vector<2x280xf32>, vector<280x16xf32>, vector<2x16xf32> -> vector<2x16xf32>
    %c0_3 = arith.constant 0 : index
    %c0_4 = arith.constant 0 : index
    %3 = vector.load %arg3[%c0_3, %c0_4] : memref<2x160xf32, #tpu.memory_space<vmem>>, vector<2x160xf32>
    %c0_5 = arith.constant 0 : index
    %c0_6 = arith.constant 0 : index
    %4 = vector.load %arg4[%c0_5, %c0_6] : memref<160x16xf32, #tpu.memory_space<vmem>>, vector<160x16xf32>
    %cst_7 = arith.constant dense<0.000000e+00> : vector<2x16xf32>
    %5 = tpu.matmul %3, %4, %cst_7 {dimension_numbers = #tpu.dot_dimension_numbers<[1], [0], [0], [1], [0, 0, 1, 1], [], []>} : vector<2x160xf32>, vector<160x16xf32>, vector<2x16xf32> -> vector<2x16xf32>
    %6 = arith.addf %2, %5 : vector<2x16xf32>
    %c0_8 = arith.constant 0 : index
    %c0_9 = arith.constant 0 : index
    %7 = vector.load %arg5[%c0_8, %c0_9] : memref<1x16xf32, #tpu.memory_space<vmem>>, vector<1x16xf32>
    %8 = vector.broadcast %7 : vector<1x16xf32> to vector<2x16xf32>
    %9 = arith.addf %6, %8 : vector<2x16xf32>
    %cst_10 = arith.constant dense<0xFF800000> : vector<2xf32>
    %10 = vector.multi_reduction <maximumf>, %9, %cst_10 [1] : vector<2x16xf32> to vector<2xf32>
    %11 = vector.shape_cast %10 : vector<2xf32> to vector<2x1xf32>
    %12 = vector.broadcast %11 : vector<2x1xf32> to vector<2x16xf32>
    %13 = arith.subf %9, %12 : vector<2x16xf32>
    %14 = math.exp %13 : vector<2x16xf32>
    %cst_11 = arith.constant dense<0.000000e+00> : vector<2xf32>
    %15 = vector.multi_reduction <add>, %14, %cst_11 [1] : vector<2x16xf32> to vector<2xf32>
    %16 = vector.shape_cast %15 : vector<2xf32> to vector<2x1xf32>
    %17 = tpu.reciprocal %16 {approx = true} : vector<2x1xf32> -> vector<2x1xf32>
    %18 = vector.broadcast %17 : vector<2x1xf32> to vector<2x16xf32>
    %19 = arith.mulf %14, %18 : vector<2x16xf32>
    %c0_12 = arith.constant 0 : index
    %c0_13 = arith.constant 0 : index
    %20 = vector.load %arg6[%c0_12, %c0_13] : memref<2x16xf32, #tpu.memory_space<vmem>>, vector<2x16xf32>
    tpu.vector_store %arg6[%c0_12, %c0_13], %19 {strides = array<i32>} : memref<2x16xf32, #tpu.memory_space<vmem>>, vector<2x16xf32>,
    return
  }
  func.func @transform_0(%arg0: i32) -> (i32, i32) {
    %c0_i32 = arith.constant 0 : i32
    %c0_i32_0 = arith.constant 0 : i32
    %c0_i32_1 = arith.constant 0 : i32
    return %c0_i32, %c0_i32_0 : i32, i32
  }
  func.func @transform_1(%arg0: i32) -> (i32, i32) {
    %c0_i32 = arith.constant 0 : i32
    %c0_i32_0 = arith.constant 0 : i32
    %c0_i32_1 = arith.constant 0 : i32
    return %c0_i32, %c0_i32_0 : i32, i32
  }
  func.func @transform_2(%arg0: i32) -> (i32, i32) {
    %c0_i32 = arith.constant 0 : i32
    %c0_i32_0 = arith.constant 0 : i32
    %c0_i32_1 = arith.constant 0 : i32
    return %c0_i32, %c0_i32_0 : i32, i32
  }
  func.func @transform_3(%arg0: i32) -> (i32, i32) {
    %c0_i32 = arith.constant 0 : i32
    %c0_i32_0 = arith.constant 0 : i32
    %c0_i32_1 = arith.constant 0 : i32
    return %c0_i32, %c0_i32_0 : i32, i32
  }
  func.func @transform_4(%arg0: i32) -> (i32, i32) {
    %c0_i32 = arith.constant 0 : i32
    %c0_i32_0 = arith.constant 0 : i32
    %c0_i32_1 = arith.constant 0 : i32
    return %c0_i32, %c0_i32_0 : i32, i32
  }
  func.func @transform_5(%arg0: i32) -> (i32, i32) {
    %c0_i32 = arith.constant 0 : i32
    %c0_i32_0 = arith.constant 0 : i32
    %c0_i32_1 = arith.constant 0 : i32
    return %c0_i32, %c0_i32_0 : i32, i32
  }
}

module attributes {stable_mosaic.version = 11 : i64} {
  func.func @_head_p_kernel(%arg0: i32, %arg1: memref<2x160xf32, #tpu.memory_space<vmem>>, %arg2: memref<160x16xf32, #tpu.memory_space<vmem>>, %arg3: memref<1x16xf32, #tpu.memory_space<vmem>>, %arg4: memref<2x16xf32, #tpu.memory_space<vmem>>) attributes {dimension_semantics = [#tpu.dimension_semantics<arbitrary>], iteration_bounds = array<i64: 1>, scalar_prefetch = 0 : i64, scratch_operands = 0 : i64, tpu.core_type = #tpu.core_type<tc>, window_params = [{pipeline_mode = #tpu.pipeline_mode<synchronous>, transform_indices = @transform_0, window_bounds = array<i64: 2, 160>}, {pipeline_mode = #tpu.pipeline_mode<synchronous>, transform_indices = @transform_1, window_bounds = array<i64: 160, 16>}, {pipeline_mode = #tpu.pipeline_mode<synchronous>, transform_indices = @transform_2, window_bounds = array<i64: 1, 16>}, {pipeline_mode = #tpu.pipeline_mode<synchronous>, transform_indices = @transform_3, window_bounds = array<i64: 2, 16>}]} {
    %c0 = arith.constant 0 : index
    %c0_0 = arith.constant 0 : index
    %0 = vector.load %arg1[%c0, %c0_0] : memref<2x160xf32, #tpu.memory_space<vmem>>, vector<2x160xf32>
    %c0_1 = arith.constant 0 : index
    %c0_2 = arith.constant 0 : index
    %1 = vector.load %arg2[%c0_1, %c0_2] : memref<160x16xf32, #tpu.memory_space<vmem>>, vector<160x16xf32>
    %cst = arith.constant dense<0.000000e+00> : vector<2x16xf32>
    %2 = tpu.matmul %0, %1, %cst {dimension_numbers = #tpu.dot_dimension_numbers<[1], [0], [0], [1], [0, 0, 1, 1], [], []>} : vector<2x160xf32>, vector<160x16xf32>, vector<2x16xf32> -> vector<2x16xf32>
    %c0_3 = arith.constant 0 : index
    %c0_4 = arith.constant 0 : index
    %3 = vector.load %arg3[%c0_3, %c0_4] : memref<1x16xf32, #tpu.memory_space<vmem>>, vector<1x16xf32>
    %4 = vector.broadcast %3 : vector<1x16xf32> to vector<2x16xf32>
    %5 = arith.addf %2, %4 : vector<2x16xf32>
    %cst_5 = arith.constant dense<0xFF800000> : vector<2xf32>
    %6 = vector.multi_reduction <maximumf>, %5, %cst_5 [1] : vector<2x16xf32> to vector<2xf32>
    %7 = vector.shape_cast %6 : vector<2xf32> to vector<2x1xf32>
    %8 = vector.broadcast %7 : vector<2x1xf32> to vector<2x16xf32>
    %9 = arith.subf %5, %8 : vector<2x16xf32>
    %10 = math.exp %9 : vector<2x16xf32>
    %cst_6 = arith.constant dense<0.000000e+00> : vector<2xf32>
    %11 = vector.multi_reduction <add>, %10, %cst_6 [1] : vector<2x16xf32> to vector<2xf32>
    %12 = vector.shape_cast %11 : vector<2xf32> to vector<2x1xf32>
    %13 = tpu.reciprocal %12 {approx = true} : vector<2x1xf32> -> vector<2x1xf32>
    %14 = vector.broadcast %13 : vector<2x1xf32> to vector<2x16xf32>
    %15 = arith.mulf %10, %14 : vector<2x16xf32>
    %c0_7 = arith.constant 0 : index
    %c0_8 = arith.constant 0 : index
    %16 = vector.load %arg4[%c0_7, %c0_8] : memref<2x16xf32, #tpu.memory_space<vmem>>, vector<2x16xf32>
    tpu.vector_store %arg4[%c0_7, %c0_8], %15 {strides = array<i32>} : memref<2x16xf32, #tpu.memory_space<vmem>>, vector<2x16xf32>,
    return
  }
  func.func @transform_0(%arg0: i32) -> (i32, i32) {
    %c0_i32 = arith.constant 0 : i32
    %c0_i32_0 = arith.constant 0 : i32
    %c0_i32_1 = arith.constant 0 : i32
    return %c0_i32, %c0_i32_0 : i32, i32
  }
  func.func @transform_1(%arg0: i32) -> (i32, i32) {
    %c0_i32 = arith.constant 0 : i32
    %c0_i32_0 = arith.constant 0 : i32
    %c0_i32_1 = arith.constant 0 : i32
    return %c0_i32, %c0_i32_0 : i32, i32
  }
  func.func @transform_2(%arg0: i32) -> (i32, i32) {
    %c0_i32 = arith.constant 0 : i32
    %c0_i32_0 = arith.constant 0 : i32
    %c0_i32_1 = arith.constant 0 : i32
    return %c0_i32, %c0_i32_0 : i32, i32
  }
  func.func @transform_3(%arg0: i32) -> (i32, i32) {
    %c0_i32 = arith.constant 0 : i32
    %c0_i32_0 = arith.constant 0 : i32
    %c0_i32_1 = arith.constant 0 : i32
    return %c0_i32, %c0_i32_0 : i32, i32
  }
}

</mosaic_0001>

<llo_original>
// kernel: encoder_forward.9
$region0: #{encoder_forward.9}
  #allocation0 [shape = 'u32[]', space=smem, size = 0x4, offset = 0x4, fixed_abs, tag = 'smem constant byte address 0x4 - core index']
  #allocation1 [shape = 'u32[144,128]{1,0:T(1,128)}', space=vmem, size = 0x12000, scoped, tag = 'internal scratch']
  %s0 = inlined_call_operand.vmem [shape: f32[280,16], index: 0, kind: input, shape index: {}]
  %s1 = inlined_call_operand.vmem [shape: f32[16,8], index: 1, kind: input, shape index: {}]
  %s2 = inlined_call_operand.vmem [shape: f32[1,8], index: 2, kind: input, shape index: {}]
  %s3 = inlined_call_operand.vmem [shape: f32[1,8], index: 3, kind: input, shape index: {}]
  %s4 = inlined_call_operand.vmem [shape: f32[1,8], index: 4, kind: input, shape index: {}]
  %s5 = inlined_call_operand.vmem [shape: f32[280,8], index: 5, kind: output, shape index: {}]
  %s6 = sld [smem:[#allocation0]]
  $region30: #{encoder_forward.9} parent=0
    _
  %s8 = ssub.s32 1, %s6
  %s9 = scalar_select 0, %s8, %s6
  // Predicated region
  $region2: #{encoder_forward.9} parent=0 // pred_check
    _
  $region3: #{encoder_forward.9} parent=0 // pred_check_branch
    %11 = sbr.rel (0) target = $region5
  $region4: #{encoder_forward.9} parent=0 // pred_region
    _
  $region5: #{encoder_forward.9} parent=0 // pred_fallthru
    _
  // Predicated region
  $region6: #{encoder_forward.9} parent=0 // pred_check
    _
  $region7: #{encoder_forward.9} parent=0 // pred_check_branch
    %13 = sbr.rel (0) target = $region9
  $region8: #{encoder_forward.9} parent=0 // pred_region
    _
  $region9: #{encoder_forward.9} parent=0 // pred_fallthru
    _
  // Predicated region
  $region10: #{encoder_forward.9} parent=0 // pred_check
    _
  $region11: #{encoder_forward.9} parent=0 // pred_check_branch
    %15 = sbr.rel (0) target = $region13
  $region12: #{encoder_forward.9} parent=0 // pred_region
    _
  $region13: #{encoder_forward.9} parent=0 // pred_fallthru
    _
  // Predicated region
  $region14: #{encoder_forward.9} parent=0 // pred_check
    _
  $region15: #{encoder_forward.9} parent=0 // pred_check_branch
    %17 = sbr.rel (0) target = $region17
  $region16: #{encoder_forward.9} parent=0 // pred_region
    _
  $region17: #{encoder_forward.9} parent=0 // pred_fallthru
    _
  // Predicated region
  $region18: #{encoder_forward.9} parent=0 // pred_check
    _
  $region19: #{encoder_forward.9} parent=0 // pred_check_branch
    %19 = sbr.rel (0) target = $region21
  $region20: #{encoder_forward.9} parent=0 // pred_region
    _
  $region21: #{encoder_forward.9} parent=0 // pred_fallthru
    _
  %v20 = vld [vmem:[%s0] sm:$0xff]
  %v21 = vld [vmem:[%s0 + $0x8] sm:$0xff]
  %v22 = vld [vmem:[%s0 + $0x10] sm:$0xff]
  %v23 = vld [vmem:[%s0 + $0x18] sm:$0xff]
  %v24 = vld [vmem:[%s0 + $0x20] sm:$0xff]
  %v25 = vld [vmem:[%s0 + $0x28] sm:$0xff]
  %v26 = vld [vmem:[%s0 + $0x30] sm:$0xff]
  %v27 = vld [vmem:[%s0 + $0x38] sm:$0xff]
  %v28 = vld [vmem:[%s0 + $0x40] sm:$0xff]
  %v29 = vld [vmem:[%s0 + $0x48] sm:$0xff]
  %v30 = vld [vmem:[%s0 + $0x50] sm:$0xff]
  %v31 = vld [vmem:[%s0 + $0x58] sm:$0xff]
  %v32 = vld [vmem:[%s0 + $0x60] sm:$0xff]
  %v33 = vld [vmem:[%s0 + $0x68] sm:$0xff]
  %v34 = vld [vmem:[%s0 + $0x70] sm:$0xff]
  %v35 = vld [vmem:[%s0 + $0x78] sm:$0xff]
  %v36 = vld [vmem:[%s0 + $0x80] sm:$0xff]
  %v37 = vld [vmem:[%s0 + $0x88] sm:$0xff]
  %v38 = vld [vmem:[%s0 + $0x90] sm:$0xff]
  %v39 = vld [vmem:[%s0 + $0x98] sm:$0xff]
  %v40 = vld [vmem:[%s0 + $0xa0] sm:$0xff]
  %v41 = vld [vmem:[%s0 + $0xa8] sm:$0xff]
  %v42 = vld [vmem:[%s0 + $0xb0] sm:$0xff]
  %v43 = vld [vmem:[%s0 + $0xb8] sm:$0xff]
  %v44 = vld [vmem:[%s0 + $0xc0] sm:$0xff]
  %v45 = vld [vmem:[%s0 + $0xc8] sm:$0xff]
  %v46 = vld [vmem:[%s0 + $0xd0] sm:$0xff]
  %v47 = vld [vmem:[%s0 + $0xd8] sm:$0xff]
  %v48 = vld [vmem:[%s0 + $0xe0] sm:$0xff]
  %v49 = vld [vmem:[%s0 + $0xe8] sm:$0xff]
  %v50 = vld [vmem:[%s0 + $0xf0] sm:$0xff]
  %v51 = vld [vmem:[%s0 + $0xf8] sm:$0xff]
  %v52 = vld [vmem:[%s0 + $0x100] sm:$0xff]
  %v53 = vld [vmem:[%s0 + $0x108] sm:$0xff]
  %v54 = vld [vmem:[%s0 + $0x110] sm:$0xff]
  %v55 = vld [vmem:[%s1] sm:$0xff]
  %v56 = vld [vmem:[%s1 + $0x8] sm:$0xff]
  %v57 = vld [vmem:[%s2] sm:$0x1]
  %v59 = vlaneseq
  %v60 = vshrl.u32 %v59, 7
  %v61 = vsub.s32 0, %v60
  %v62 = vrot.slane %v57, %v61
  %vm64 = vcmask 130048
  %v66 = vsel %vm64, %v20, 0
  %v69 = vsel %vm64, %v21, 0
  %v72 = vsel %vm64, %v22, 0
  %v75 = vsel %vm64, %v23, 0
  %v78 = vsel %vm64, %v24, 0
  %v81 = vsel %vm64, %v25, 0
  %v84 = vsel %vm64, %v26, 0
  %v87 = vsel %vm64, %v27, 0
  %v90 = vsel %vm64, %v28, 0
  %v93 = vsel %vm64, %v29, 0
  %v96 = vsel %vm64, %v30, 0
  %v99 = vsel %vm64, %v31, 0
  %v102 = vsel %vm64, %v32, 0
  %v105 = vsel %vm64, %v33, 0
  %v108 = vsel %vm64, %v34, 0
  %v111 = vsel %vm64, %v35, 0
  %v114 = vsel %vm64, %v36, 0
  %v117 = vsel %vm64, %v37, 0
  %v120 = vsel %vm64, %v38, 0
  %v123 = vsel %vm64, %v39, 0
  %v126 = vsel %vm64, %v40, 0
  %v129 = vsel %vm64, %v41, 0
  %v132 = vsel %vm64, %v42, 0
  %v135 = vsel %vm64, %v43, 0
  %v138 = vsel %vm64, %v44, 0
  %v141 = vsel %vm64, %v45, 0
  %v144 = vsel %vm64, %v46, 0
  %v147 = vsel %vm64, %v47, 0
  %v150 = vsel %vm64, %v48, 0
  %v153 = vsel %vm64, %v49, 0
  %v156 = vsel %vm64, %v50, 0
  %v159 = vsel %vm64, %v51, 0
  %v162 = vsel %vm64, %v52, 0
  %v165 = vsel %vm64, %v53, 0
  %v168 = vsel %vm64, %v54, 0
  %170 = vmatprep.subr.mxu0 0.0
  %171 = vmatpush1.msra.mxu0 %v55
  %172 = vmatprep.subr.mxu0 0.0
  %173 = vmatpush1.msra.mxu0 %v56
  %174 = vmatprep.subr.mxu0 0.0
  %175 = vmatpush1.msra.mxu0 0.0
  %176 = vmatprep.subr.mxu0 0.0
  %177 = vmatpush1.msra.mxu0 0.0
  %178 = vmatprep.subr.mxu0 0.0
  %179 = vmatpush1.msra.mxu0 0.0
  %180 = vmatprep.subr.mxu0 0.0
  %181 = vmatpush1.msra.mxu0 0.0
  %182 = vmatprep.subr.mxu0 0.0
  %183 = vmatpush1.msra.mxu0 0.0
  %184 = vmatprep.subr.mxu0 0.0
  %185 = vmatpush1.msra.mxu0 0.0
  %186 = vmatprep.subr.mxu0 0.0
  %187 = vmatpush1.msra.mxu0 0.0
  %188 = vmatprep.subr.mxu0 0.0
  %189 = vmatpush1.msra.mxu0 0.0
  %190 = vmatprep.subr.mxu0 0.0
  %191 = vmatpush1.msra.mxu0 0.0
  %192 = vmatprep.subr.mxu0 0.0
  %193 = vmatpush1.msra.mxu0 0.0
  %194 = vmatprep.subr.mxu0 0.0
  %195 = vmatpush1.msra.mxu0 0.0
  %196 = vmatprep.subr.mxu0 0.0
  %197 = vmatpush1.msra.mxu0 0.0
  %198 = vmatprep.subr.mxu0 0.0
  %199 = vmatpush1.msra.mxu0 0.0
  %200 = vmatprep.subr.mxu0 0.0
  %201 = vmatpush1.msra.mxu0 0.0
  %202 = vmatprep.subr.mxu0 0.0
  %203 = vmatpush1.msra.mxu0 0.0
  %204 = vmatprep.subr.mxu0 0.0
  %205 = vmatpush1.msra.mxu0 0.0
  %206 = vmatprep.subr.mxu0 0.0
  %207 = vmatpush1.msra.mxu0 0.0
  %208 = vmatprep.subr.mxu0 0.0
  %209 = vmatpush1.msra.mxu0 0.0
  %210 = vmatprep.subr.mxu0 0.0
  %211 = vmatpush1.msra.mxu0 0.0
  %212 = vmatprep.subr.mxu0 0.0
  %213 = vmatpush1.msra.mxu0 0.0
  %214 = vmatprep.subr.mxu0 0.0
  %215 = vmatpush1.msra.mxu0 0.0
  %216 = vmatprep.subr.mxu0 0.0
  %217 = vmatpush1.msra.mxu0 0.0
  %218 = vmatprep.subr.mxu0 0.0
  %219 = vmatpush1.msra.mxu0 0.0
  %220 = vmatprep.subr.mxu0 0.0
  %221 = vmatpush1.msra.mxu0 0.0
  %222 = vmatprep.subr.mxu0 0.0
  %223 = vmatpush1.msra.mxu0 0.0
  %224 = vmatprep.subr.mxu0 0.0
  %225 = vmatpush1.msra.mxu0 0.0
  %226 = vmatprep.subr.mxu0 0.0
  %227 = vmatpush1.msra.mxu0 0.0
  %228 = vmatprep.subr.mxu0 0.0
  %229 = vmatpush1.msra.mxu0 0.0
  %230 = vmatprep.subr.mxu0 0.0
  %231 = vmatpush1.msra.mxu0 0.0
  %232 = vmatprep.subr.mxu0 0.0
  %233 = vmatpush1.msra.mxu0 0.0
  %234 = vmatprep.mubr.f32.mxu0 0.0
  %235 = vmatmul.mubr.f32.gmra.mrb[0].mxu0 %v66
  %v236 = vpop.f32.mrb[0].mxu0
  %v237 = vadd.f32 %v62, %v236
  %v238 = vpop.f32.mrb[0].mxu0
  %239 = vmatprep.mubr.f32.mxu0 0.0
  %240 = vmatmul.mubr.f32.gmra.mrb[0].mxu0 %v69
  %v241 = vpop.f32.mrb[0].mxu0
  %v242 = vadd.f32 %v62, %v241
  %v243 = vpop.f32.mrb[0].mxu0
  %244 = vmatprep.mubr.f32.mxu0 0.0
  %245 = vmatmul.mubr.f32.gmra.mrb[0].mxu0 %v72
  %v246 = vpop.f32.mrb[0].mxu0
  %v247 = vadd.f32 %v62, %v246
  %v248 = vpop.f32.mrb[0].mxu0
  %249 = vmatprep.mubr.f32.mxu0 0.0
  %250 = vmatmul.mubr.f32.gmra.mrb[0].mxu0 %v75
  %v251 = vpop.f32.mrb[0].mxu0
  %v252 = vadd.f32 %v62, %v251
  %v253 = vpop.f32.mrb[0].mxu0
  %254 = vmatprep.mubr.f32.mxu0 0.0
  %255 = vmatmul.mubr.f32.gmra.mrb[0].mxu0 %v78
  %v256 = vpop.f32.mrb[0].mxu0
  %v257 = vadd.f32 %v62, %v256
  %v258 = vpop.f32.mrb[0].mxu0
  %259 = vmatprep.mubr.f32.mxu0 0.0
  %260 = vmatmul.mubr.f32.gmra.mrb[0].mxu0 %v81
  %v261 = vpop.f32.mrb[0].mxu0
  %v262 = vadd.f32 %v62, %v261
  %v263 = vpop.f32.mrb[0].mxu0
  %264 = vmatprep.mubr.f32.mxu0 0.0
  %265 = vmatmul.mubr.f32.gmra.mrb[0].mxu0 %v84
  %v266 = vpop.f32.mrb[0].mxu0
  %v267 = vadd.f32 %v62, %v266
  %v268 = vpop.f32.mrb[0].mxu0
  %269 = vmatprep.mubr.f32.mxu0 0.0
  %270 = vmatmul.mubr.f32.gmra.mrb[0].mxu0 %v87
  %v271 = vpop.f32.mrb[0].mxu0
  %v272 = vadd.f32 %v62, %v271
  %v273 = vpop.f32.mrb[0].mxu0
  %274 = vmatprep.mubr.f32.mxu0 0.0
  %275 = vmatmul.mubr.f32.gmra.mrb[0].mxu0 %v90
  %v276 = vpop.f32.mrb[0].mxu0
  %v277 = vadd.f32 %v62, %v276
  %v278 = vpop.f32.mrb[0].mxu0
  %279 = vmatprep.mubr.f32.mxu0 0.0
  %280 = vmatmul.mubr.f32.gmra.mrb[0].mxu0 %v93
  %v281 = vpop.f32.mrb[0].mxu0
  %v282 = vadd.f32 %v62, %v281
  %v283 = vpop.f32.mrb[0].mxu0
  %284 = vmatprep.mubr.f32.mxu0 0.0
  %285 = vmatmul.mubr.f32.gmra.mrb[0].mxu0 %v96
  %v286 = vpop.f32.mrb[0].mxu0
  %v287 = vadd.f32 %v62, %v286
  %v288 = vpop.f32.mrb[0].mxu0
  %289 = vmatprep.mubr.f32.mxu0 0.0
  %290 = vmatmul.mubr.f32.gmra.mrb[0].mxu0 %v99
  %v291 = vpop.f32.mrb[0].mxu0
  %v292 = vadd.f32 %v62, %v291
  %v293 = vpop.f32.mrb[0].mxu0
  %294 = vmatprep.mubr.f32.mxu0 0.0
  %295 = vmatmul.mubr.f32.gmra.mrb[0].mxu0 %v102
  %v296 = vpop.f32.mrb[0].mxu0
  %v297 = vadd.f32 %v62, %v296
  %v298 = vpop.f32.mrb[0].mxu0
  %299 = vmatprep.mubr.f32.mxu0 0.0
  %300 = vmatmul.mubr.f32.gmra.mrb[0].mxu0 %v105
  %v301 = vpop.f32.mrb[0].mxu0
  %v302 = vadd.f32 %v62, %v301
  %v303 = vpop.f32.mrb[0].mxu0
  %304 = vmatprep.mubr.f32.mxu0 0.0
  %305 = vmatmul.mubr.f32.gmra.mrb[0].mxu0 %v108
  %v306 = vpop.f32.mrb[0].mxu0
  %v307 = vadd.f32 %v62, %v306
  %v308 = vpop.f32.mrb[0].mxu0
  %309 = vmatprep.mubr.f32.mxu0 0.0
  %310 = vmatmul.mubr.f32.gmra.mrb[0].mxu0 %v111
  %v311 = vpop.f32.mrb[0].mxu0
  %v312 = vadd.f32 %v62, %v311
  %v313 = vpop.f32.mrb[0].mxu0
  %314 = vmatprep.mubr.f32.mxu0 0.0
  %315 = vmatmul.mubr.f32.gmra.mrb[0].mxu0 %v114
  %v316 = vpop.f32.mrb[0].mxu0
  %v317 = vadd.f32 %v62, %v316
  %v318 = vpop.f32.mrb[0].mxu0
  %319 = vmatprep.mubr.f32.mxu0 0.0
  %320 = vmatmul.mubr.f32.gmra.mrb[0].mxu0 %v117
  %v321 = vpop.f32.mrb[0].mxu0
  %v322 = vadd.f32 %v62, %v321
  %v323 = vpop.f32.mrb[0].mxu0
  %324 = vmatprep.mubr.f32.mxu0 0.0
  %325 = vmatmul.mubr.f32.gmra.mrb[0].mxu0 %v120
  %v326 = vpop.f32.mrb[0].mxu0
  %v327 = vadd.f32 %v62, %v326
  %v328 = vpop.f32.mrb[0].mxu0
  %329 = vmatprep.mubr.f32.mxu0 0.0
  %330 = vmatmul.mubr.f32.gmra.mrb[0].mxu0 %v123
  %v331 = vpop.f32.mrb[0].mxu0
  %v332 = vadd.f32 %v62, %v331
  %v333 = vpop.f32.mrb[0].mxu0
  %334 = vmatprep.mubr.f32.mxu0 0.0
  %335 = vmatmul.mubr.f32.gmra.mrb[0].mxu0 %v126
  %v336 = vpop.f32.mrb[0].mxu0
  %v337 = vadd.f32 %v62, %v336
  %v338 = vpop.f32.mrb[0].mxu0
  %339 = vmatprep.mubr.f32.mxu0 0.0
  %340 = vmatmul.mubr.f32.gmra.mrb[0].mxu0 %v129
  %v341 = vpop.f32.mrb[0].mxu0
  %v342 = vadd.f32 %v62, %v341
  %v343 = vpop.f32.mrb[0].mxu0
  %344 = vmatprep.mubr.f32.mxu0 0.0
  %345 = vmatmul.mubr.f32.gmra.mrb[0].mxu0 %v132
  %v346 = vpop.f32.mrb[0].mxu0
  %v347 = vadd.f32 %v62, %v346
  %v348 = vpop.f32.mrb[0].mxu0
  %349 = vmatprep.mubr.f32.mxu0 0.0
  %350 = vmatmul.mubr.f32.gmra.mrb[0].mxu0 %v135
  %v351 = vpop.f32.mrb[0].mxu0
  %v352 = vadd.f32 %v62, %v351
  %v353 = vpop.f32.mrb[0].mxu0
  %354 = vmatprep.mubr.f32.mxu0 0.0
  %355 = vmatmul.mubr.f32.gmra.mrb[0].mxu0 %v138
  %v356 = vpop.f32.mrb[0].mxu0
  %v357 = vadd.f32 %v62, %v356
  %v358 = vpop.f32.mrb[0].mxu0
  %359 = vmatprep.mubr.f32.mxu0 0.0
  %360 = vmatmul.mubr.f32.gmra.mrb[0].mxu0 %v141
  %v361 = vpop.f32.mrb[0].mxu0
  %v362 = vadd.f32 %v62, %v361
  %v363 = vpop.f32.mrb[0].mxu0
  %364 = vmatprep.mubr.f32.mxu0 0.0
  %365 = vmatmul.mubr.f32.gmra.mrb[0].mxu0 %v144
  %v366 = vpop.f32.mrb[0].mxu0
  %v367 = vadd.f32 %v62, %v366
  %v368 = vpop.f32.mrb[0].mxu0
  %369 = vmatprep.mubr.f32.mxu0 0.0
  %370 = vmatmul.mubr.f32.gmra.mrb[0].mxu0 %v147
  %v371 = vpop.f32.mrb[0].mxu0
  %v372 = vadd.f32 %v62, %v371
  %v373 = vpop.f32.mrb[0].mxu0
  %374 = vmatprep.mubr.f32.mxu0 0.0
  %375 = vmatmul.mubr.f32.gmra.mrb[0].mxu0 %v150
  %v376 = vpop.f32.mrb[0].mxu0
  %v377 = vadd.f32 %v62, %v376
  %v378 = vpop.f32.mrb[0].mxu0
  %379 = vmatprep.mubr.f32.mxu0 0.0
  %380 = vmatmul.mubr.f32.gmra.mrb[0].mxu0 %v153
  %v381 = vpop.f32.mrb[0].mxu0
  %v382 = vadd.f32 %v62, %v381
  %v383 = vpop.f32.mrb[0].mxu0
  %384 = vmatprep.mubr.f32.mxu0 0.0
  %385 = vmatmul.mubr.f32.gmra.mrb[0].mxu0 %v156
  %v386 = vpop.f32.mrb[0].mxu0
  %v387 = vadd.f32 %v62, %v386
  %v388 = vpop.f32.mrb[0].mxu0
  %389 = vmatprep.mubr.f32.mxu0 0.0
  %390 = vmatmul.mubr.f32.gmra.mrb[0].mxu0 %v159
  %v391 = vpop.f32.mrb[0].mxu0
  %v392 = vadd.f32 %v62, %v391
  %v393 = vpop.f32.mrb[0].mxu0
  %394 = vmatprep.mubr.f32.mxu0 0.0
  %395 = vmatmul.mubr.f32.gmra.mrb[0].mxu0 %v162
  %v396 = vpop.f32.mrb[0].mxu0
  %v397 = vadd.f32 %v62, %v396
  %v398 = vpop.f32.mrb[0].mxu0
  %399 = vmatprep.mubr.f32.mxu0 0.0
  %400 = vmatmul.mubr.f32.gmra.mrb[0].mxu0 %v165
  %v401 = vpop.f32.mrb[0].mxu0
  %v402 = vadd.f32 %v62, %v401
  %v403 = vpop.f32.mrb[0].mxu0
  %404 = vmatprep.mubr.f32.mxu0 0.0
  %405 = vmatmul.mubr.f32.gmra.mrb[0].mxu0 %v168
  %v406 = vpop.f32.mrb[0].mxu0
  %v407 = vadd.f32 %v62, %v406
  %v408 = vpop.f32.mrb[0].mxu0
  %409 = vdwg.mxu0
  %v410 = vld [vmem:[%s3] sm:$0x1]
  %v411 = vld [vmem:[%s4] sm:$0x1]
  %vm412 = vcmask 64512
  %v413 = vsel %vm412, %v237, 0.0
  %v414 = vsel %vm412, %v242, 0.0
  %v415 = vadd.f32 %v413, %v414
  %v416 = vsel %vm412, %v247, 0.0
  %v417 = vadd.f32 %v415, %v416
  %v418 = vsel %vm412, %v252, 0.0
  %v419 = vadd.f32 %v417, %v418
  %v420 = vsel %vm412, %v257, 0.0
  %v421 = vadd.f32 %v419, %v420
  %v422 = vsel %vm412, %v262, 0.0
  %v423 = vadd.f32 %v421, %v422
  %v424 = vsel %vm412, %v267, 0.0
  %v425 = vadd.f32 %v423, %v424
  %v426 = vsel %vm412, %v272, 0.0
  %v427 = vadd.f32 %v425, %v426
  %v428 = vsel %vm412, %v277, 0.0
  %v429 = vadd.f32 %v427, %v428
  %v430 = vsel %vm412, %v282, 0.0
  %v431 = vadd.f32 %v429, %v430
  %v432 = vsel %vm412, %v287, 0.0
  %v433 = vadd.f32 %v431, %v432
  %v434 = vsel %vm412, %v292, 0.0
  %v435 = vadd.f32 %v433, %v434
  %v436 = vsel %vm412, %v297, 0.0
  %v437 = vadd.f32 %v435, %v436
  %v438 = vsel %vm412, %v302, 0.0
  %v439 = vadd.f32 %v437, %v438
  %v440 = vsel %vm412, %v307, 0.0
  %v441 = vadd.f32 %v439, %v440
  %v442 = vsel %vm412, %v312, 0.0
  %v443 = vadd.f32 %v441, %v442
  %v444 = vsel %vm412, %v317, 0.0
  %v445 = vadd.f32 %v443, %v444
  %v446 = vsel %vm412, %v322, 0.0
  %v447 = vadd.f32 %v445, %v446
  %v448 = vsel %vm412, %v327, 0.0
  %v449 = vadd.f32 %v447, %v448
  %v450 = vsel %vm412, %v332, 0.0
  %v451 = vadd.f32 %v449, %v450
  %v452 = vsel %vm412, %v337, 0.0
  %v453 = vadd.f32 %v451, %v452
  %v454 = vsel %vm412, %v342, 0.0
  %v455 = vadd.f32 %v453, %v454
  %v456 = vsel %vm412, %v347, 0.0
  %v457 = vadd.f32 %v455, %v456
  %v458 = vsel %vm412, %v352, 0.0
  %v459 = vadd.f32 %v457, %v458
  %v460 = vsel %vm412, %v357, 0.0
  %v461 = vadd.f32 %v459, %v460
  %v462 = vsel %vm412, %v362, 0.0
  %v463 = vadd.f32 %v461, %v462
  %v464 = vsel %vm412, %v367, 0.0
  %v465 = vadd.f32 %v463, %v464
  %v466 = vsel %vm412, %v372, 0.0
  %v467 = vadd.f32 %v465, %v466
  %v468 = vsel %vm412, %v377, 0.0
  %v469 = vadd.f32 %v467, %v468
  %v470 = vsel %vm412, %v382, 0.0
  %v471 = vadd.f32 %v469, %v470
  %v472 = vsel %vm412, %v387, 0.0
  %v473 = vadd.f32 %v471, %v472
  %v474 = vsel %vm412, %v392, 0.0
  %v475 = vadd.f32 %v473, %v474
  %v476 = vsel %vm412, %v397, 0.0
  %v477 = vadd.f32 %v475, %v476
  %v478 = vsel %vm412, %v402, 0.0
  %v479 = vadd.f32 %v477, %v478
  %v480 = vsel %vm412, %v407, 0.0
  %v481 = vadd.f32 %v479, %v480
  %v482 = vrot.slane %v481, 4
  %v483 = vadd.f32 %v481, %v482
  %v484 = vrot.slane %v483, 2
  %v485 = vadd.f32 %v483, %v484
  %v486 = vrot.slane %v485, 1
  %v487 = vadd.f32 %v485, %v486
  %v488 = vrcp.pop 280.0
  %v489 = vmul.f32 %v487, %v488
  %v490 = vsub.f32 %v237, %v489
  %v491 = vsub.f32 %v242, %v489
  %v492 = vsub.f32 %v247, %v489
  %v493 = vsub.f32 %v252, %v489
  %v494 = vsub.f32 %v257, %v489
  %v495 = vsub.f32 %v262, %v489
  %v496 = vsub.f32 %v267, %v489
  %v497 = vsub.f32 %v272, %v489
  %v498 = vsub.f32 %v277, %v489
  %v499 = vsub.f32 %v282, %v489
  %v500 = vsub.f32 %v287, %v489
  %v501 = vsub.f32 %v292, %v489
  %v502 = vsub.f32 %v297, %v489
  %v503 = vsub.f32 %v302, %v489
  %v504 = vsub.f32 %v307, %v489
  %v505 = vsub.f32 %v312, %v489
  %v506 = vsub.f32 %v317, %v489
  %v507 = vsub.f32 %v322, %v489
  %v508 = vsub.f32 %v327, %v489
  %v509 = vsub.f32 %v332, %v489
  %v510 = vsub.f32 %v337, %v489
  %v511 = vsub.f32 %v342, %v489
  %v512 = vsub.f32 %v347, %v489
  %v513 = vsub.f32 %v352, %v489
  %v514 = vsub.f32 %v357, %v489
  %v515 = vsub.f32 %v362, %v489
  %v516 = vsub.f32 %v367, %v489
  %v517 = vsub.f32 %v372, %v489
  %v518 = vsub.f32 %v377, %v489
  %v519 = vsub.f32 %v382, %v489
  %v520 = vsub.f32 %v387, %v489
  %v521 = vsub.f32 %v392, %v489
  %v522 = vsub.f32 %v397, %v489
  %v523 = vsub.f32 %v402, %v489
  %v524 = vsub.f32 %v407, %v489
  %v525 = vmul.f32 %v490, %v490
  %v526 = vmul.f32 %v491, %v491
  %v527 = vmul.f32 %v492, %v492
  %v528 = vmul.f32 %v493, %v493
  %v529 = vmul.f32 %v494, %v494
  %v530 = vmul.f32 %v495, %v495
  %v531 = vmul.f32 %v496, %v496
  %v532 = vmul.f32 %v497, %v497
  %v533 = vmul.f32 %v498, %v498
  %v534 = vmul.f32 %v499, %v499
  %v535 = vmul.f32 %v500, %v500
  %v536 = vmul.f32 %v501, %v501
  %v537 = vmul.f32 %v502, %v502
  %v538 = vmul.f32 %v503, %v503
  %v539 = vmul.f32 %v504, %v504
  %v540 = vmul.f32 %v505, %v505
  %v541 = vmul.f32 %v506, %v506
  %v542 = vmul.f32 %v507, %v507
  %v543 = vmul.f32 %v508, %v508
  %v544 = vmul.f32 %v509, %v509
  %v545 = vmul.f32 %v510, %v510
  %v546 = vmul.f32 %v511, %v511
  %v547 = vmul.f32 %v512, %v512
  %v548 = vmul.f32 %v513, %v513
  %v549 = vmul.f32 %v514, %v514
  %v550 = vmul.f32 %v515, %v515
  %v551 = vmul.f32 %v516, %v516
  %v552 = vmul.f32 %v517, %v517
  %v553 = vmul.f32 %v518, %v518
  %v554 = vmul.f32 %v519, %v519
  %v555 = vmul.f32 %v520, %v520
  %v556 = vmul.f32 %v521, %v521
  %v557 = vmul.f32 %v522, %v522
  %v558 = vmul.f32 %v523, %v523
  %v559 = vmul.f32 %v524, %v524
  %v560 = vsel %vm412, %v525, 0.0
  %v561 = vsel %vm412, %v526, 0.0
  %v562 = vadd.f32 %v560, %v561
  %v563 = vsel %vm412, %v527, 0.0
  %v564 = vadd.f32 %v562, %v563
  %v565 = vsel %vm412, %v528, 0.0
  %v566 = vadd.f32 %v564, %v565
  %v567 = vsel %vm412, %v529, 0.0
  %v568 = vadd.f32 %v566, %v567
  %v569 = vsel %vm412, %v530, 0.0
  %v570 = vadd.f32 %v568, %v569
  %v571 = vsel %vm412, %v531, 0.0
  %v572 = vadd.f32 %v570, %v571
  %v573 = vsel %vm412, %v532, 0.0
  %v574 = vadd.f32 %v572, %v573
  %v575 = vsel %vm412, %v533, 0.0
  %v576 = vadd.f32 %v574, %v575
  %v577 = vsel %vm412, %v534, 0.0
  %v578 = vadd.f32 %v576, %v577
  %v579 = vsel %vm412, %v535, 0.0
  %v580 = vadd.f32 %v578, %v579
  %v581 = vsel %vm412, %v536, 0.0
  %v582 = vadd.f32 %v580, %v581
  %v583 = vsel %vm412, %v537, 0.0
  %v584 = vadd.f32 %v582, %v583
  %v585 = vsel %vm412, %v538, 0.0
  %v586 = vadd.f32 %v584, %v585
  %v587 = vsel %vm412, %v539, 0.0
  %v588 = vadd.f32 %v586, %v587
  %v589 = vsel %vm412, %v540, 0.0
  %v590 = vadd.f32 %v588, %v589
  %v591 = vsel %vm412, %v541, 0.0
  %v592 = vadd.f32 %v590, %v591
  %v593 = vsel %vm412, %v542, 0.0
  %v594 = vadd.f32 %v592, %v593
  %v595 = vsel %vm412, %v543, 0.0
  %v596 = vadd.f32 %v594, %v595
  %v597 = vsel %vm412, %v544, 0.0
  %v598 = vadd.f32 %v596, %v597
  %v599 = vsel %vm412, %v545, 0.0
  %v600 = vadd.f32 %v598, %v599
  %v601 = vsel %vm412, %v546, 0.0
  %v602 = vadd.f32 %v600, %v601
  %v603 = vsel %vm412, %v547, 0.0
  %v604 = vadd.f32 %v602, %v603
  %v605 = vsel %vm412, %v548, 0.0
  %v606 = vadd.f32 %v604, %v605
  %v607 = vsel %vm412, %v549, 0.0
  %v608 = vadd.f32 %v606, %v607
  %v609 = vsel %vm412, %v550, 0.0
  %v610 = vadd.f32 %v608, %v609
  %v611 = vsel %vm412, %v551, 0.0
  %v612 = vadd.f32 %v610, %v611
  %v613 = vsel %vm412, %v552, 0.0
  %v614 = vadd.f32 %v612, %v613
  %v615 = vsel %vm412, %v553, 0.0
  %v616 = vadd.f32 %v614, %v615
  %v617 = vsel %vm412, %v554, 0.0
  %v618 = vadd.f32 %v616, %v617
  %v619 = vsel %vm412, %v555, 0.0
  %v620 = vadd.f32 %v618, %v619
  %v621 = vsel %vm412, %v556, 0.0
  %v622 = vadd.f32 %v620, %v621
  %v623 = vsel %vm412, %v557, 0.0
  %v624 = vadd.f32 %v622, %v623
  %v625 = vsel %vm412, %v558, 0.0
  %v626 = vadd.f32 %v624, %v625
  %v627 = vsel %vm412, %v559, 0.0
  %v628 = vadd.f32 %v626, %v627
  %v629 = vrot.slane %v628, 4
  %v630 = vadd.f32 %v628, %v629
  %v631 = vrot.slane %v630, 2
  %v632 = vadd.f32 %v630, %v631
  %v633 = vrot.slane %v632, 1
  %v634 = vadd.f32 %v632, %v633
  %v635 = vmul.f32 %v634, %v488
  %v636 = vadd.f32 %v635, 1e-05
  %v637 = vrsqrt.pop %v636
  %v638 = vmul.f32 %v490, %v637
  %v639 = vmul.f32 %v491, %v637
  %v640 = vmul.f32 %v492, %v637
  %v641 = vmul.f32 %v493, %v637
  %v642 = vmul.f32 %v494, %v637
  %v643 = vmul.f32 %v495, %v637
  %v644 = vmul.f32 %v496, %v637
  %v645 = vmul.f32 %v497, %v637
  %v646 = vmul.f32 %v498, %v637
  %v647 = vmul.f32 %v499, %v637
  %v648 = vmul.f32 %v500, %v637
  %v649 = vmul.f32 %v501, %v637
  %v650 = vmul.f32 %v502, %v637
  %v651 = vmul.f32 %v503, %v637
  %v652 = vmul.f32 %v504, %v637
  %v653 = vmul.f32 %v505, %v637
  %v654 = vmul.f32 %v506, %v637
  %v655 = vmul.f32 %v507, %v637
  %v656 = vmul.f32 %v508, %v637
  %v657 = vmul.f32 %v509, %v637
  %v658 = vmul.f32 %v510, %v637
  %v659 = vmul.f32 %v511, %v637
  %v660 = vmul.f32 %v512, %v637
  %v661 = vmul.f32 %v513, %v637
  %v662 = vmul.f32 %v514, %v637
  %v663 = vmul.f32 %v515, %v637
  %v664 = vmul.f32 %v516, %v637
  %v665 = vmul.f32 %v517, %v637
  %v666 = vmul.f32 %v518, %v637
  %v667 = vmul.f32 %v519, %v637
  %v668 = vmul.f32 %v520, %v637
  %v669 = vmul.f32 %v521, %v637
  %v670 = vmul.f32 %v522, %v637
  %v671 = vmul.f32 %v523, %v637
  %v672 = vmul.f32 %v524, %v637
  %v674 = vlaneseq
  %v675 = vshrl.u32 %v674, 7
  %v676 = vsub.s32 0, %v675
  %v677 = vrot.slane %v410, %v676
  %v679 = vmul.f32 %v638, %v677
  %v680 = vmul.f32 %v639, %v677
  %v681 = vmul.f32 %v640, %v677
  %v682 = vmul.f32 %v641, %v677
  %v683 = vmul.f32 %v642, %v677
  %v684 = vmul.f32 %v643, %v677
  %v685 = vmul.f32 %v644, %v677
  %v686 = vmul.f32 %v645, %v677
  %v687 = vmul.f32 %v646, %v677
  %v688 = vmul.f32 %v647, %v677
  %v689 = vmul.f32 %v648, %v677
  %v690 = vmul.f32 %v649, %v677
  %v691 = vmul.f32 %v650, %v677
  %v692 = vmul.f32 %v651, %v677
  %v693 = vmul.f32 %v652, %v677
  %v694 = vmul.f32 %v653, %v677
  %v695 = vmul.f32 %v654, %v677
  %v696 = vmul.f32 %v655, %v677
  %v697 = vmul.f32 %v656, %v677
  %v698 = vmul.f32 %v657, %v677
  %v699 = vmul.f32 %v658, %v677
  %v700 = vmul.f32 %v659, %v677
  %v701 = vmul.f32 %v660, %v677
  %v702 = vmul.f32 %v661, %v677
  %v703 = vmul.f32 %v662, %v677
  %v704 = vmul.f32 %v663, %v677
  %v705 = vmul.f32 %v664, %v677
  %v706 = vmul.f32 %v665, %v677
  %v707 = vmul.f32 %v666, %v677
  %v708 = vmul.f32 %v667, %v677
  %v709 = vmul.f32 %v668, %v677
  %v710 = vmul.f32 %v669, %v677
  %v711 = vmul.f32 %v670, %v677
  %v712 = vmul.f32 %v671, %v677
  %v713 = vmul.f32 %v672, %v677
  %v715 = vlaneseq
  %v716 = vshrl.u32 %v715, 7
  %v717 = vsub.s32 0, %v716
  %v718 = vrot.slane %v411, %v717
  %v720 = vadd.f32 %v679, %v718
  %v721 = vadd.f32 %v680, %v718
  %v722 = vadd.f32 %v681, %v718
  %v723 = vadd.f32 %v682, %v718
  %v724 = vadd.f32 %v683, %v718
  %v725 = vadd.f32 %v684, %v718
  %v726 = vadd.f32 %v685, %v718
  %v727 = vadd.f32 %v686, %v718
  %v728 = vadd.f32 %v687, %v718
  %v729 = vadd.f32 %v688, %v718
  %v730 = vadd.f32 %v689, %v718
  %v731 = vadd.f32 %v690, %v718
  %v732 = vadd.f32 %v691, %v718
  %v733 = vadd.f32 %v692, %v718
  %v734 = vadd.f32 %v693, %v718
  %v735 = vadd.f32 %v694, %v718
  %v736 = vadd.f32 %v695, %v718
  %v737 = vadd.f32 %v696, %v718
  %v738 = vadd.f32 %v697, %v718
  %v739 = vadd.f32 %v698, %v718
  %v740 = vadd.f32 %v699, %v718
  %v741 = vadd.f32 %v700, %v718
  %v742 = vadd.f32 %v701, %v718
  %v743 = vadd.f32 %v702, %v718
  %v744 = vadd.f32 %v703, %v718
  %v745 = vadd.f32 %v704, %v718
  %v746 = vadd.f32 %v705, %v718
  %v747 = vadd.f32 %v706, %v718
  %v748 = vadd.f32 %v707, %v718
  %v749 = vadd.f32 %v708, %v718
  %v750 = vadd.f32 %v709, %v718
  %v751 = vadd.f32 %v710, %v718
  %v752 = vadd.f32 %v711, %v718
  %v753 = vadd.f32 %v712, %v718
  %v754 = vadd.f32 %v713, %v718
  %v755 = vmax.f32 %v720, 0.0
  %v756 = vmax.f32 %v721, 0.0
  %v757 = vmax.f32 %v722, 0.0
  %v758 = vmax.f32 %v723, 0.0
  %v759 = vmax.f32 %v724, 0.0
  %v760 = vmax.f32 %v725, 0.0
  %v761 = vmax.f32 %v726, 0.0
  %v762 = vmax.f32 %v727, 0.0
  %v763 = vmax.f32 %v728, 0.0
  %v764 = vmax.f32 %v729, 0.0
  %v765 = vmax.f32 %v730, 0.0
  %v766 = vmax.f32 %v731, 0.0
  %v767 = vmax.f32 %v732, 0.0
  %v768 = vmax.f32 %v733, 0.0
  %v769 = vmax.f32 %v734, 0.0
  %v770 = vmax.f32 %v735, 0.0
  %v771 = vmax.f32 %v736, 0.0
  %v772 = vmax.f32 %v737, 0.0
  %v773 = vmax.f32 %v738, 0.0
  %v774 = vmax.f32 %v739, 0.0
  %v775 = vmax.f32 %v740, 0.0
  %v776 = vmax.f32 %v741, 0.0
  %v777 = vmax.f32 %v742, 0.0
  %v778 = vmax.f32 %v743, 0.0
  %v779 = vmax.f32 %v744, 0.0
  %v780 = vmax.f32 %v745, 0.0
  %v781 = vmax.f32 %v746, 0.0
  %v782 = vmax.f32 %v747, 0.0
  %v783 = vmax.f32 %v748, 0.0
  %v784 = vmax.f32 %v749, 0.0
  %v785 = vmax.f32 %v750, 0.0
  %v786 = vmax.f32 %v751, 0.0
  %v787 = vmax.f32 %v752, 0.0
  %v788 = vmax.f32 %v753, 0.0
  %v789 = vmax.f32 %v754, 0.0
  %790 = vst.msk [vmem:[%s5] sm:$0xff] %vm412, %v755
  %791 = vst.msk [vmem:[%s5 + $0x8] sm:$0xff] %vm412, %v756
  %792 = vst.msk [vmem:[%s5 + $0x10] sm:$0xff] %vm412, %v757
  %793 = vst.msk [vmem:[%s5 + $0x18] sm:$0xff] %vm412, %v758
  %794 = vst.msk [vmem:[%s5 + $0x20] sm:$0xff] %vm412, %v759
  %795 = vst.msk [vmem:[%s5 + $0x28] sm:$0xff] %vm412, %v760
  %796 = vst.msk [vmem:[%s5 + $0x30] sm:$0xff] %vm412, %v761
  %797 = vst.msk [vmem:[%s5 + $0x38] sm:$0xff] %vm412, %v762
  %798 = vst.msk [vmem:[%s5 + $0x40] sm:$0xff] %vm412, %v763
  %799 = vst.msk [vmem:[%s5 + $0x48] sm:$0xff] %vm412, %v764
  %800 = vst.msk [vmem:[%s5 + $0x50] sm:$0xff] %vm412, %v765
  %801 = vst.msk [vmem:[%s5 + $0x58] sm:$0xff] %vm412, %v766
  %802 = vst.msk [vmem:[%s5 + $0x60] sm:$0xff] %vm412, %v767
  %803 = vst.msk [vmem:[%s5 + $0x68] sm:$0xff] %vm412, %v768
  %804 = vst.msk [vmem:[%s5 + $0x70] sm:$0xff] %vm412, %v769
  %805 = vst.msk [vmem:[%s5 + $0x78] sm:$0xff] %vm412, %v770
  %806 = vst.msk [vmem:[%s5 + $0x80] sm:$0xff] %vm412, %v771
  %807 = vst.msk [vmem:[%s5 + $0x88] sm:$0xff] %vm412, %v772
  %808 = vst.msk [vmem:[%s5 + $0x90] sm:$0xff] %vm412, %v773
  %809 = vst.msk [vmem:[%s5 + $0x98] sm:$0xff] %vm412, %v774
  %810 = vst.msk [vmem:[%s5 + $0xa0] sm:$0xff] %vm412, %v775
  %811 = vst.msk [vmem:[%s5 + $0xa8] sm:$0xff] %vm412, %v776
  %812 = vst.msk [vmem:[%s5 + $0xb0] sm:$0xff] %vm412, %v777
  %813 = vst.msk [vmem:[%s5 + $0xb8] sm:$0xff] %vm412, %v778
  %814 = vst.msk [vmem:[%s5 + $0xc0] sm:$0xff] %vm412, %v779
  %815 = vst.msk [vmem:[%s5 + $0xc8] sm:$0xff] %vm412, %v780
  %816 = vst.msk [vmem:[%s5 + $0xd0] sm:$0xff] %vm412, %v781
  %817 = vst.msk [vmem:[%s5 + $0xd8] sm:$0xff] %vm412, %v782
  %818 = vst.msk [vmem:[%s5 + $0xe0] sm:$0xff] %vm412, %v783
  %819 = vst.msk [vmem:[%s5 + $0xe8] sm:$0xff] %vm412, %v784
  %820 = vst.msk [vmem:[%s5 + $0xf0] sm:$0xff] %vm412, %v785
  %821 = vst.msk [vmem:[%s5 + $0xf8] sm:$0xff] %vm412, %v786
  %822 = vst.msk [vmem:[%s5 + $0x100] sm:$0xff] %vm412, %v787
  %823 = vst.msk [vmem:[%s5 + $0x108] sm:$0xff] %vm412, %v788
  %824 = vst.msk [vmem:[%s5 + $0x110] sm:$0xff] %vm412, %v789
  // Predicated region
  $region22: #{encoder_forward.9} parent=0 // pred_check
    _
  $region23: #{encoder_forward.9} parent=0 // pred_check_branch
    %826 = sbr.rel (0) target = $region25
  $region24: #{encoder_forward.9} parent=0 // pred_region
    _
  $region25: #{encoder_forward.9} parent=0 // pred_fallthru
    _
  // Predicated region
  $region26: #{encoder_forward.9} parent=0 // pred_check
    _
  $region27: #{encoder_forward.9} parent=0 // pred_check_branch
    %828 = sbr.rel (0) target = $region29
  $region28: #{encoder_forward.9} parent=0 // pred_region
    _
  $region29: #{encoder_forward.9} parent=0 // pred_fallthru
    _

// kernel: encoder_forward.10
$region0: #{encoder_forward.10}
  #allocation0 [shape = 'u32[]', space=smem, size = 0x4, offset = 0x4, fixed_abs, tag = 'smem constant byte address 0x4 - core index']
  #allocation1 [shape = 'u32[144,128]{1,0:T(1,128)}', space=vmem, size = 0x12000, scoped, tag = 'internal scratch']
  %s0 = inlined_call_operand.vmem [shape: f32[70,128], index: 0, kind: input, shape index: {}]
  %s1 = inlined_call_operand.vmem [shape: f32[128,8], index: 1, kind: input, shape index: {}]
  %s2 = inlined_call_operand.vmem [shape: f32[1,8], index: 2, kind: input, shape index: {}]
  %s3 = inlined_call_operand.vmem [shape: f32[70,8], index: 3, kind: output, shape index: {0}]
  %s4 = inlined_call_operand.vmem [shape: f32[70,8], index: 4, kind: output, shape index: {1}]
  %5 = xla_tuple %s3, %s4
  %s6 = sld [smem:[#allocation0]]
  $region30: #{encoder_forward.10} parent=0
    _
  %s8 = ssub.s32 1, %s6
  %s9 = scalar_select 0, %s8, %s6
  // Predicated region
  $region2: #{encoder_forward.10} parent=0 // pred_check
    _
  $region3: #{encoder_forward.10} parent=0 // pred_check_branch
    %11 = sbr.rel (0) target = $region5
  $region4: #{encoder_forward.10} parent=0 // pred_region
    _
  $region5: #{encoder_forward.10} parent=0 // pred_fallthru
    _
  // Predicated region
  $region6: #{encoder_forward.10} parent=0 // pred_check
    _
  $region7: #{encoder_forward.10} parent=0 // pred_check_branch
    %13 = sbr.rel (0) target = $region9
  $region8: #{encoder_forward.10} parent=0 // pred_region
    _
  $region9: #{encoder_forward.10} parent=0 // pred_fallthru
    _
  // Predicated region
  $region10: #{encoder_forward.10} parent=0 // pred_check
    _
  $region11: #{encoder_forward.10} parent=0 // pred_check_branch
    %15 = sbr.rel (0) target = $region13
  $region12: #{encoder_forward.10} parent=0 // pred_region
    _
  $region13: #{encoder_forward.10} parent=0 // pred_fallthru
    _
  %v16 = vld [vmem:[%s0] sm:$0xff]
  %v17 = vld [vmem:[%s0 + $0x8] sm:$0xff]
  %v18 = vld [vmem:[%s0 + $0x10] sm:$0xff]
  %v19 = vld [vmem:[%s0 + $0x18] sm:$0xff]
  %v20 = vld [vmem:[%s0 + $0x20] sm:$0xff]
  %v21 = vld [vmem:[%s0 + $0x28] sm:$0xff]
  %v22 = vld [vmem:[%s0 + $0x30] sm:$0xff]
  %v23 = vld [vmem:[%s0 + $0x38] sm:$0xff]
  %v24 = vld [vmem:[%s0 + $0x40] sm:$0x3f]
  %v25 = vld [vmem:[%s1] sm:$0xff]
  %v26 = vld [vmem:[%s1 + $0x8] sm:$0xff]
  %v27 = vld [vmem:[%s1 + $0x10] sm:$0xff]
  %v28 = vld [vmem:[%s1 + $0x18] sm:$0xff]
  %v29 = vld [vmem:[%s1 + $0x20] sm:$0xff]
  %v30 = vld [vmem:[%s1 + $0x28] sm:$0xff]
  %v31 = vld [vmem:[%s1 + $0x30] sm:$0xff]
  %v32 = vld [vmem:[%s1 + $0x38] sm:$0xff]
  %v33 = vld [vmem:[%s1 + $0x40] sm:$0xff]
  %v34 = vld [vmem:[%s1 + $0x48] sm:$0xff]
  %v35 = vld [vmem:[%s1 + $0x50] sm:$0xff]
  %v36 = vld [vmem:[%s1 + $0x58] sm:$0xff]
  %v37 = vld [vmem:[%s1 + $0x60] sm:$0xff]
  %v38 = vld [vmem:[%s1 + $0x68] sm:$0xff]
  %v39 = vld [vmem:[%s1 + $0x70] sm:$0xff]
  %v40 = vld [vmem:[%s1 + $0x78] sm:$0xff]
  %v41 = vld [vmem:[%s2] sm:$0x1]
  %v43 = vlaneseq
  %v44 = vshrl.u32 %v43, 7
  %v45 = vsub.s32 0, %v44
  %v46 = vrot.slane %v41, %v45
  %48 = vmatprep.subr.mxu0 0.0
  %49 = vmatpush1.msra.mxu0 %v25
  %50 = vmatprep.subr.mxu0 0.0
  %51 = vmatpush1.msra.mxu0 %v26
  %52 = vmatprep.subr.mxu0 0.0
  %53 = vmatpush1.msra.mxu0 %v27
  %54 = vmatprep.subr.mxu0 0.0
  %55 = vmatpush1.msra.mxu0 %v28
  %56 = vmatprep.subr.mxu0 0.0
  %57 = vmatpush1.msra.mxu0 %v29
  %58 = vmatprep.subr.mxu0 0.0
  %59 = vmatpush1.msra.mxu0 %v30
  %60 = vmatprep.subr.mxu0 0.0
  %61 = vmatpush1.msra.mxu0 %v31
  %62 = vmatprep.subr.mxu0 0.0
  %63 = vmatpush1.msra.mxu0 %v32
  %64 = vmatprep.subr.mxu0 0.0
  %65 = vmatpush1.msra.mxu0 %v33
  %66 = vmatprep.subr.mxu0 0.0
  %67 = vmatpush1.msra.mxu0 %v34
  %68 = vmatprep.subr.mxu0 0.0
  %69 = vmatpush1.msra.mxu0 %v35
  %70 = vmatprep.subr.mxu0 0.0
  %71 = vmatpush1.msra.mxu0 %v36
  %72 = vmatprep.subr.mxu0 0.0
  %73 = vmatpush1.msra.mxu0 %v37
  %74 = vmatprep.subr.mxu0 0.0
  %75 = vmatpush1.msra.mxu0 %v38
  %76 = vmatprep.subr.mxu0 0.0
  %77 = vmatpush1.msra.mxu0 %v39
  %78 = vmatprep.subr.mxu0 0.0
  %79 = vmatpush1.msra.mxu0 %v40
  %80 = vmatprep.subr.mxu0 0.0
  %81 = vmatpush1.msra.mxu0 0.0
  %82 = vmatprep.subr.mxu0 0.0
  %83 = vmatpush1.msra.mxu0 0.0
  %84 = vmatprep.subr.mxu0 0.0
  %85 = vmatpush1.msra.mxu0 0.0
  %86 = vmatprep.subr.mxu0 0.0
  %87 = vmatpush1.msra.mxu0 0.0
  %88 = vmatprep.subr.mxu0 0.0
  %89 = vmatpush1.msra.mxu0 0.0
  %90 = vmatprep.subr.mxu0 0.0
  %91 = vmatpush1.msra.mxu0 0.0
  %92 = vmatprep.subr.mxu0 0.0
  %93 = vmatpush1.msra.mxu0 0.0
  %94 = vmatprep.subr.mxu0 0.0
  %95 = vmatpush1.msra.mxu0 0.0
  %96 = vmatprep.subr.mxu0 0.0
  %97 = vmatpush1.msra.mxu0 0.0
  %98 = vmatprep.subr.mxu0 0.0
  %99 = vmatpush1.msra.mxu0 0.0
  %100 = vmatprep.subr.mxu0 0.0
  %101 = vmatpush1.msra.mxu0 0.0
  %102 = vmatprep.subr.mxu0 0.0
  %103 = vmatpush1.msra.mxu0 0.0
  %104 = vmatprep.subr.mxu0 0.0
  %105 = vmatpush1.msra.mxu0 0.0
  %106 = vmatprep.subr.mxu0 0.0
  %107 = vmatpush1.msra.mxu0 0.0
  %108 = vmatprep.subr.mxu0 0.0
  %109 = vmatpush1.msra.mxu0 0.0
  %110 = vmatprep.subr.mxu0 0.0
  %111 = vmatpush1.msra.mxu0 0.0
  %112 = vmatprep.mubr.f32.mxu0 0.0
  %113 = vmatmul.mubr.f32.gmra.mrb[0].mxu0 %v16
  %v114 = vpop.f32.mrb[0].mxu0
  %v115 = vadd.f32 %v46, %v114
  %v116 = vpop.f32.mrb[0].mxu0
  %117 = vmatprep.mubr.f32.mxu0 0.0
  %118 = vmatmul.mubr.f32.gmra.mrb[0].mxu0 %v17
  %v119 = vpop.f32.mrb[0].mxu0
  %v120 = vadd.f32 %v46, %v119
  %v121 = vpop.f32.mrb[0].mxu0
  %122 = vmatprep.mubr.f32.mxu0 0.0
  %123 = vmatmul.mubr.f32.gmra.mrb[0].mxu0 %v18
  %v124 = vpop.f32.mrb[0].mxu0
  %v125 = vadd.f32 %v46, %v124
  %v126 = vpop.f32.mrb[0].mxu0
  %127 = vmatprep.mubr.f32.mxu0 0.0
  %128 = vmatmul.mubr.f32.gmra.mrb[0].mxu0 %v19
  %v129 = vpop.f32.mrb[0].mxu0
  %v130 = vadd.f32 %v46, %v129
  %v131 = vpop.f32.mrb[0].mxu0
  %132 = vmatprep.mubr.f32.mxu0 0.0
  %133 = vmatmul.mubr.f32.gmra.mrb[0].mxu0 %v20
  %v134 = vpop.f32.mrb[0].mxu0
  %v135 = vadd.f32 %v46, %v134
  %v136 = vpop.f32.mrb[0].mxu0
  %137 = vmatprep.mubr.f32.mxu0 0.0
  %138 = vmatmul.mubr.f32.gmra.mrb[0].mxu0 %v21
  %v139 = vpop.f32.mrb[0].mxu0
  %v140 = vadd.f32 %v46, %v139
  %v141 = vpop.f32.mrb[0].mxu0
  %142 = vmatprep.mubr.f32.mxu0 0.0
  %143 = vmatmul.mubr.f32.gmra.mrb[0].mxu0 %v22
  %v144 = vpop.f32.mrb[0].mxu0
  %v145 = vadd.f32 %v46, %v144
  %v146 = vpop.f32.mrb[0].mxu0
  %147 = vmatprep.mubr.f32.mxu0 0.0
  %148 = vmatmul.mubr.f32.gmra.mrb[0].mxu0 %v23
  %v149 = vpop.f32.mrb[0].mxu0
  %v150 = vadd.f32 %v46, %v149
  %v151 = vpop.f32.mrb[0].mxu0
  %152 = vmatprep.mubr.f32.mxu0 0.0
  %153 = vmatmul.mubr.f32.gmra.mrb[0].mxu0 %v24
  %v154 = vpop.f32.mrb[0].mxu0
  %v155 = vadd.f32 %v46, %v154
  %v156 = vpop.f32.mrb[0].mxu0
  %157 = vdwg.mxu0
  %vm158 = vcmask 64512
  %159 = vst.msk [vmem:[%s3] sm:$0xff] %vm158, %v115
  %160 = vst.msk [vmem:[%s3 + $0x8] sm:$0xff] %vm158, %v120
  %161 = vst.msk [vmem:[%s3 + $0x10] sm:$0xff] %vm158, %v125
  %162 = vst.msk [vmem:[%s3 + $0x18] sm:$0xff] %vm158, %v130
  %163 = vst.msk [vmem:[%s3 + $0x20] sm:$0xff] %vm158, %v135
  %164 = vst.msk [vmem:[%s3 + $0x28] sm:$0xff] %vm158, %v140
  %165 = vst.msk [vmem:[%s3 + $0x30] sm:$0xff] %vm158, %v145
  %166 = vst.msk [vmem:[%s3 + $0x38] sm:$0xff] %vm158, %v150
  %vm167 = vcmask 62464
  %168 = vst.msk [vmem:[%s3 + $0x40] sm:$0x3f] %vm167, %v155
  %v169 = vmax.f32 %v115, 0.0
  %v170 = vmax.f32 %v120, 0.0
  %v171 = vmax.f32 %v125, 0.0
  %v172 = vmax.f32 %v130, 0.0
  %v173 = vmax.f32 %v135, 0.0
  %v174 = vmax.f32 %v140, 0.0
  %v175 = vmax.f32 %v145, 0.0
  %v176 = vmax.f32 %v150, 0.0
  %v177 = vmax.f32 %v155, 0.0
  %178 = vst.msk [vmem:[%s4] sm:$0xff] %vm158, %v169
  %179 = vst.msk [vmem:[%s4 + $0x8] sm:$0xff] %vm158, %v170
  %180 = vst.msk [vmem:[%s4 + $0x10] sm:$0xff] %vm158, %v171
  %181 = vst.msk [vmem:[%s4 + $0x18] sm:$0xff] %vm158, %v172
  %182 = vst.msk [vmem:[%s4 + $0x20] sm:$0xff] %vm158, %v173
  %183 = vst.msk [vmem:[%s4 + $0x28] sm:$0xff] %vm158, %v174
  %184 = vst.msk [vmem:[%s4 + $0x30] sm:$0xff] %vm158, %v175
  %185 = vst.msk [vmem:[%s4 + $0x38] sm:$0xff] %vm158, %v176
  %186 = vst.msk [vmem:[%s4 + $0x40] sm:$0x3f] %vm167, %v177
  // Predicated region
  $region14: #{encoder_forward.10} parent=0 // pred_check
    _
  $region15: #{encoder_forward.10} parent=0 // pred_check_branch
    %188 = sbr.rel (0) target = $region17
  $region16: #{encoder_forward.10} parent=0 // pred_region
    _
  $region17: #{encoder_forward.10} parent=0 // pred_fallthru
    _
  // Predicated region
  $region18: #{encoder_forward.10} parent=0 // pred_check
    _
  $region19: #{encoder_forward.10} parent=0 // pred_check_branch
    %190 = sbr.rel (0) target = $region21
  $region20: #{encoder_forward.10} parent=0 // pred_region
    _
  $region21: #{encoder_forward.10} parent=0 // pred_fallthru
    _
  // Predicated region
  $region22: #{encoder_forward.10} parent=0 // pred_check
    _
  $region23: #{encoder_forward.10} parent=0 // pred_check_branch
    %192 = sbr.rel (0) target = $region25
  $region24: #{encoder_forward.10} parent=0 // pred_region
    _
  $region25: #{encoder_forward.10} parent=0 // pred_fallthru
    _
  // Predicated region
  $region26: #{encoder_forward.10} parent=0 // pred_check
    _
  $region27: #{encoder_forward.10} parent=0 // pred_check_branch
    %194 = sbr.rel (0) target = $region29
  $region28: #{encoder_forward.10} parent=0 // pred_region
    _
  $region29: #{encoder_forward.10} parent=0 // pred_fallthru
    _

// kernel: encoder_forward.11
$region0: #{encoder_forward.11}
  #allocation0 [shape = 'u32[]', space=smem, size = 0x4, offset = 0x4, fixed_abs, tag = 'smem constant byte address 0x4 - core index']
  #allocation1 [shape = 'u32[144,128]{1,0:T(1,128)}', space=vmem, size = 0x12000, scoped, tag = 'internal scratch']
  %s0 = inlined_call_operand.vmem [shape: f32[70,8], index: 0, kind: input, shape index: {}]
  %s1 = inlined_call_operand.vmem [shape: f32[70,72], index: 1, kind: input, shape index: {}]
  %s2 = inlined_call_operand.vmem [shape: f32[72,8], index: 2, kind: input, shape index: {}]
  %s3 = inlined_call_operand.vmem [shape: f32[1,8], index: 3, kind: input, shape index: {}]
  %s4 = inlined_call_operand.vmem [shape: f32[1,8], index: 4, kind: input, shape index: {}]
  %s5 = inlined_call_operand.vmem [shape: f32[1,8], index: 5, kind: input, shape index: {}]
  %s6 = inlined_call_operand.vmem [shape: f32[8,8], index: 6, kind: input, shape index: {}]
  %s7 = inlined_call_operand.vmem [shape: f32[1,8], index: 7, kind: input, shape index: {}]
  %s8 = inlined_call_operand.vmem [shape: f32[1,8], index: 8, kind: input, shape index: {}]
  %s9 = inlined_call_operand.vmem [shape: f32[1,8], index: 9, kind: input, shape index: {}]
  %s10 = inlined_call_operand.vmem [shape: f32[70,8], index: 10, kind: output, shape index: {0}]
  %s11 = inlined_call_operand.vmem [shape: f32[70,8], index: 11, kind: output, shape index: {1}]
  %12 = xla_tuple %s10, %s11
  %s13 = sld [smem:[#allocation0]]
  $region58: #{encoder_forward.11} parent=0
    _
  %s15 = ssub.s32 1, %s13
  %s16 = scalar_select 0, %s15, %s13
  // Predicated region
  $region2: #{encoder_forward.11} parent=0 // pred_check
    _
  $region3: #{encoder_forward.11} parent=0 // pred_check_branch
    %18 = sbr.rel (0) target = $region5
  $region4: #{encoder_forward.11} parent=0 // pred_region
    _
  $region5: #{encoder_forward.11} parent=0 // pred_fallthru
    _
  // Predicated region
  $region6: #{encoder_forward.11} parent=0 // pred_check
    _
  $region7: #{encoder_forward.11} parent=0 // pred_check_branch
    %20 = sbr.rel (0) target = $region9
  $region8: #{encoder_forward.11} parent=0 // pred_region
    _
  $region9: #{encoder_forward.11} parent=0 // pred_fallthru
    _
  // Predicated region
  $region10: #{encoder_forward.11} parent=0 // pred_check
    _
  $region11: #{encoder_forward.11} parent=0 // pred_check_branch
    %22 = sbr.rel (0) target = $region13
  $region12: #{encoder_forward.11} parent=0 // pred_region
    _
  $region13: #{encoder_forward.11} parent=0 // pred_fallthru
    _
  // Predicated region
  $region14: #{encoder_forward.11} parent=0 // pred_check
    _
  $region15: #{encoder_forward.11} parent=0 // pred_check_branch
    %24 = sbr.rel (0) target = $region17
  $region16: #{encoder_forward.11} parent=0 // pred_region
    _
  $region17: #{encoder_forward.11} parent=0 // pred_fallthru
    _
  // Predicated region
  $region18: #{encoder_forward.11} parent=0 // pred_check
    _
  $region19: #{encoder_forward.11} parent=0 // pred_check_branch
    %26 = sbr.rel (0) target = $region21
  $region20: #{encoder_forward.11} parent=0 // pred_region
    _
  $region21: #{encoder_forward.11} parent=0 // pred_fallthru
    _
  // Predicated region
  $region22: #{encoder_forward.11} parent=0 // pred_check
    _
  $region23: #{encoder_forward.11} parent=0 // pred_check_branch
    %28 = sbr.rel (0) target = $region25
  $region24: #{encoder_forward.11} parent=0 // pred_region
    _
  $region25: #{encoder_forward.11} parent=0 // pred_fallthru
    _
  // Predicated region
  $region26: #{encoder_forward.11} parent=0 // pred_check
    _
  $region27: #{encoder_forward.11} parent=0 // pred_check_branch
    %30 = sbr.rel (0) target = $region29
  $region28: #{encoder_forward.11} parent=0 // pred_region
    _
  $region29: #{encoder_forward.11} parent=0 // pred_fallthru
    _
  // Predicated region
  $region30: #{encoder_forward.11} parent=0 // pred_check
    _
  $region31: #{encoder_forward.11} parent=0 // pred_check_branch
    %32 = sbr.rel (0) target = $region33
  $region32: #{encoder_forward.11} parent=0 // pred_region
    _
  $region33: #{encoder_forward.11} parent=0 // pred_fallthru
    _
  // Predicated region
  $region34: #{encoder_forward.11} parent=0 // pred_check
    _
  $region35: #{encoder_forward.11} parent=0 // pred_check_branch
    %34 = sbr.rel (0) target = $region37
  $region36: #{encoder_forward.11} parent=0 // pred_region
    _
  $region37: #{encoder_forward.11} parent=0 // pred_fallthru
    _
  // Predicated region
  $region38: #{encoder_forward.11} parent=0 // pred_check
    _
  $region39: #{encoder_forward.11} parent=0 // pred_check_branch
    %36 = sbr.rel (0) target = $region41
  $region40: #{encoder_forward.11} parent=0 // pred_region
    _
  $region41: #{encoder_forward.11} parent=0 // pred_fallthru
    _
  %v37 = vld [vmem:[%s1] sm:$0xff]
  %v38 = vld [vmem:[%s1 + $0x8] sm:$0xff]
  %v39 = vld [vmem:[%s1 + $0x10] sm:$0xff]
  %v40 = vld [vmem:[%s1 + $0x18] sm:$0xff]
  %v41 = vld [vmem:[%s1 + $0x20] sm:$0xff]
  %v42 = vld [vmem:[%s1 + $0x28] sm:$0xff]
  %v43 = vld [vmem:[%s1 + $0x30] sm:$0xff]
  %v44 = vld [vmem:[%s1 + $0x38] sm:$0xff]
  %v45 = vld [vmem:[%s1 + $0x40] sm:$0x3f]
  %v46 = vld [vmem:[%s2] sm:$0xff]
  %v47 = vld [vmem:[%s2 + $0x8] sm:$0xff]
  %v48 = vld [vmem:[%s2 + $0x10] sm:$0xff]
  %v49 = vld [vmem:[%s2 + $0x18] sm:$0xff]
  %v50 = vld [vmem:[%s2 + $0x20] sm:$0xff]
  %v51 = vld [vmem:[%s2 + $0x28] sm:$0xff]
  %v52 = vld [vmem:[%s2 + $0x30] sm:$0xff]
  %v53 = vld [vmem:[%s2 + $0x38] sm:$0xff]
  %v54 = vld [vmem:[%s2 + $0x40] sm:$0xff]
  %v55 = vld [vmem:[%s3] sm:$0x1]
  %v57 = vlaneseq
  %v58 = vshrl.u32 %v57, 7
  %v59 = vsub.s32 0, %v58
  %v60 = vrot.slane %v55, %v59
  %vm62 = vcmask 588800
  %v64 = vsel %vm62, %v37, 0
  %v67 = vsel %vm62, %v38, 0
  %v70 = vsel %vm62, %v39, 0
  %v73 = vsel %vm62, %v40, 0
  %v76 = vsel %vm62, %v41, 0
  %v79 = vsel %vm62, %v42, 0
  %v82 = vsel %vm62, %v43, 0
  %v85 = vsel %vm62, %v44, 0
  %v88 = vsel %vm62, %v45, 0
  %90 = vmatprep.subr.mxu0 0.0
  %91 = vmatpush1.msra.mxu0 %v46
  %92 = vmatprep.subr.mxu0 0.0
  %93 = vmatpush1.msra.mxu0 %v47
  %94 = vmatprep.subr.mxu0 0.0
  %95 = vmatpush1.msra.mxu0 %v48
  %96 = vmatprep.subr.mxu0 0.0
  %97 = vmatpush1.msra.mxu0 %v49
  %98 = vmatprep.subr.mxu0 0.0
  %99 = vmatpush1.msra.mxu0 %v50
  %100 = vmatprep.subr.mxu0 0.0
  %101 = vmatpush1.msra.mxu0 %v51
  %102 = vmatprep.subr.mxu0 0.0
  %103 = vmatpush1.msra.mxu0 %v52
  %104 = vmatprep.subr.mxu0 0.0
  %105 = vmatpush1.msra.mxu0 %v53
  %106 = vmatprep.subr.mxu0 0.0
  %107 = vmatpush1.msra.mxu0 %v54
  %108 = vmatprep.subr.mxu0 0.0
  %109 = vmatpush1.msra.mxu0 0.0
  %110 = vmatprep.subr.mxu0 0.0
  %111 = vmatpush1.msra.mxu0 0.0
  %112 = vmatprep.subr.mxu0 0.0
  %113 = vmatpush1.msra.mxu0 0.0
  %114 = vmatprep.subr.mxu0 0.0
  %115 = vmatpush1.msra.mxu0 0.0
  %116 = vmatprep.subr.mxu0 0.0
  %117 = vmatpush1.msra.mxu0 0.0
  %118 = vmatprep.subr.mxu0 0.0
  %119 = vmatpush1.msra.mxu0 0.0
  %120 = vmatprep.subr.mxu0 0.0
  %121 = vmatpush1.msra.mxu0 0.0
  %122 = vmatprep.subr.mxu0 0.0
  %123 = vmatpush1.msra.mxu0 0.0
  %124 = vmatprep.subr.mxu0 0.0
  %125 = vmatpush1.msra.mxu0 0.0
  %126 = vmatprep.subr.mxu0 0.0
  %127 = vmatpush1.msra.mxu0 0.0
  %128 = vmatprep.subr.mxu0 0.0
  %129 = vmatpush1.msra.mxu0 0.0
  %130 = vmatprep.subr.mxu0 0.0
  %131 = vmatpush1.msra.mxu0 0.0
  %132 = vmatprep.subr.mxu0 0.0
  %133 = vmatpush1.msra.mxu0 0.0
  %134 = vmatprep.subr.mxu0 0.0
  %135 = vmatpush1.msra.mxu0 0.0
  %136 = vmatprep.subr.mxu0 0.0
  %137 = vmatpush1.msra.mxu0 0.0
  %138 = vmatprep.subr.mxu0 0.0
  %139 = vmatpush1.msra.mxu0 0.0
  %140 = vmatprep.subr.mxu0 0.0
  %141 = vmatpush1.msra.mxu0 0.0
  %142 = vmatprep.subr.mxu0 0.0
  %143 = vmatpush1.msra.mxu0 0.0
  %144 = vmatprep.subr.mxu0 0.0
  %145 = vmatpush1.msra.mxu0 0.0
  %146 = vmatprep.subr.mxu0 0.0
  %147 = vmatpush1.msra.mxu0 0.0
  %148 = vmatprep.subr.mxu0 0.0
  %149 = vmatpush1.msra.mxu0 0.0
  %150 = vmatprep.subr.mxu0 0.0
  %151 = vmatpush1.msra.mxu0 0.0
  %152 = vmatprep.subr.mxu0 0.0
  %153 = vmatpush1.msra.mxu0 0.0
  %154 = vmatprep.mubr.f32.mxu0 0.0
  %155 = vmatmul.mubr.f32.gmra.mrb[0].mxu0 %v64
  %v156 = vpop.f32.mrb[0].mxu0
  %v157 = vadd.f32 %v60, %v156
  %v158 = vpop.f32.mrb[0].mxu0
  %159 = vmatprep.mubr.f32.mxu0 0.0
  %160 = vmatmul.mubr.f32.gmra.mrb[0].mxu0 %v67
  %v161 = vpop.f32.mrb[0].mxu0
  %v162 = vadd.f32 %v60, %v161
  %v163 = vpop.f32.mrb[0].mxu0
  %164 = vmatprep.mubr.f32.mxu0 0.0
  %165 = vmatmul.mubr.f32.gmra.mrb[0].mxu0 %v70
  %v166 = vpop.f32.mrb[0].mxu0
  %v167 = vadd.f32 %v60, %v166
  %v168 = vpop.f32.mrb[0].mxu0
  %169 = vmatprep.mubr.f32.mxu0 0.0
  %170 = vmatmul.mubr.f32.gmra.mrb[0].mxu0 %v73
  %v171 = vpop.f32.mrb[0].mxu0
  %v172 = vadd.f32 %v60, %v171
  %v173 = vpop.f32.mrb[0].mxu0
  %174 = vmatprep.mubr.f32.mxu0 0.0
  %175 = vmatmul.mubr.f32.gmra.mrb[0].mxu0 %v76
  %v176 = vpop.f32.mrb[0].mxu0
  %v177 = vadd.f32 %v60, %v176
  %v178 = vpop.f32.mrb[0].mxu0
  %179 = vmatprep.mubr.f32.mxu0 0.0
  %180 = vmatmul.mubr.f32.gmra.mrb[0].mxu0 %v79
  %v181 = vpop.f32.mrb[0].mxu0
  %v182 = vadd.f32 %v60, %v181
  %v183 = vpop.f32.mrb[0].mxu0
  %184 = vmatprep.mubr.f32.mxu0 0.0
  %185 = vmatmul.mubr.f32.gmra.mrb[0].mxu0 %v82
  %v186 = vpop.f32.mrb[0].mxu0
  %v187 = vadd.f32 %v60, %v186
  %v188 = vpop.f32.mrb[0].mxu0
  %189 = vmatprep.mubr.f32.mxu0 0.0
  %190 = vmatmul.mubr.f32.gmra.mrb[0].mxu0 %v85
  %v191 = vpop.f32.mrb[0].mxu0
  %v192 = vadd.f32 %v60, %v191
  %v193 = vpop.f32.mrb[0].mxu0
  %194 = vmatprep.mubr.f32.mxu0 0.0
  %195 = vmatmul.mubr.f32.gmra.mrb[0].mxu0 %v88
  %v196 = vpop.f32.mrb[0].mxu0
  %v197 = vadd.f32 %v60, %v196
  %v198 = vpop.f32.mrb[0].mxu0
  %199 = vdwg.mxu0
  %v200 = vld [vmem:[%s4] sm:$0x1]
  %v201 = vld [vmem:[%s5] sm:$0x1]
  %vm202 = vcmask 64512
  %v203 = vsel %vm202, %v157, 0.0
  %v204 = vsel %vm202, %v162, 0.0
  %v205 = vadd.f32 %v203, %v204
  %v206 = vsel %vm202, %v167, 0.0
  %v207 = vadd.f32 %v205, %v206
  %v208 = vsel %vm202, %v172, 0.0
  %v209 = vadd.f32 %v207, %v208
  %v210 = vsel %vm202, %v177, 0.0
  %v211 = vadd.f32 %v209, %v210
  %v212 = vsel %vm202, %v182, 0.0
  %v213 = vadd.f32 %v211, %v212
  %v214 = vsel %vm202, %v187, 0.0
  %v215 = vadd.f32 %v213, %v214
  %v216 = vsel %vm202, %v192, 0.0
  %v217 = vadd.f32 %v215, %v216
  %vm218 = vcmask 62464
  %v219 = vsel %vm218, %v197, 0.0
  %v220 = vadd.f32 %v217, %v219
  %v221 = vrot.slane %v220, 4
  %v222 = vadd.f32 %v220, %v221
  %v223 = vrot.slane %v222, 2
  %v224 = vadd.f32 %v222, %v223
  %v225 = vrot.slane %v224, 1
  %v226 = vadd.f32 %v224, %v225
  %v227 = vrcp.pop 70.0
  %v228 = vmul.f32 %v226, %v227
  %v229 = vsub.f32 %v157, %v228
  %v230 = vsub.f32 %v162, %v228
  %v231 = vsub.f32 %v167, %v228
  %v232 = vsub.f32 %v172, %v228
  %v233 = vsub.f32 %v177, %v228
  %v234 = vsub.f32 %v182, %v228
  %v235 = vsub.f32 %v187, %v228
  %v236 = vsub.f32 %v192, %v228
  %v237 = vsub.f32 %v197, %v228
  %v238 = vmul.f32 %v229, %v229
  %v239 = vmul.f32 %v230, %v230
  %v240 = vmul.f32 %v231, %v231
  %v241 = vmul.f32 %v232, %v232
  %v242 = vmul.f32 %v233, %v233
  %v243 = vmul.f32 %v234, %v234
  %v244 = vmul.f32 %v235, %v235
  %v245 = vmul.f32 %v236, %v236
  %v246 = vmul.f32 %v237, %v237
  %v247 = vsel %vm202, %v238, 0.0
  %v248 = vsel %vm202, %v239, 0.0
  %v249 = vadd.f32 %v247, %v248
  %v250 = vsel %vm202, %v240, 0.0
  %v251 = vadd.f32 %v249, %v250
  %v252 = vsel %vm202, %v241, 0.0
  %v253 = vadd.f32 %v251, %v252
  %v254 = vsel %vm202, %v242, 0.0
  %v255 = vadd.f32 %v253, %v254
  %v256 = vsel %vm202, %v243, 0.0
  %v257 = vadd.f32 %v255, %v256
  %v258 = vsel %vm202, %v244, 0.0
  %v259 = vadd.f32 %v257, %v258
  %v260 = vsel %vm202, %v245, 0.0
  %v261 = vadd.f32 %v259, %v260
  %v262 = vsel %vm218, %v246, 0.0
  %v263 = vadd.f32 %v261, %v262
  %v264 = vrot.slane %v263, 4
  %v265 = vadd.f32 %v263, %v264
  %v266 = vrot.slane %v265, 2
  %v267 = vadd.f32 %v265, %v266
  %v268 = vrot.slane %v267, 1
  %v269 = vadd.f32 %v267, %v268
  %v270 = vmul.f32 %v269, %v227
  %v271 = vadd.f32 %v270, 1e-05
  %v272 = vrsqrt.pop %v271
  %v273 = vmul.f32 %v229, %v272
  %v274 = vmul.f32 %v230, %v272
  %v275 = vmul.f32 %v231, %v272
  %v276 = vmul.f32 %v232, %v272
  %v277 = vmul.f32 %v233, %v272
  %v278 = vmul.f32 %v234, %v272
  %v279 = vmul.f32 %v235, %v272
  %v280 = vmul.f32 %v236, %v272
  %v281 = vmul.f32 %v237, %v272
  %v283 = vlaneseq
  %v284 = vshrl.u32 %v283, 7
  %v285 = vsub.s32 0, %v284
  %v286 = vrot.slane %v200, %v285
  %v288 = vmul.f32 %v273, %v286
  %v289 = vmul.f32 %v274, %v286
  %v290 = vmul.f32 %v275, %v286
  %v291 = vmul.f32 %v276, %v286
  %v292 = vmul.f32 %v277, %v286
  %v293 = vmul.f32 %v278, %v286
  %v294 = vmul.f32 %v279, %v286
  %v295 = vmul.f32 %v280, %v286
  %v296 = vmul.f32 %v281, %v286
  %v298 = vlaneseq
  %v299 = vshrl.u32 %v298, 7
  %v300 = vsub.s32 0, %v299
  %v301 = vrot.slane %v201, %v300
  %v303 = vadd.f32 %v288, %v301
  %v304 = vadd.f32 %v289, %v301
  %v305 = vadd.f32 %v290, %v301
  %v306 = vadd.f32 %v291, %v301
  %v307 = vadd.f32 %v292, %v301
  %v308 = vadd.f32 %v293, %v301
  %v309 = vadd.f32 %v294, %v301
  %v310 = vadd.f32 %v295, %v301
  %v311 = vadd.f32 %v296, %v301
  %v312 = vmax.f32 %v303, 0.0
  %v313 = vmax.f32 %v304, 0.0
  %v314 = vmax.f32 %v305, 0.0
  %v315 = vmax.f32 %v306, 0.0
  %v316 = vmax.f32 %v307, 0.0
  %v317 = vmax.f32 %v308, 0.0
  %v318 = vmax.f32 %v309, 0.0
  %v319 = vmax.f32 %v310, 0.0
  %v320 = vmax.f32 %v311, 0.0
  %v321 = vld [vmem:[%s6] sm:$0xff]
  %v322 = vld [vmem:[%s7] sm:$0x1]
  %v324 = vlaneseq
  %v325 = vshrl.u32 %v324, 7
  %v326 = vsub.s32 0, %v325
  %v327 = vrot.slane %v322, %v326
  %v330 = vsel %vm202, %v312, 0
  %v333 = vsel %vm202, %v313, 0
  %v336 = vsel %vm202, %v314, 0
  %v339 = vsel %vm202, %v315, 0
  %v342 = vsel %vm202, %v316, 0
  %v345 = vsel %vm202, %v317, 0
  %v348 = vsel %vm202, %v318, 0
  %v351 = vsel %vm202, %v319, 0
  %v354 = vsel %vm202, %v320, 0
  %356 = vmatprep.subr.mxu0 0.0
  %357 = vmatpush1.msra.mxu0 %v321
  %358 = vmatprep.subr.mxu0 0.0
  %359 = vmatpush1.msra.mxu0 0.0
  %360 = vmatprep.subr.mxu0 0.0
  %361 = vmatpush1.msra.mxu0 0.0
  %362 = vmatprep.subr.mxu0 0.0
  %363 = vmatpush1.msra.mxu0 0.0
  %364 = vmatprep.subr.mxu0 0.0
  %365 = vmatpush1.msra.mxu0 0.0
  %366 = vmatprep.subr.mxu0 0.0
  %367 = vmatpush1.msra.mxu0 0.0
  %368 = vmatprep.subr.mxu0 0.0
  %369 = vmatpush1.msra.mxu0 0.0
  %370 = vmatprep.subr.mxu0 0.0
  %371 = vmatpush1.msra.mxu0 0.0
  %372 = vmatprep.subr.mxu0 0.0
  %373 = vmatpush1.msra.mxu0 0.0
  %374 = vmatprep.subr.mxu0 0.0
  %375 = vmatpush1.msra.mxu0 0.0
  %376 = vmatprep.subr.mxu0 0.0
  %377 = vmatpush1.msra.mxu0 0.0
  %378 = vmatprep.subr.mxu0 0.0
  %379 = vmatpush1.msra.mxu0 0.0
  %380 = vmatprep.subr.mxu0 0.0
  %381 = vmatpush1.msra.mxu0 0.0
  %382 = vmatprep.subr.mxu0 0.0
  %383 = vmatpush1.msra.mxu0 0.0
  %384 = vmatprep.subr.mxu0 0.0
  %385 = vmatpush1.msra.mxu0 0.0
  %386 = vmatprep.subr.mxu0 0.0
  %387 = vmatpush1.msra.mxu0 0.0
  %388 = vmatprep.subr.mxu0 0.0
  %389 = vmatpush1.msra.mxu0 0.0
  %390 = vmatprep.subr.mxu0 0.0
  %391 = vmatpush1.msra.mxu0 0.0
  %392 = vmatprep.subr.mxu0 0.0
  %393 = vmatpush1.msra.mxu0 0.0
  %394 = vmatprep.subr.mxu0 0.0
  %395 = vmatpush1.msra.mxu0 0.0
  %396 = vmatprep.subr.mxu0 0.0
  %397 = vmatpush1.msra.mxu0 0.0
  %398 = vmatprep.subr.mxu0 0.0
  %399 = vmatpush1.msra.mxu0 0.0
  %400 = vmatprep.subr.mxu0 0.0
  %401 = vmatpush1.msra.mxu0 0.0
  %402 = vmatprep.subr.mxu0 0.0
  %403 = vmatpush1.msra.mxu0 0.0
  %404 = vmatprep.subr.mxu0 0.0
  %405 = vmatpush1.msra.mxu0 0.0
  %406 = vmatprep.subr.mxu0 0.0
  %407 = vmatpush1.msra.mxu0 0.0
  %408 = vmatprep.subr.mxu0 0.0
  %409 = vmatpush1.msra.mxu0 0.0
  %410 = vmatprep.subr.mxu0 0.0
  %411 = vmatpush1.msra.mxu0 0.0
  %412 = vmatprep.subr.mxu0 0.0
  %413 = vmatpush1.msra.mxu0 0.0
  %414 = vmatprep.subr.mxu0 0.0
  %415 = vmatpush1.msra.mxu0 0.0
  %416 = vmatprep.subr.mxu0 0.0
  %417 = vmatpush1.msra.mxu0 0.0
  %418 = vmatprep.subr.mxu0 0.0
  %419 = vmatpush1.msra.mxu0 0.0
  %420 = vmatprep.mubr.f32.mxu0 0.0
  %421 = vmatmul.mubr.f32.gmra.mrb[0].mxu0 %v330
  %v422 = vpop.f32.mrb[0].mxu0
  %v423 = vadd.f32 %v327, %v422
  %v424 = vpop.f32.mrb[0].mxu0
  %425 = vmatprep.mubr.f32.mxu0 0.0
  %426 = vmatmul.mubr.f32.gmra.mrb[0].mxu0 %v333
  %v427 = vpop.f32.mrb[0].mxu0
  %v428 = vadd.f32 %v327, %v427
  %v429 = vpop.f32.mrb[0].mxu0
  %430 = vmatprep.mubr.f32.mxu0 0.0
  %431 = vmatmul.mubr.f32.gmra.mrb[0].mxu0 %v336
  %v432 = vpop.f32.mrb[0].mxu0
  %v433 = vadd.f32 %v327, %v432
  %v434 = vpop.f32.mrb[0].mxu0
  %435 = vmatprep.mubr.f32.mxu0 0.0
  %436 = vmatmul.mubr.f32.gmra.mrb[0].mxu0 %v339
  %v437 = vpop.f32.mrb[0].mxu0
  %v438 = vadd.f32 %v327, %v437
  %v439 = vpop.f32.mrb[0].mxu0
  %440 = vmatprep.mubr.f32.mxu0 0.0
  %441 = vmatmul.mubr.f32.gmra.mrb[0].mxu0 %v342
  %v442 = vpop.f32.mrb[0].mxu0
  %v443 = vadd.f32 %v327, %v442
  %v444 = vpop.f32.mrb[0].mxu0
  %445 = vmatprep.mubr.f32.mxu0 0.0
  %446 = vmatmul.mubr.f32.gmra.mrb[0].mxu0 %v345
  %v447 = vpop.f32.mrb[0].mxu0
  %v448 = vadd.f32 %v327, %v447
  %v449 = vpop.f32.mrb[0].mxu0
  %450 = vmatprep.mubr.f32.mxu0 0.0
  %451 = vmatmul.mubr.f32.gmra.mrb[0].mxu0 %v348
  %v452 = vpop.f32.mrb[0].mxu0
  %v453 = vadd.f32 %v327, %v452
  %v454 = vpop.f32.mrb[0].mxu0
  %455 = vmatprep.mubr.f32.mxu0 0.0
  %456 = vmatmul.mubr.f32.gmra.mrb[0].mxu0 %v351
  %v457 = vpop.f32.mrb[0].mxu0
  %v458 = vadd.f32 %v327, %v457
  %v459 = vpop.f32.mrb[0].mxu0
  %460 = vmatprep.mubr.f32.mxu0 0.0
  %461 = vmatmul.mubr.f32.gmra.mrb[0].mxu0 %v354
  %v462 = vpop.f32.mrb[0].mxu0
  %v463 = vadd.f32 %v327, %v462
  %v464 = vpop.f32.mrb[0].mxu0
  %465 = vdwg.mxu0
  %v466 = vld [vmem:[%s8] sm:$0x1]
  %v467 = vld [vmem:[%s9] sm:$0x1]
  %v468 = vsel %vm202, %v423, 0.0
  %v469 = vsel %vm202, %v428, 0.0
  %v470 = vadd.f32 %v468, %v469
  %v471 = vsel %vm202, %v433, 0.0
  %v472 = vadd.f32 %v470, %v471
  %v473 = vsel %vm202, %v438, 0.0
  %v474 = vadd.f32 %v472, %v473
  %v475 = vsel %vm202, %v443, 0.0
  %v476 = vadd.f32 %v474, %v475
  %v477 = vsel %vm202, %v448, 0.0
  %v478 = vadd.f32 %v476, %v477
  %v479 = vsel %vm202, %v453, 0.0
  %v480 = vadd.f32 %v478, %v479
  %v481 = vsel %vm202, %v458, 0.0
  %v482 = vadd.f32 %v480, %v481
  %v483 = vsel %vm218, %v463, 0.0
  %v484 = vadd.f32 %v482, %v483
  %v485 = vrot.slane %v484, 4
  %v486 = vadd.f32 %v484, %v485
  %v487 = vrot.slane %v486, 2
  %v488 = vadd.f32 %v486, %v487
  %v489 = vrot.slane %v488, 1
  %v490 = vadd.f32 %v488, %v489
  %v491 = vmul.f32 %v490, %v227
  %v492 = vsub.f32 %v423, %v491
  %v493 = vsub.f32 %v428, %v491
  %v494 = vsub.f32 %v433, %v491
  %v495 = vsub.f32 %v438, %v491
  %v496 = vsub.f32 %v443, %v491
  %v497 = vsub.f32 %v448, %v491
  %v498 = vsub.f32 %v453, %v491
  %v499 = vsub.f32 %v458, %v491
  %v500 = vsub.f32 %v463, %v491
  %v501 = vmul.f32 %v492, %v492
  %v502 = vmul.f32 %v493, %v493
  %v503 = vmul.f32 %v494, %v494
  %v504 = vmul.f32 %v495, %v495
  %v505 = vmul.f32 %v496, %v496
  %v506 = vmul.f32 %v497, %v497
  %v507 = vmul.f32 %v498, %v498
  %v508 = vmul.f32 %v499, %v499
  %v509 = vmul.f32 %v500, %v500
  %v510 = vsel %vm202, %v501, 0.0
  %v511 = vsel %vm202, %v502, 0.0
  %v512 = vadd.f32 %v510, %v511
  %v513 = vsel %vm202, %v503, 0.0
  %v514 = vadd.f32 %v512, %v513
  %v515 = vsel %vm202, %v504, 0.0
  %v516 = vadd.f32 %v514, %v515
  %v517 = vsel %vm202, %v505, 0.0
  %v518 = vadd.f32 %v516, %v517
  %v519 = vsel %vm202, %v506, 0.0
  %v520 = vadd.f32 %v518, %v519
  %v521 = vsel %vm202, %v507, 0.0
  %v522 = vadd.f32 %v520, %v521
  %v523 = vsel %vm202, %v508, 0.0
  %v524 = vadd.f32 %v522, %v523
  %v525 = vsel %vm218, %v509, 0.0
  %v526 = vadd.f32 %v524, %v525
  %v527 = vrot.slane %v526, 4
  %v528 = vadd.f32 %v526, %v527
  %v529 = vrot.slane %v528, 2
  %v530 = vadd.f32 %v528, %v529
  %v531 = vrot.slane %v530, 1
  %v532 = vadd.f32 %v530, %v531
  %v533 = vmul.f32 %v532, %v227
  %v534 = vadd.f32 %v533, 1e-05
  %v535 = vrsqrt.pop %v534
  %v536 = vmul.f32 %v492, %v535
  %v537 = vmul.f32 %v493, %v535
  %v538 = vmul.f32 %v494, %v535
  %v539 = vmul.f32 %v495, %v535
  %v540 = vmul.f32 %v496, %v535
  %v541 = vmul.f32 %v497, %v535
  %v542 = vmul.f32 %v498, %v535
  %v543 = vmul.f32 %v499, %v535
  %v544 = vmul.f32 %v500, %v535
  %v546 = vlaneseq
  %v547 = vshrl.u32 %v546, 7
  %v548 = vsub.s32 0, %v547
  %v549 = vrot.slane %v466, %v548
  %v551 = vmul.f32 %v536, %v549
  %v552 = vmul.f32 %v537, %v549
  %v553 = vmul.f32 %v538, %v549
  %v554 = vmul.f32 %v539, %v549
  %v555 = vmul.f32 %v540, %v549
  %v556 = vmul.f32 %v541, %v549
  %v557 = vmul.f32 %v542, %v549
  %v558 = vmul.f32 %v543, %v549
  %v559 = vmul.f32 %v544, %v549
  %v561 = vlaneseq
  %v562 = vshrl.u32 %v561, 7
  %v563 = vsub.s32 0, %v562
  %v564 = vrot.slane %v467, %v563
  %v566 = vadd.f32 %v551, %v564
  %v567 = vadd.f32 %v552, %v564
  %v568 = vadd.f32 %v553, %v564
  %v569 = vadd.f32 %v554, %v564
  %v570 = vadd.f32 %v555, %v564
  %v571 = vadd.f32 %v556, %v564
  %v572 = vadd.f32 %v557, %v564
  %v573 = vadd.f32 %v558, %v564
  %v574 = vadd.f32 %v559, %v564
  %v575 = vld [vmem:[%s0] sm:$0xff]
  %v576 = vld [vmem:[%s0 + $0x8] sm:$0xff]
  %v577 = vld [vmem:[%s0 + $0x10] sm:$0xff]
  %v578 = vld [vmem:[%s0 + $0x18] sm:$0xff]
  %v579 = vld [vmem:[%s0 + $0x20] sm:$0xff]
  %v580 = vld [vmem:[%s0 + $0x28] sm:$0xff]
  %v581 = vld [vmem:[%s0 + $0x30] sm:$0xff]
  %v582 = vld [vmem:[%s0 + $0x38] sm:$0xff]
  %v583 = vld [vmem:[%s0 + $0x40] sm:$0x3f]
  %v584 = vadd.f32 %v575, %v566
  %v585 = vadd.f32 %v576, %v567
  %v586 = vadd.f32 %v577, %v568
  %v587 = vadd.f32 %v578, %v569
  %v588 = vadd.f32 %v579, %v570
  %v589 = vadd.f32 %v580, %v571
  %v590 = vadd.f32 %v581, %v572
  %v591 = vadd.f32 %v582, %v573
  %v592 = vadd.f32 %v583, %v574
  %593 = vst.msk [vmem:[%s10] sm:$0xff] %vm202, %v584
  %594 = vst.msk [vmem:[%s10 + $0x8] sm:$0xff] %vm202, %v585
  %595 = vst.msk [vmem:[%s10 + $0x10] sm:$0xff] %vm202, %v586
  %596 = vst.msk [vmem:[%s10 + $0x18] sm:$0xff] %vm202, %v587
  %597 = vst.msk [vmem:[%s10 + $0x20] sm:$0xff] %vm202, %v588
  %598 = vst.msk [vmem:[%s10 + $0x28] sm:$0xff] %vm202, %v589
  %599 = vst.msk [vmem:[%s10 + $0x30] sm:$0xff] %vm202, %v590
  %600 = vst.msk [vmem:[%s10 + $0x38] sm:$0xff] %vm202, %v591
  %601 = vst.msk [vmem:[%s10 + $0x40] sm:$0x3f] %vm218, %v592
  %v602 = vmax.f32 %v584, 0.0
  %v603 = vmax.f32 %v585, 0.0
  %v604 = vmax.f32 %v586, 0.0
  %v605 = vmax.f32 %v587, 0.0
  %v606 = vmax.f32 %v588, 0.0
  %v607 = vmax.f32 %v589, 0.0
  %v608 = vmax.f32 %v590, 0.0
  %v609 = vmax.f32 %v591, 0.0
  %v610 = vmax.f32 %v592, 0.0
  %611 = vst.msk [vmem:[%s11] sm:$0xff] %vm202, %v602
  %612 = vst.msk [vmem:[%s11 + $0x8] sm:$0xff] %vm202, %v603
  %613 = vst.msk [vmem:[%s11 + $0x10] sm:$0xff] %vm202, %v604
  %614 = vst.msk [vmem:[%s11 + $0x18] sm:$0xff] %vm202, %v605
  %615 = vst.msk [vmem:[%s11 + $0x20] sm:$0xff] %vm202, %v606
  %616 = vst.msk [vmem:[%s11 + $0x28] sm:$0xff] %vm202, %v607
  %617 = vst.msk [vmem:[%s11 + $0x30] sm:$0xff] %vm202, %v608
  %618 = vst.msk [vmem:[%s11 + $0x38] sm:$0xff] %vm202, %v609
  %619 = vst.msk [vmem:[%s11 + $0x40] sm:$0x3f] %vm218, %v610
  // Predicated region
  $region42: #{encoder_forward.11} parent=0 // pred_check
    _
  $region43: #{encoder_forward.11} parent=0 // pred_check_branch
    %621 = sbr.rel (0) target = $region45
  $region44: #{encoder_forward.11} parent=0 // pred_region
    _
  $region45: #{encoder_forward.11} parent=0 // pred_fallthru
    _
  // Predicated region
  $region46: #{encoder_forward.11} parent=0 // pred_check
    _
  $region47: #{encoder_forward.11} parent=0 // pred_check_branch
    %623 = sbr.rel (0) target = $region49
  $region48: #{encoder_forward.11} parent=0 // pred_region
    _
  $region49: #{encoder_forward.11} parent=0 // pred_fallthru
    _
  // Predicated region
  $region50: #{encoder_forward.11} parent=0 // pred_check
    _
  $region51: #{encoder_forward.11} parent=0 // pred_check_branch
    %625 = sbr.rel (0) target = $region53
  $region52: #{encoder_forward.11} parent=0 // pred_region
    _
  $region53: #{encoder_forward.11} parent=0 // pred_fallthru
    _
  // Predicated region
  $region54: #{encoder_forward.11} parent=0 // pred_check
    _
  $region55: #{encoder_forward.11} parent=0 // pred_check_branch
    %627 = sbr.rel (0) target = $region57
  $region56: #{encoder_forward.11} parent=0 // pred_region
    _
  $region57: #{encoder_forward.11} parent=0 // pred_fallthru
    _

// kernel: encoder_forward.12
$region0: #{encoder_forward.12}
  #allocation0 [shape = 'u32[]', space=smem, size = 0x4, offset = 0x4, fixed_abs, tag = 'smem constant byte address 0x4 - core index']
  #allocation1 [shape = 'u32[144,128]{1,0:T(1,128)}', space=vmem, size = 0x12000, scoped, tag = 'internal scratch']
  %s0 = inlined_call_operand.vmem [shape: f32[70,8], index: 0, kind: input, shape index: {}]
  %s1 = inlined_call_operand.vmem [shape: f32[70,72], index: 1, kind: input, shape index: {}]
  %s2 = inlined_call_operand.vmem [shape: f32[72,8], index: 2, kind: input, shape index: {}]
  %s3 = inlined_call_operand.vmem [shape: f32[1,8], index: 3, kind: input, shape index: {}]
  %s4 = inlined_call_operand.vmem [shape: f32[1,8], index: 4, kind: input, shape index: {}]
  %s5 = inlined_call_operand.vmem [shape: f32[1,8], index: 5, kind: input, shape index: {}]
  %s6 = inlined_call_operand.vmem [shape: f32[8,8], index: 6, kind: input, shape index: {}]
  %s7 = inlined_call_operand.vmem [shape: f32[1,8], index: 7, kind: input, shape index: {}]
  %s8 = inlined_call_operand.vmem [shape: f32[1,8], index: 8, kind: input, shape index: {}]
  %s9 = inlined_call_operand.vmem [shape: f32[1,8], index: 9, kind: input, shape index: {}]
  %s10 = inlined_call_operand.vmem [shape: f32[70,8], index: 10, kind: output, shape index: {0}]
  %s11 = inlined_call_operand.hbm [shape: f32[70,8], index: 11, kind: output, shape index: {1}]
  %12 = xla_tuple %s10, %s11
  %s13 = sld [smem:[#allocation0]]
  $region58: #{encoder_forward.12} parent=0
    _
  %s15 = ssub.s32 1, %s13
  %s16 = scalar_select 0, %s15, %s13
  $region1: #{encoder_forward.12} parent=0
    #allocation2 [shape = 'u8[36864]{0}', space=vmem, size = 0x9000, scoped, tag = 'output window, operand 1, single buffered']
    #allocation3 [shape = 's32[1]{0}', space=sflag, size = 0x4, scoped, tag = 'scoped memory for encoder_forward.12']
    %17 = vsyncpa [#allocation3], 0
    // Predicated region
    $region2: #{encoder_forward.12} parent=1 // pred_check
      _
    $region3: #{encoder_forward.12} parent=1 // pred_check_branch
      %19 = sbr.rel (0) target = $region5
    $region4: #{encoder_forward.12} parent=1 // pred_region
      _
    $region5: #{encoder_forward.12} parent=1 // pred_fallthru
      _
    // Predicated region
    $region6: #{encoder_forward.12} parent=1 // pred_check
      _
    $region7: #{encoder_forward.12} parent=1 // pred_check_branch
      %21 = sbr.rel (0) target = $region9
    $region8: #{encoder_forward.12} parent=1 // pred_region
      _
    $region9: #{encoder_forward.12} parent=1 // pred_fallthru
      _
    // Predicated region
    $region10: #{encoder_forward.12} parent=1 // pred_check
      _
    $region11: #{encoder_forward.12} parent=1 // pred_check_branch
      %23 = sbr.rel (0) target = $region13
    $region12: #{encoder_forward.12} parent=1 // pred_region
      _
    $region13: #{encoder_forward.12} parent=1 // pred_fallthru
      _
    // Predicated region
    $region14: #{encoder_forward.12} parent=1 // pred_check
      _
    $region15: #{encoder_forward.12} parent=1 // pred_check_branch
      %25 = sbr.rel (0) target = $region17
    $region16: #{encoder_forward.12} parent=1 // pred_region
      _
    $region17: #{encoder_forward.12} parent=1 // pred_fallthru
      _
    // Predicated region
    $region18: #{encoder_forward.12} parent=1 // pred_check
      _
    $region19: #{encoder_forward.12} parent=1 // pred_check_branch
      %27 = sbr.rel (0) target = $region21
    $region20: #{encoder_forward.12} parent=1 // pred_region
      _
    $region21: #{encoder_forward.12} parent=1 // pred_fallthru
      _
    // Predicated region
    $region22: #{encoder_forward.12} parent=1 // pred_check
      _
    $region23: #{encoder_forward.12} parent=1 // pred_check_branch
      %29 = sbr.rel (0) target = $region25
    $region24: #{encoder_forward.12} parent=1 // pred_region
      _
    $region25: #{encoder_forward.12} parent=1 // pred_fallthru
      _
    // Predicated region
    $region26: #{encoder_forward.12} parent=1 // pred_check
      _
    $region27: #{encoder_forward.12} parent=1 // pred_check_branch
      %31 = sbr.rel (0) target = $region29
    $region28: #{encoder_forward.12} parent=1 // pred_region
      _
    $region29: #{encoder_forward.12} parent=1 // pred_fallthru
      _
    // Predicated region
    $region30: #{encoder_forward.12} parent=1 // pred_check
      _
    $region31: #{encoder_forward.12} parent=1 // pred_check_branch
      %33 = sbr.rel (0) target = $region33
    $region32: #{encoder_forward.12} parent=1 // pred_region
      _
    $region33: #{encoder_forward.12} parent=1 // pred_fallthru
      _
    // Predicated region
    $region34: #{encoder_forward.12} parent=1 // pred_check
      _
    $region35: #{encoder_forward.12} parent=1 // pred_check_branch
      %35 = sbr.rel (0) target = $region37
    $region36: #{encoder_forward.12} parent=1 // pred_region
      _
    $region37: #{encoder_forward.12} parent=1 // pred_fallthru
      _
    // Predicated region
    $region38: #{encoder_forward.12} parent=1 // pred_check
      _
    $region39: #{encoder_forward.12} parent=1 // pred_check_branch
      %37 = sbr.rel (0) target = $region41
    $region40: #{encoder_forward.12} parent=1 // pred_region
      _
    $region41: #{encoder_forward.12} parent=1 // pred_fallthru
      _
    %v38 = vld [vmem:[%s1] sm:$0xff]
    %v39 = vld [vmem:[%s1 + $0x8] sm:$0xff]
    %v40 = vld [vmem:[%s1 + $0x10] sm:$0xff]
    %v41 = vld [vmem:[%s1 + $0x18] sm:$0xff]
    %v42 = vld [vmem:[%s1 + $0x20] sm:$0xff]
    %v43 = vld [vmem:[%s1 + $0x28] sm:$0xff]
    %v44 = vld [vmem:[%s1 + $0x30] sm:$0xff]
    %v45 = vld [vmem:[%s1 + $0x38] sm:$0xff]
    %v46 = vld [vmem:[%s1 + $0x40] sm:$0x3f]
    %v47 = vld [vmem:[%s2] sm:$0xff]
    %v48 = vld [vmem:[%s2 + $0x8] sm:$0xff]
    %v49 = vld [vmem:[%s2 + $0x10] sm:$0xff]
    %v50 = vld [vmem:[%s2 + $0x18] sm:$0xff]
    %v51 = vld [vmem:[%s2 + $0x20] sm:$0xff]
    %v52 = vld [vmem:[%s2 + $0x28] sm:$0xff]
    %v53 = vld [vmem:[%s2 + $0x30] sm:$0xff]
    %v54 = vld [vmem:[%s2 + $0x38] sm:$0xff]
    %v55 = vld [vmem:[%s2 + $0x40] sm:$0xff]
    %v56 = vld [vmem:[%s3] sm:$0x1]
    %v58 = vlaneseq
    %v59 = vshrl.u32 %v58, 7
    %v60 = vsub.s32 0, %v59
    %v61 = vrot.slane %v56, %v60
    %vm63 = vcmask 588800
    %v65 = vsel %vm63, %v38, 0
    %v68 = vsel %vm63, %v39, 0
    %v71 = vsel %vm63, %v40, 0
    %v74 = vsel %vm63, %v41, 0
    %v77 = vsel %vm63, %v42, 0
    %v80 = vsel %vm63, %v43, 0
    %v83 = vsel %vm63, %v44, 0
    %v86 = vsel %vm63, %v45, 0
    %v89 = vsel %vm63, %v46, 0
    %91 = vmatprep.subr.mxu0 0.0
    %92 = vmatpush1.msra.mxu0 %v47
    %93 = vmatprep.subr.mxu0 0.0
    %94 = vmatpush1.msra.mxu0 %v48
    %95 = vmatprep.subr.mxu0 0.0
    %96 = vmatpush1.msra.mxu0 %v49
    %97 = vmatprep.subr.mxu0 0.0
    %98 = vmatpush1.msra.mxu0 %v50
    %99 = vmatprep.subr.mxu0 0.0
    %100 = vmatpush1.msra.mxu0 %v51
    %101 = vmatprep.subr.mxu0 0.0
    %102 = vmatpush1.msra.mxu0 %v52
    %103 = vmatprep.subr.mxu0 0.0
    %104 = vmatpush1.msra.mxu0 %v53
    %105 = vmatprep.subr.mxu0 0.0
    %106 = vmatpush1.msra.mxu0 %v54
    %107 = vmatprep.subr.mxu0 0.0
    %108 = vmatpush1.msra.mxu0 %v55
    %109 = vmatprep.subr.mxu0 0.0
    %110 = vmatpush1.msra.mxu0 0.0
    %111 = vmatprep.subr.mxu0 0.0
    %112 = vmatpush1.msra.mxu0 0.0
    %113 = vmatprep.subr.mxu0 0.0
    %114 = vmatpush1.msra.mxu0 0.0
    %115 = vmatprep.subr.mxu0 0.0
    %116 = vmatpush1.msra.mxu0 0.0
    %117 = vmatprep.subr.mxu0 0.0
    %118 = vmatpush1.msra.mxu0 0.0
    %119 = vmatprep.subr.mxu0 0.0
    %120 = vmatpush1.msra.mxu0 0.0
    %121 = vmatprep.subr.mxu0 0.0
    %122 = vmatpush1.msra.mxu0 0.0
    %123 = vmatprep.subr.mxu0 0.0
    %124 = vmatpush1.msra.mxu0 0.0
    %125 = vmatprep.subr.mxu0 0.0
    %126 = vmatpush1.msra.mxu0 0.0
    %127 = vmatprep.subr.mxu0 0.0
    %128 = vmatpush1.msra.mxu0 0.0
    %129 = vmatprep.subr.mxu0 0.0
    %130 = vmatpush1.msra.mxu0 0.0
    %131 = vmatprep.subr.mxu0 0.0
    %132 = vmatpush1.msra.mxu0 0.0
    %133 = vmatprep.subr.mxu0 0.0
    %134 = vmatpush1.msra.mxu0 0.0
    %135 = vmatprep.subr.mxu0 0.0
    %136 = vmatpush1.msra.mxu0 0.0
    %137 = vmatprep.subr.mxu0 0.0
    %138 = vmatpush1.msra.mxu0 0.0
    %139 = vmatprep.subr.mxu0 0.0
    %140 = vmatpush1.msra.mxu0 0.0
    %141 = vmatprep.subr.mxu0 0.0
    %142 = vmatpush1.msra.mxu0 0.0
    %143 = vmatprep.subr.mxu0 0.0
    %144 = vmatpush1.msra.mxu0 0.0
    %145 = vmatprep.subr.mxu0 0.0
    %146 = vmatpush1.msra.mxu0 0.0
    %147 = vmatprep.subr.mxu0 0.0
    %148 = vmatpush1.msra.mxu0 0.0
    %149 = vmatprep.subr.mxu0 0.0
    %150 = vmatpush1.msra.mxu0 0.0
    %151 = vmatprep.subr.mxu0 0.0
    %152 = vmatpush1.msra.mxu0 0.0
    %153 = vmatprep.subr.mxu0 0.0
    %154 = vmatpush1.msra.mxu0 0.0
    %155 = vmatprep.mubr.f32.mxu0 0.0
    %156 = vmatmul.mubr.f32.gmra.mrb[0].mxu0 %v65
    %v157 = vpop.f32.mrb[0].mxu0
    %v158 = vadd.f32 %v61, %v157
    %v159 = vpop.f32.mrb[0].mxu0
    %160 = vmatprep.mubr.f32.mxu0 0.0
    %161 = vmatmul.mubr.f32.gmra.mrb[0].mxu0 %v68
    %v162 = vpop.f32.mrb[0].mxu0
    %v163 = vadd.f32 %v61, %v162
    %v164 = vpop.f32.mrb[0].mxu0
    %165 = vmatprep.mubr.f32.mxu0 0.0
    %166 = vmatmul.mubr.f32.gmra.mrb[0].mxu0 %v71
    %v167 = vpop.f32.mrb[0].mxu0
    %v168 = vadd.f32 %v61, %v167
    %v169 = vpop.f32.mrb[0].mxu0
    %170 = vmatprep.mubr.f32.mxu0 0.0
    %171 = vmatmul.mubr.f32.gmra.mrb[0].mxu0 %v74
    %v172 = vpop.f32.mrb[0].mxu0
    %v173 = vadd.f32 %v61, %v172
    %v174 = vpop.f32.mrb[0].mxu0
    %175 = vmatprep.mubr.f32.mxu0 0.0
    %176 = vmatmul.mubr.f32.gmra.mrb[0].mxu0 %v77
    %v177 = vpop.f32.mrb[0].mxu0
    %v178 = vadd.f32 %v61, %v177
    %v179 = vpop.f32.mrb[0].mxu0
    %180 = vmatprep.mubr.f32.mxu0 0.0
    %181 = vmatmul.mubr.f32.gmra.mrb[0].mxu0 %v80
    %v182 = vpop.f32.mrb[0].mxu0
    %v183 = vadd.f32 %v61, %v182
    %v184 = vpop.f32.mrb[0].mxu0
    %185 = vmatprep.mubr.f32.mxu0 0.0
    %186 = vmatmul.mubr.f32.gmra.mrb[0].mxu0 %v83
    %v187 = vpop.f32.mrb[0].mxu0
    %v188 = vadd.f32 %v61, %v187
    %v189 = vpop.f32.mrb[0].mxu0
    %190 = vmatprep.mubr.f32.mxu0 0.0
    %191 = vmatmul.mubr.f32.gmra.mrb[0].mxu0 %v86
    %v192 = vpop.f32.mrb[0].mxu0
    %v193 = vadd.f32 %v61, %v192
    %v194 = vpop.f32.mrb[0].mxu0
    %195 = vmatprep.mubr.f32.mxu0 0.0
    %196 = vmatmul.mubr.f32.gmra.mrb[0].mxu0 %v89
    %v197 = vpop.f32.mrb[0].mxu0
    %v198 = vadd.f32 %v61, %v197
    %v199 = vpop.f32.mrb[0].mxu0
    %200 = vdwg.mxu0
    %v201 = vld [vmem:[%s4] sm:$0x1]
    %v202 = vld [vmem:[%s5] sm:$0x1]
    %vm203 = vcmask 64512
    %v204 = vsel %vm203, %v158, 0.0
    %v205 = vsel %vm203, %v163, 0.0
    %v206 = vadd.f32 %v204, %v205
    %v207 = vsel %vm203, %v168, 0.0
    %v208 = vadd.f32 %v206, %v207
    %v209 = vsel %vm203, %v173, 0.0
    %v210 = vadd.f32 %v208, %v209
    %v211 = vsel %vm203, %v178, 0.0
    %v212 = vadd.f32 %v210, %v211
    %v213 = vsel %vm203, %v183, 0.0
    %v214 = vadd.f32 %v212, %v213
    %v215 = vsel %vm203, %v188, 0.0
    %v216 = vadd.f32 %v214, %v215
    %v217 = vsel %vm203, %v193, 0.0
    %v218 = vadd.f32 %v216, %v217
    %vm219 = vcmask 62464
    %v220 = vsel %vm219, %v198, 0.0
    %v221 = vadd.f32 %v218, %v220
    %v222 = vrot.slane %v221, 4
    %v223 = vadd.f32 %v221, %v222
    %v224 = vrot.slane %v223, 2
    %v225 = vadd.f32 %v223, %v224
    %v226 = vrot.slane %v225, 1
    %v227 = vadd.f32 %v225, %v226
    %v228 = vrcp.pop 70.0
    %v229 = vmul.f32 %v227, %v228
    %v230 = vsub.f32 %v158, %v229
    %v231 = vsub.f32 %v163, %v229
    %v232 = vsub.f32 %v168, %v229
    %v233 = vsub.f32 %v173, %v229
    %v234 = vsub.f32 %v178, %v229
    %v235 = vsub.f32 %v183, %v229
    %v236 = vsub.f32 %v188, %v229
    %v237 = vsub.f32 %v193, %v229
    %v238 = vsub.f32 %v198, %v229
    %v239 = vmul.f32 %v230, %v230
    %v240 = vmul.f32 %v231, %v231
    %v241 = vmul.f32 %v232, %v232
    %v242 = vmul.f32 %v233, %v233
    %v243 = vmul.f32 %v234, %v234
    %v244 = vmul.f32 %v235, %v235
    %v245 = vmul.f32 %v236, %v236
    %v246 = vmul.f32 %v237, %v237
    %v247 = vmul.f32 %v238, %v238
    %v248 = vsel %vm203, %v239, 0.0
    %v249 = vsel %vm203, %v240, 0.0
    %v250 = vadd.f32 %v248, %v249
    %v251 = vsel %vm203, %v241, 0.0
    %v252 = vadd.f32 %v250, %v251
    %v253 = vsel %vm203, %v242, 0.0
    %v254 = vadd.f32 %v252, %v253
    %v255 = vsel %vm203, %v243, 0.0
    %v256 = vadd.f32 %v254, %v255
    %v257 = vsel %vm203, %v244, 0.0
    %v258 = vadd.f32 %v256, %v257
    %v259 = vsel %vm203, %v245, 0.0
    %v260 = vadd.f32 %v258, %v259
    %v261 = vsel %vm203, %v246, 0.0
    %v262 = vadd.f32 %v260, %v261
    %v263 = vsel %vm219, %v247, 0.0
    %v264 = vadd.f32 %v262, %v263
    %v265 = vrot.slane %v264, 4
    %v266 = vadd.f32 %v264, %v265
    %v267 = vrot.slane %v266, 2
    %v268 = vadd.f32 %v266, %v267
    %v269 = vrot.slane %v268, 1
    %v270 = vadd.f32 %v268, %v269
    %v271 = vmul.f32 %v270, %v228
    %v272 = vadd.f32 %v271, 1e-05
    %v273 = vrsqrt.pop %v272
    %v274 = vmul.f32 %v230, %v273
    %v275 = vmul.f32 %v231, %v273
    %v276 = vmul.f32 %v232, %v273
    %v277 = vmul.f32 %v233, %v273
    %v278 = vmul.f32 %v234, %v273
    %v279 = vmul.f32 %v235, %v273
    %v280 = vmul.f32 %v236, %v273
    %v281 = vmul.f32 %v237, %v273
    %v282 = vmul.f32 %v238, %v273
    %v284 = vlaneseq
    %v285 = vshrl.u32 %v284, 7
    %v286 = vsub.s32 0, %v285
    %v287 = vrot.slane %v201, %v286
    %v289 = vmul.f32 %v274, %v287
    %v290 = vmul.f32 %v275, %v287
    %v291 = vmul.f32 %v276, %v287
    %v292 = vmul.f32 %v277, %v287
    %v293 = vmul.f32 %v278, %v287
    %v294 = vmul.f32 %v279, %v287
    %v295 = vmul.f32 %v280, %v287
    %v296 = vmul.f32 %v281, %v287
    %v297 = vmul.f32 %v282, %v287
    %v299 = vlaneseq
    %v300 = vshrl.u32 %v299, 7
    %v301 = vsub.s32 0, %v300
    %v302 = vrot.slane %v202, %v301
    %v304 = vadd.f32 %v289, %v302
    %v305 = vadd.f32 %v290, %v302
    %v306 = vadd.f32 %v291, %v302
    %v307 = vadd.f32 %v292, %v302
    %v308 = vadd.f32 %v293, %v302
    %v309 = vadd.f32 %v294, %v302
    %v310 = vadd.f32 %v295, %v302
    %v311 = vadd.f32 %v296, %v302
    %v312 = vadd.f32 %v297, %v302
    %v313 = vmax.f32 %v304, 0.0
    %v314 = vmax.f32 %v305, 0.0
    %v315 = vmax.f32 %v306, 0.0
    %v316 = vmax.f32 %v307, 0.0
    %v317 = vmax.f32 %v308, 0.0
    %v318 = vmax.f32 %v309, 0.0
    %v319 = vmax.f32 %v310, 0.0
    %v320 = vmax.f32 %v311, 0.0
    %v321 = vmax.f32 %v312, 0.0
    %v322 = vld [vmem:[%s6] sm:$0xff]
    %v323 = vld [vmem:[%s7] sm:$0x1]
    %v325 = vlaneseq
    %v326 = vshrl.u32 %v325, 7
    %v327 = vsub.s32 0, %v326
    %v328 = vrot.slane %v323, %v327
    %v331 = vsel %vm203, %v313, 0
    %v334 = vsel %vm203, %v314, 0
    %v337 = vsel %vm203, %v315, 0
    %v340 = vsel %vm203, %v316, 0
    %v343 = vsel %vm203, %v317, 0
    %v346 = vsel %vm203, %v318, 0
    %v349 = vsel %vm203, %v319, 0
    %v352 = vsel %vm203, %v320, 0
    %v355 = vsel %vm203, %v321, 0
    %357 = vmatprep.subr.mxu0 0.0
    %358 = vmatpush1.msra.mxu0 %v322
    %359 = vmatprep.subr.mxu0 0.0
    %360 = vmatpush1.msra.mxu0 0.0
    %361 = vmatprep.subr.mxu0 0.0
    %362 = vmatpush1.msra.mxu0 0.0
    %363 = vmatprep.subr.mxu0 0.0
    %364 = vmatpush1.msra.mxu0 0.0
    %365 = vmatprep.subr.mxu0 0.0
    %366 = vmatpush1.msra.mxu0 0.0
    %367 = vmatprep.subr.mxu0 0.0
    %368 = vmatpush1.msra.mxu0 0.0
    %369 = vmatprep.subr.mxu0 0.0
    %370 = vmatpush1.msra.mxu0 0.0
    %371 = vmatprep.subr.mxu0 0.0
    %372 = vmatpush1.msra.mxu0 0.0
    %373 = vmatprep.subr.mxu0 0.0
    %374 = vmatpush1.msra.mxu0 0.0
    %375 = vmatprep.subr.mxu0 0.0
    %376 = vmatpush1.msra.mxu0 0.0
    %377 = vmatprep.subr.mxu0 0.0
    %378 = vmatpush1.msra.mxu0 0.0
    %379 = vmatprep.subr.mxu0 0.0
    %380 = vmatpush1.msra.mxu0 0.0
    %381 = vmatprep.subr.mxu0 0.0
    %382 = vmatpush1.msra.mxu0 0.0
    %383 = vmatprep.subr.mxu0 0.0
    %384 = vmatpush1.msra.mxu0 0.0
    %385 = vmatprep.subr.mxu0 0.0
    %386 = vmatpush1.msra.mxu0 0.0
    %387 = vmatprep.subr.mxu0 0.0
    %388 = vmatpush1.msra.mxu0 0.0
    %389 = vmatprep.subr.mxu0 0.0
    %390 = vmatpush1.msra.mxu0 0.0
    %391 = vmatprep.subr.mxu0 0.0
    %392 = vmatpush1.msra.mxu0 0.0
    %393 = vmatprep.subr.mxu0 0.0
    %394 = vmatpush1.msra.mxu0 0.0
    %395 = vmatprep.subr.mxu0 0.0
    %396 = vmatpush1.msra.mxu0 0.0
    %397 = vmatprep.subr.mxu0 0.0
    %398 = vmatpush1.msra.mxu0 0.0
    %399 = vmatprep.subr.mxu0 0.0
    %400 = vmatpush1.msra.mxu0 0.0
    %401 = vmatprep.subr.mxu0 0.0
    %402 = vmatpush1.msra.mxu0 0.0
    %403 = vmatprep.subr.mxu0 0.0
    %404 = vmatpush1.msra.mxu0 0.0
    %405 = vmatprep.subr.mxu0 0.0
    %406 = vmatpush1.msra.mxu0 0.0
    %407 = vmatprep.subr.mxu0 0.0
    %408 = vmatpush1.msra.mxu0 0.0
    %409 = vmatprep.subr.mxu0 0.0
    %410 = vmatpush1.msra.mxu0 0.0
    %411 = vmatprep.subr.mxu0 0.0
    %412 = vmatpush1.msra.mxu0 0.0
    %413 = vmatprep.subr.mxu0 0.0
    %414 = vmatpush1.msra.mxu0 0.0
    %415 = vmatprep.subr.mxu0 0.0
    %416 = vmatpush1.msra.mxu0 0.0
    %417 = vmatprep.subr.mxu0 0.0
    %418 = vmatpush1.msra.mxu0 0.0
    %419 = vmatprep.subr.mxu0 0.0
    %420 = vmatpush1.msra.mxu0 0.0
    %421 = vmatprep.mubr.f32.mxu0 0.0
    %422 = vmatmul.mubr.f32.gmra.mrb[0].mxu0 %v331
    %v423 = vpop.f32.mrb[0].mxu0
    %v424 = vadd.f32 %v328, %v423
    %v425 = vpop.f32.mrb[0].mxu0
    %426 = vmatprep.mubr.f32.mxu0 0.0
    %427 = vmatmul.mubr.f32.gmra.mrb[0].mxu0 %v334
    %v428 = vpop.f32.mrb[0].mxu0
    %v429 = vadd.f32 %v328, %v428
    %v430 = vpop.f32.mrb[0].mxu0
    %431 = vmatprep.mubr.f32.mxu0 0.0
    %432 = vmatmul.mubr.f32.gmra.mrb[0].mxu0 %v337
    %v433 = vpop.f32.mrb[0].mxu0
    %v434 = vadd.f32 %v328, %v433
    %v435 = vpop.f32.mrb[0].mxu0
    %436 = vmatprep.mubr.f32.mxu0 0.0
    %437 = vmatmul.mubr.f32.gmra.mrb[0].mxu0 %v340
    %v438 = vpop.f32.mrb[0].mxu0
    %v439 = vadd.f32 %v328, %v438
    %v440 = vpop.f32.mrb[0].mxu0
    %441 = vmatprep.mubr.f32.mxu0 0.0
    %442 = vmatmul.mubr.f32.gmra.mrb[0].mxu0 %v343
    %v443 = vpop.f32.mrb[0].mxu0
    %v444 = vadd.f32 %v328, %v443
    %v445 = vpop.f32.mrb[0].mxu0
    %446 = vmatprep.mubr.f32.mxu0 0.0
    %447 = vmatmul.mubr.f32.gmra.mrb[0].mxu0 %v346
    %v448 = vpop.f32.mrb[0].mxu0
    %v449 = vadd.f32 %v328, %v448
    %v450 = vpop.f32.mrb[0].mxu0
    %451 = vmatprep.mubr.f32.mxu0 0.0
    %452 = vmatmul.mubr.f32.gmra.mrb[0].mxu0 %v349
    %v453 = vpop.f32.mrb[0].mxu0
    %v454 = vadd.f32 %v328, %v453
    %v455 = vpop.f32.mrb[0].mxu0
    %456 = vmatprep.mubr.f32.mxu0 0.0
    %457 = vmatmul.mubr.f32.gmra.mrb[0].mxu0 %v352
    %v458 = vpop.f32.mrb[0].mxu0
    %v459 = vadd.f32 %v328, %v458
    %v460 = vpop.f32.mrb[0].mxu0
    %461 = vmatprep.mubr.f32.mxu0 0.0
    %462 = vmatmul.mubr.f32.gmra.mrb[0].mxu0 %v355
    %v463 = vpop.f32.mrb[0].mxu0
    %v464 = vadd.f32 %v328, %v463
    %v465 = vpop.f32.mrb[0].mxu0
    %466 = vdwg.mxu0
    %v467 = vld [vmem:[%s8] sm:$0x1]
    %v468 = vld [vmem:[%s9] sm:$0x1]
    %v469 = vsel %vm203, %v424, 0.0
    %v470 = vsel %vm203, %v429, 0.0
    %v471 = vadd.f32 %v469, %v470
    %v472 = vsel %vm203, %v434, 0.0
    %v473 = vadd.f32 %v471, %v472
    %v474 = vsel %vm203, %v439, 0.0
    %v475 = vadd.f32 %v473, %v474
    %v476 = vsel %vm203, %v444, 0.0
    %v477 = vadd.f32 %v475, %v476
    %v478 = vsel %vm203, %v449, 0.0
    %v479 = vadd.f32 %v477, %v478
    %v480 = vsel %vm203, %v454, 0.0
    %v481 = vadd.f32 %v479, %v480
    %v482 = vsel %vm203, %v459, 0.0
    %v483 = vadd.f32 %v481, %v482
    %v484 = vsel %vm219, %v464, 0.0
    %v485 = vadd.f32 %v483, %v484
    %v486 = vrot.slane %v485, 4
    %v487 = vadd.f32 %v485, %v486
    %v488 = vrot.slane %v487, 2
    %v489 = vadd.f32 %v487, %v488
    %v490 = vrot.slane %v489, 1
    %v491 = vadd.f32 %v489, %v490
    %v492 = vmul.f32 %v491, %v228
    %v493 = vsub.f32 %v424, %v492
    %v494 = vsub.f32 %v429, %v492
    %v495 = vsub.f32 %v434, %v492
    %v496 = vsub.f32 %v439, %v492
    %v497 = vsub.f32 %v444, %v492
    %v498 = vsub.f32 %v449, %v492
    %v499 = vsub.f32 %v454, %v492
    %v500 = vsub.f32 %v459, %v492
    %v501 = vsub.f32 %v464, %v492
    %v502 = vmul.f32 %v493, %v493
    %v503 = vmul.f32 %v494, %v494
    %v504 = vmul.f32 %v495, %v495
    %v505 = vmul.f32 %v496, %v496
    %v506 = vmul.f32 %v497, %v497
    %v507 = vmul.f32 %v498, %v498
    %v508 = vmul.f32 %v499, %v499
    %v509 = vmul.f32 %v500, %v500
    %v510 = vmul.f32 %v501, %v501
    %v511 = vsel %vm203, %v502, 0.0
    %v512 = vsel %vm203, %v503, 0.0
    %v513 = vadd.f32 %v511, %v512
    %v514 = vsel %vm203, %v504, 0.0
    %v515 = vadd.f32 %v513, %v514
    %v516 = vsel %vm203, %v505, 0.0
    %v517 = vadd.f32 %v515, %v516
    %v518 = vsel %vm203, %v506, 0.0
    %v519 = vadd.f32 %v517, %v518
    %v520 = vsel %vm203, %v507, 0.0
    %v521 = vadd.f32 %v519, %v520
    %v522 = vsel %vm203, %v508, 0.0
    %v523 = vadd.f32 %v521, %v522
    %v524 = vsel %vm203, %v509, 0.0
    %v525 = vadd.f32 %v523, %v524
    %v526 = vsel %vm219, %v510, 0.0
    %v527 = vadd.f32 %v525, %v526
    %v528 = vrot.slane %v527, 4
    %v529 = vadd.f32 %v527, %v528
    %v530 = vrot.slane %v529, 2
    %v531 = vadd.f32 %v529, %v530
    %v532 = vrot.slane %v531, 1
    %v533 = vadd.f32 %v531, %v532
    %v534 = vmul.f32 %v533, %v228
    %v535 = vadd.f32 %v534, 1e-05
    %v536 = vrsqrt.pop %v535
    %v537 = vmul.f32 %v493, %v536
    %v538 = vmul.f32 %v494, %v536
    %v539 = vmul.f32 %v495, %v536
    %v540 = vmul.f32 %v496, %v536
    %v541 = vmul.f32 %v497, %v536
    %v542 = vmul.f32 %v498, %v536
    %v543 = vmul.f32 %v499, %v536
    %v544 = vmul.f32 %v500, %v536
    %v545 = vmul.f32 %v501, %v536
    %v547 = vlaneseq
    %v548 = vshrl.u32 %v547, 7
    %v549 = vsub.s32 0, %v548
    %v550 = vrot.slane %v467, %v549
    %v552 = vmul.f32 %v537, %v550
    %v553 = vmul.f32 %v538, %v550
    %v554 = vmul.f32 %v539, %v550
    %v555 = vmul.f32 %v540, %v550
    %v556 = vmul.f32 %v541, %v550
    %v557 = vmul.f32 %v542, %v550
    %v558 = vmul.f32 %v543, %v550
    %v559 = vmul.f32 %v544, %v550
    %v560 = vmul.f32 %v545, %v550
    %v562 = vlaneseq
    %v563 = vshrl.u32 %v562, 7
    %v564 = vsub.s32 0, %v563
    %v565 = vrot.slane %v468, %v564
    %v567 = vadd.f32 %v552, %v565
    %v568 = vadd.f32 %v553, %v565
    %v569 = vadd.f32 %v554, %v565
    %v570 = vadd.f32 %v555, %v565
    %v571 = vadd.f32 %v556, %v565
    %v572 = vadd.f32 %v557, %v565
    %v573 = vadd.f32 %v558, %v565
    %v574 = vadd.f32 %v559, %v565
    %v575 = vadd.f32 %v560, %v565
    %v576 = vld [vmem:[%s0] sm:$0xff]
    %v577 = vld [vmem:[%s0 + $0x8] sm:$0xff]
    %v578 = vld [vmem:[%s0 + $0x10] sm:$0xff]
    %v579 = vld [vmem:[%s0 + $0x18] sm:$0xff]
    %v580 = vld [vmem:[%s0 + $0x20] sm:$0xff]
    %v581 = vld [vmem:[%s0 + $0x28] sm:$0xff]
    %v582 = vld [vmem:[%s0 + $0x30] sm:$0xff]
    %v583 = vld [vmem:[%s0 + $0x38] sm:$0xff]
    %v584 = vld [vmem:[%s0 + $0x40] sm:$0x3f]
    %v585 = vadd.f32 %v576, %v567
    %v586 = vadd.f32 %v577, %v568
    %v587 = vadd.f32 %v578, %v569
    %v588 = vadd.f32 %v579, %v570
    %v589 = vadd.f32 %v580, %v571
    %v590 = vadd.f32 %v581, %v572
    %v591 = vadd.f32 %v582, %v573
    %v592 = vadd.f32 %v583, %v574
    %v593 = vadd.f32 %v584, %v575
    %594 = vst.msk [vmem:[%s10] sm:$0xff] %vm203, %v585
    %595 = vst.msk [vmem:[%s10 + $0x8] sm:$0xff] %vm203, %v586
    %596 = vst.msk [vmem:[%s10 + $0x10] sm:$0xff] %vm203, %v587
    %597 = vst.msk [vmem:[%s10 + $0x18] sm:$0xff] %vm203, %v588
    %598 = vst.msk [vmem:[%s10 + $0x20] sm:$0xff] %vm203, %v589
    %599 = vst.msk [vmem:[%s10 + $0x28] sm:$0xff] %vm203, %v590
    %600 = vst.msk [vmem:[%s10 + $0x30] sm:$0xff] %vm203, %v591
    %601 = vst.msk [vmem:[%s10 + $0x38] sm:$0xff] %vm203, %v592
    %602 = vst.msk [vmem:[%s10 + $0x40] sm:$0x3f] %vm219, %v593
    %v603 = vmax.f32 %v585, 0.0
    %v604 = vmax.f32 %v586, 0.0
    %v605 = vmax.f32 %v587, 0.0
    %v606 = vmax.f32 %v588, 0.0
    %v607 = vmax.f32 %v589, 0.0
    %v608 = vmax.f32 %v590, 0.0
    %v609 = vmax.f32 %v591, 0.0
    %v610 = vmax.f32 %v592, 0.0
    %v611 = vmax.f32 %v593, 0.0
    %612 = vst.msk [vmem:[#allocation2] sm:$0xff] %vm203, %v603
    %613 = vst.msk [vmem:[#allocation2 + $0x8] sm:$0xff] %vm203, %v604
    %614 = vst.msk [vmem:[#allocation2 + $0x10] sm:$0xff] %vm203, %v605
    %615 = vst.msk [vmem:[#allocation2 + $0x18] sm:$0xff] %vm203, %v606
    %616 = vst.msk [vmem:[#allocation2 + $0x20] sm:$0xff] %vm203, %v607
    %617 = vst.msk [vmem:[#allocation2 + $0x28] sm:$0xff] %vm203, %v608
    %618 = vst.msk [vmem:[#allocation2 + $0x30] sm:$0xff] %vm203, %v609
    %619 = vst.msk [vmem:[#allocation2 + $0x38] sm:$0xff] %vm203, %v610
    %620 = vst.msk [vmem:[#allocation2 + $0x40] sm:$0x3f] %vm219, %v611
    // Predicated region
    $region42: #{encoder_forward.12} parent=1 // pred_check
      _
    $region43: #{encoder_forward.12} parent=1 // pred_check_branch
      %622 = sbr.rel (0) target = $region45
    $region44: #{encoder_forward.12} parent=1 // pred_region
      _
    $region45: #{encoder_forward.12} parent=1 // pred_fallthru
      _
    // Predicated region
    $region46: #{encoder_forward.12} parent=1 // pred_check
      _
    $region47: #{encoder_forward.12} parent=1 // pred_check_branch
      %624 = sbr.rel (0) target = $region49
    $region48: #{encoder_forward.12} parent=1 // pred_region
      %s626 = ssub.s32 1152, 1152
      %627 = vsyncadd [#allocation3], %s626
      %s628 = sshll.u32 [#allocation2], 4
      %s629 = int_to_ptr.vmem [resolvable:$true] %s628
      %634 = dma.vmem_to_hbm [thread:$0]  %s629, 1152, %s11, [#allocation3], 128, 128, 8
    $region49: #{encoder_forward.12} parent=1 // pred_fallthru
      _
    // Predicated region
    $region50: #{encoder_forward.12} parent=1 // pred_check
      _
    $region51: #{encoder_forward.12} parent=1 // pred_check_branch
      %636 = sbr.rel (0) target = $region53
    $region52: #{encoder_forward.12} parent=1 // pred_region
      _
    $region53: #{encoder_forward.12} parent=1 // pred_fallthru
      _
    // Predicated region
    $region54: #{encoder_forward.12} parent=1 // pred_check
      _
    $region55: #{encoder_forward.12} parent=1 // pred_check_branch
      %638 = sbr.rel (0) target = $region57
    $region56: #{encoder_forward.12} parent=1 // pred_region
      %639 = dma.done [#allocation3], 1152
    $region57: #{encoder_forward.12} parent=1 // pred_fallthru
      _
    %640 = vsyncpa [#allocation3], 1

// kernel: encoder_forward.8
$region0: #{encoder_forward.8}
  #allocation0 [shape = 'u32[]', space=smem, size = 0x4, offset = 0x4, fixed_abs, tag = 'smem constant byte address 0x4 - core index']
  #allocation1 [shape = 'u32[144,128]{1,0:T(1,128)}', space=vmem, size = 0x12000, scoped, tag = 'internal scratch']
  %s0 = inlined_call_operand.vmem [shape: f32[2,160], index: 0, kind: input, shape index: {}]
  %s1 = inlined_call_operand.vmem [shape: f32[160,16], index: 1, kind: input, shape index: {}]
  %s2 = inlined_call_operand.vmem [shape: f32[1,16], index: 2, kind: input, shape index: {}]
  %s3 = inlined_call_operand.hbm [shape: f32[2,16], index: 3, kind: output, shape index: {}]
  %s4 = sld [smem:[#allocation0]]
  $region22: #{encoder_forward.8} parent=0
    _
  %s6 = ssub.s32 1, %s4
  %s7 = scalar_select 0, %s6, %s4
  $region1: #{encoder_forward.8} parent=0
    #allocation2 [shape = 'u8[1024]{0}', space=vmem, size = 0x400, scoped, tag = 'output window, operand 0, single buffered']
    #allocation3 [shape = 's32[1]{0}', space=sflag, size = 0x4, scoped, tag = 'scoped memory for encoder_forward.8']
    %8 = vsyncpa [#allocation3], 0
    // Predicated region
    $region2: #{encoder_forward.8} parent=1 // pred_check
      _
    $region3: #{encoder_forward.8} parent=1 // pred_check_branch
      %10 = sbr.rel (0) target = $region5
    $region4: #{encoder_forward.8} parent=1 // pred_region
      _
    $region5: #{encoder_forward.8} parent=1 // pred_fallthru
      _
    // Predicated region
    $region6: #{encoder_forward.8} parent=1 // pred_check
      _
    $region7: #{encoder_forward.8} parent=1 // pred_check_branch
      %12 = sbr.rel (0) target = $region9
    $region8: #{encoder_forward.8} parent=1 // pred_region
      _
    $region9: #{encoder_forward.8} parent=1 // pred_fallthru
      _
    // Predicated region
    $region10: #{encoder_forward.8} parent=1 // pred_check
      _
    $region11: #{encoder_forward.8} parent=1 // pred_check_branch
      %14 = sbr.rel (0) target = $region13
    $region12: #{encoder_forward.8} parent=1 // pred_region
      _
    $region13: #{encoder_forward.8} parent=1 // pred_fallthru
      _
    %v15 = vld [vmem:[%s0] sm:$0xf]
    %v16 = vld [vmem:[%s1] sm:$0xff]
    %v17 = vld [vmem:[%s1 + $0x8] sm:$0xff]
    %v18 = vld [vmem:[%s1 + $0x10] sm:$0xff]
    %v19 = vld [vmem:[%s1 + $0x18] sm:$0xff]
    %v20 = vld [vmem:[%s1 + $0x20] sm:$0xff]
    %v21 = vld [vmem:[%s1 + $0x28] sm:$0xff]
    %v22 = vld [vmem:[%s1 + $0x30] sm:$0xff]
    %v23 = vld [vmem:[%s1 + $0x38] sm:$0xff]
    %v24 = vld [vmem:[%s1 + $0x40] sm:$0xff]
    %v25 = vld [vmem:[%s1 + $0x48] sm:$0xff]
    %v26 = vld [vmem:[%s1 + $0x50] sm:$0xff]
    %v27 = vld [vmem:[%s1 + $0x58] sm:$0xff]
    %v28 = vld [vmem:[%s1 + $0x60] sm:$0xff]
    %v29 = vld [vmem:[%s1 + $0x68] sm:$0xff]
    %v30 = vld [vmem:[%s1 + $0x70] sm:$0xff]
    %v31 = vld [vmem:[%s1 + $0x78] sm:$0xff]
    %v32 = vld [vmem:[%s1 + $0x80] sm:$0xff]
    %v33 = vld [vmem:[%s1 + $0x88] sm:$0xff]
    %v34 = vld [vmem:[%s1 + $0x90] sm:$0xff]
    %v35 = vld [vmem:[%s1 + $0x98] sm:$0xff]
    %v36 = vld [vmem:[%s2] sm:$0x1]
    %v38 = vlaneseq
    %v39 = vshrl.u32 %v38, 7
    %v40 = vsub.s32 0, %v39
    %v41 = vrot.slane %v36, %v40
    %v45 = vunpack.c.l.s4 1983009808
    %v46 = vunpack.c.0.s8 %v45
    %v47 = vlaneseq
    %v48 = vshrl.u32 %v47, 7
    %v49 = vsub.s32 %v46, %v48
    %v50 = vrot.slane %v15, %v49
    %v51 = vcombine.high %v50, %v50
    %vm53 = vcmask 261120
    %v54 = vsel %vm53, %v51, 0
    %56 = vmatprep.subr.mxu0 0.0
    %57 = vmatpush1.msra.mxu0 %v16
    %58 = vmatprep.subr.mxu0 0.0
    %59 = vmatpush1.msra.mxu0 %v17
    %60 = vmatprep.subr.mxu0 0.0
    %61 = vmatpush1.msra.mxu0 %v18
    %62 = vmatprep.subr.mxu0 0.0
    %63 = vmatpush1.msra.mxu0 %v19
    %64 = vmatprep.subr.mxu0 0.0
    %65 = vmatpush1.msra.mxu0 %v20
    %66 = vmatprep.subr.mxu0 0.0
    %67 = vmatpush1.msra.mxu0 %v21
    %68 = vmatprep.subr.mxu0 0.0
    %69 = vmatpush1.msra.mxu0 %v22
    %70 = vmatprep.subr.mxu0 0.0
    %71 = vmatpush1.msra.mxu0 %v23
    %72 = vmatprep.subr.mxu0 0.0
    %73 = vmatpush1.msra.mxu0 %v24
    %74 = vmatprep.subr.mxu0 0.0
    %75 = vmatpush1.msra.mxu0 %v25
    %76 = vmatprep.subr.mxu0 0.0
    %77 = vmatpush1.msra.mxu0 %v26
    %78 = vmatprep.subr.mxu0 0.0
    %79 = vmatpush1.msra.mxu0 %v27
    %80 = vmatprep.subr.mxu0 0.0
    %81 = vmatpush1.msra.mxu0 %v28
    %82 = vmatprep.subr.mxu0 0.0
    %83 = vmatpush1.msra.mxu0 %v29
    %84 = vmatprep.subr.mxu0 0.0
    %85 = vmatpush1.msra.mxu0 %v30
    %86 = vmatprep.subr.mxu0 0.0
    %87 = vmatpush1.msra.mxu0 %v31
    %88 = vmatprep.subr.mxu0 0.0
    %89 = vmatpush1.msra.mxu0 %v32
    %90 = vmatprep.subr.mxu0 0.0
    %91 = vmatpush1.msra.mxu0 %v33
    %92 = vmatprep.subr.mxu0 0.0
    %93 = vmatpush1.msra.mxu0 %v34
    %94 = vmatprep.subr.mxu0 0.0
    %95 = vmatpush1.msra.mxu0 %v35
    %96 = vmatprep.subr.mxu0 0.0
    %97 = vmatpush1.msra.mxu0 0.0
    %98 = vmatprep.subr.mxu0 0.0
    %99 = vmatpush1.msra.mxu0 0.0
    %100 = vmatprep.subr.mxu0 0.0
    %101 = vmatpush1.msra.mxu0 0.0
    %102 = vmatprep.subr.mxu0 0.0
    %103 = vmatpush1.msra.mxu0 0.0
    %104 = vmatprep.subr.mxu0 0.0
    %105 = vmatpush1.msra.mxu0 0.0
    %106 = vmatprep.subr.mxu0 0.0
    %107 = vmatpush1.msra.mxu0 0.0
    %108 = vmatprep.subr.mxu0 0.0
    %109 = vmatpush1.msra.mxu0 0.0
    %110 = vmatprep.subr.mxu0 0.0
    %111 = vmatpush1.msra.mxu0 0.0
    %112 = vmatprep.subr.mxu0 0.0
    %113 = vmatpush1.msra.mxu0 0.0
    %114 = vmatprep.subr.mxu0 0.0
    %115 = vmatpush1.msra.mxu0 0.0
    %116 = vmatprep.subr.mxu0 0.0
    %117 = vmatpush1.msra.mxu0 0.0
    %118 = vmatprep.subr.mxu0 0.0
    %119 = vmatpush1.msra.mxu0 0.0
    %120 = vmatprep.mubr.f32.mxu0 %v54
    %121 = vmatmul.mubr.f32.gmra.mrb[0].mxu0 %v50
    %v122 = vpop.f32.mrb[0].mxu0
    %v123 = vadd.f32 %v41, %v122
    %v124 = vpop.f32.mrb[0].mxu0
    %125 = vdwg.mxu0
    %vm126 = vcmask 123904
    %v127 = vsel %vm126, %v123, -inf
    %128 = vmax.xlane.f32.xlu0 %v127
    %v129 = vpop.xlane.xlu0 %128
    %v130 = vsub.f32 %v123, %v129
    %v131 = vmul.f32 %v130, 1.442695
    %v132 = vpow.pop %v131
    %v133 = vsel %vm126, %v132, 0.0
    %134 = vadd.xlane.f32.xlu0 %v133
    %v135 = vpop.xlane.xlu0 %134
    %v136 = vrcp.pop %v135
    %v137 = vmul.f32 %v132, %v136
    %138 = vst.msk [vmem:[#allocation2] sm:$0x3] %vm126, %v137
    // Predicated region
    $region14: #{encoder_forward.8} parent=1 // pred_check
      _
    $region15: #{encoder_forward.8} parent=1 // pred_check_branch
      %140 = sbr.rel (0) target = $region17
    $region16: #{encoder_forward.8} parent=1 // pred_region
      %s142 = ssub.s32 32, 32
      %143 = vsyncadd [#allocation3], %s142
      %s145 = sshll.u32 [#allocation2], 4
      %s146 = int_to_ptr.vmem [resolvable:$true] %s145
      %148 = dma.vmem_to_hbm [thread:$0]  %s146, 32, %s3, [#allocation3]
    $region17: #{encoder_forward.8} parent=1 // pred_fallthru
      _
    // Predicated region
    $region18: #{encoder_forward.8} parent=1 // pred_check
      _
    $region19: #{encoder_forward.8} parent=1 // pred_check_branch
      %150 = sbr.rel (0) target = $region21
    $region20: #{encoder_forward.8} parent=1 // pred_region
      %151 = dma.done [#allocation3], 32
    $region21: #{encoder_forward.8} parent=1 // pred_fallthru
      _
    %152 = vsyncpa [#allocation3], 1

// kernel: encoder_forward.13
$region0: #{encoder_forward.13}
  #allocation0 [shape = 'u32[]', space=smem, size = 0x4, offset = 0x4, fixed_abs, tag = 'smem constant byte address 0x4 - core index']
  #allocation1 [shape = 'u32[144,128]{1,0:T(1,128)}', space=vmem, size = 0x12000, scoped, tag = 'internal scratch']
  %s0 = inlined_call_operand.vmem [shape: f32[2,280], index: 0, kind: input, shape index: {}]
  %s1 = inlined_call_operand.vmem [shape: f32[280,16], index: 1, kind: input, shape index: {}]
  %s2 = inlined_call_operand.vmem [shape: f32[2,160], index: 2, kind: input, shape index: {}]
  %s3 = inlined_call_operand.vmem [shape: f32[160,16], index: 3, kind: input, shape index: {}]
  %s4 = inlined_call_operand.vmem [shape: f32[1,16], index: 4, kind: input, shape index: {}]
  %s5 = inlined_call_operand.hbm [shape: f32[2,16], index: 5, kind: output, shape index: {}]
  %s6 = sld [smem:[#allocation0]]
  $region30: #{encoder_forward.13} parent=0
    _
  %s8 = ssub.s32 1, %s6
  %s9 = scalar_select 0, %s8, %s6
  $region1: #{encoder_forward.13} parent=0
    #allocation2 [shape = 'u8[1024]{0}', space=vmem, size = 0x400, scoped, tag = 'output window, operand 0, single buffered']
    #allocation3 [shape = 's32[1]{0}', space=sflag, size = 0x4, scoped, tag = 'scoped memory for encoder_forward.13']
    %10 = vsyncpa [#allocation3], 0
    // Predicated region
    $region2: #{encoder_forward.13} parent=1 // pred_check
      _
    $region3: #{encoder_forward.13} parent=1 // pred_check_branch
      %12 = sbr.rel (0) target = $region5
    $region4: #{encoder_forward.13} parent=1 // pred_region
      _
    $region5: #{encoder_forward.13} parent=1 // pred_fallthru
      _
    // Predicated region
    $region6: #{encoder_forward.13} parent=1 // pred_check
      _
    $region7: #{encoder_forward.13} parent=1 // pred_check_branch
      %14 = sbr.rel (0) target = $region9
    $region8: #{encoder_forward.13} parent=1 // pred_region
      _
    $region9: #{encoder_forward.13} parent=1 // pred_fallthru
      _
    // Predicated region
    $region10: #{encoder_forward.13} parent=1 // pred_check
      _
    $region11: #{encoder_forward.13} parent=1 // pred_check_branch
      %16 = sbr.rel (0) target = $region13
    $region12: #{encoder_forward.13} parent=1 // pred_region
      _
    $region13: #{encoder_forward.13} parent=1 // pred_fallthru
      _
    // Predicated region
    $region14: #{encoder_forward.13} parent=1 // pred_check
      _
    $region15: #{encoder_forward.13} parent=1 // pred_check_branch
      %18 = sbr.rel (0) target = $region17
    $region16: #{encoder_forward.13} parent=1 // pred_region
      _
    $region17: #{encoder_forward.13} parent=1 // pred_fallthru
      _
    // Predicated region
    $region18: #{encoder_forward.13} parent=1 // pred_check
      _
    $region19: #{encoder_forward.13} parent=1 // pred_check_branch
      %20 = sbr.rel (0) target = $region21
    $region20: #{encoder_forward.13} parent=1 // pred_region
      _
    $region21: #{encoder_forward.13} parent=1 // pred_fallthru
      _
    %v21 = vld [vmem:[%s0] sm:$0x3f]
    %v22 = vld [vmem:[%s1] sm:$0xff]
    %v23 = vld [vmem:[%s1 + $0x8] sm:$0xff]
    %v24 = vld [vmem:[%s1 + $0x10] sm:$0xff]
    %v25 = vld [vmem:[%s1 + $0x18] sm:$0xff]
    %v26 = vld [vmem:[%s1 + $0x20] sm:$0xff]
    %v27 = vld [vmem:[%s1 + $0x28] sm:$0xff]
    %v28 = vld [vmem:[%s1 + $0x30] sm:$0xff]
    %v29 = vld [vmem:[%s1 + $0x38] sm:$0xff]
    %v30 = vld [vmem:[%s1 + $0x40] sm:$0xff]
    %v31 = vld [vmem:[%s1 + $0x48] sm:$0xff]
    %v32 = vld [vmem:[%s1 + $0x50] sm:$0xff]
    %v33 = vld [vmem:[%s1 + $0x58] sm:$0xff]
    %v34 = vld [vmem:[%s1 + $0x60] sm:$0xff]
    %v35 = vld [vmem:[%s1 + $0x68] sm:$0xff]
    %v36 = vld [vmem:[%s1 + $0x70] sm:$0xff]
    %v37 = vld [vmem:[%s1 + $0x78] sm:$0xff]
    %v38 = vld [vmem:[%s1 + $0x80] sm:$0xff]
    %v39 = vld [vmem:[%s1 + $0x88] sm:$0xff]
    %v40 = vld [vmem:[%s1 + $0x90] sm:$0xff]
    %v41 = vld [vmem:[%s1 + $0x98] sm:$0xff]
    %v42 = vld [vmem:[%s1 + $0xa0] sm:$0xff]
    %v43 = vld [vmem:[%s1 + $0xa8] sm:$0xff]
    %v44 = vld [vmem:[%s1 + $0xb0] sm:$0xff]
    %v45 = vld [vmem:[%s1 + $0xb8] sm:$0xff]
    %v46 = vld [vmem:[%s1 + $0xc0] sm:$0xff]
    %v47 = vld [vmem:[%s1 + $0xc8] sm:$0xff]
    %v48 = vld [vmem:[%s1 + $0xd0] sm:$0xff]
    %v49 = vld [vmem:[%s1 + $0xd8] sm:$0xff]
    %v50 = vld [vmem:[%s1 + $0xe0] sm:$0xff]
    %v51 = vld [vmem:[%s1 + $0xe8] sm:$0xff]
    %v52 = vld [vmem:[%s1 + $0xf0] sm:$0xff]
    %v53 = vld [vmem:[%s1 + $0xf8] sm:$0xff]
    %v54 = vld [vmem:[%s1 + $0x100] sm:$0xff]
    %v55 = vld [vmem:[%s1 + $0x108] sm:$0xff]
    %v56 = vld [vmem:[%s1 + $0x110] sm:$0xff]
    %v57 = vld [vmem:[%s2] sm:$0xf]
    %v58 = vld [vmem:[%s3] sm:$0xff]
    %v59 = vld [vmem:[%s3 + $0x8] sm:$0xff]
    %v60 = vld [vmem:[%s3 + $0x10] sm:$0xff]
    %v61 = vld [vmem:[%s3 + $0x18] sm:$0xff]
    %v62 = vld [vmem:[%s3 + $0x20] sm:$0xff]
    %v63 = vld [vmem:[%s3 + $0x28] sm:$0xff]
    %v64 = vld [vmem:[%s3 + $0x30] sm:$0xff]
    %v65 = vld [vmem:[%s3 + $0x38] sm:$0xff]
    %v66 = vld [vmem:[%s3 + $0x40] sm:$0xff]
    %v67 = vld [vmem:[%s3 + $0x48] sm:$0xff]
    %v68 = vld [vmem:[%s3 + $0x50] sm:$0xff]
    %v69 = vld [vmem:[%s3 + $0x58] sm:$0xff]
    %v70 = vld [vmem:[%s3 + $0x60] sm:$0xff]
    %v71 = vld [vmem:[%s3 + $0x68] sm:$0xff]
    %v72 = vld [vmem:[%s3 + $0x70] sm:$0xff]
    %v73 = vld [vmem:[%s3 + $0x78] sm:$0xff]
    %v74 = vld [vmem:[%s3 + $0x80] sm:$0xff]
    %v75 = vld [vmem:[%s3 + $0x88] sm:$0xff]
    %v76 = vld [vmem:[%s3 + $0x90] sm:$0xff]
    %v77 = vld [vmem:[%s3 + $0x98] sm:$0xff]
    %v80 = vunpack.c.l.s4 1983009808
    %v81 = vunpack.c.0.s8 %v80
    %v82 = vlaneseq
    %v83 = vshrl.u32 %v82, 7
    %v84 = vsub.s32 %v81, %v83
    %v85 = vrot.slane %v57, %v84
    %v86 = vcombine.high %v85, %v85
    %vm88 = vcmask 261120
    %v89 = vsel %vm88, %v86, 0
    %91 = vmatprep.subr.mxu0 0.0
    %92 = vmatpush1.msra.mxu0 %v58
    %93 = vmatprep.subr.mxu0 0.0
    %94 = vmatpush1.msra.mxu0 %v59
    %95 = vmatprep.subr.mxu0 0.0
    %96 = vmatpush1.msra.mxu0 %v60
    %97 = vmatprep.subr.mxu0 0.0
    %98 = vmatpush1.msra.mxu0 %v61
    %99 = vmatprep.subr.mxu0 0.0
    %100 = vmatpush1.msra.mxu0 %v62
    %101 = vmatprep.subr.mxu0 0.0
    %102 = vmatpush1.msra.mxu0 %v63
    %103 = vmatprep.subr.mxu0 0.0
    %104 = vmatpush1.msra.mxu0 %v64
    %105 = vmatprep.subr.mxu0 0.0
    %106 = vmatpush1.msra.mxu0 %v65
    %107 = vmatprep.subr.mxu0 0.0
    %108 = vmatpush1.msra.mxu0 %v66
    %109 = vmatprep.subr.mxu0 0.0
    %110 = vmatpush1.msra.mxu0 %v67
    %111 = vmatprep.subr.mxu0 0.0
    %112 = vmatpush1.msra.mxu0 %v68
    %113 = vmatprep.subr.mxu0 0.0
    %114 = vmatpush1.msra.mxu0 %v69
    %115 = vmatprep.subr.mxu0 0.0
    %116 = vmatpush1.msra.mxu0 %v70
    %117 = vmatprep.subr.mxu0 0.0
    %118 = vmatpush1.msra.mxu0 %v71
    %119 = vmatprep.subr.mxu0 0.0
    %120 = vmatpush1.msra.mxu0 %v72
    %121 = vmatprep.subr.mxu0 0.0
    %122 = vmatpush1.msra.mxu0 %v73
    %123 = vmatprep.subr.mxu0 0.0
    %124 = vmatpush1.msra.mxu0 %v74
    %125 = vmatprep.subr.mxu0 0.0
    %126 = vmatpush1.msra.mxu0 %v75
    %127 = vmatprep.subr.mxu0 0.0
    %128 = vmatpush1.msra.mxu0 %v76
    %129 = vmatprep.subr.mxu0 0.0
    %130 = vmatpush1.msra.mxu0 %v77
    %131 = vmatprep.subr.mxu0 0.0
    %132 = vmatpush1.msra.mxu0 0.0
    %133 = vmatprep.subr.mxu0 0.0
    %134 = vmatpush1.msra.mxu0 0.0
    %135 = vmatprep.subr.mxu0 0.0
    %136 = vmatpush1.msra.mxu0 0.0
    %137 = vmatprep.subr.mxu0 0.0
    %138 = vmatpush1.msra.mxu0 0.0
    %139 = vmatprep.subr.mxu0 0.0
    %140 = vmatpush1.msra.mxu0 0.0
    %141 = vmatprep.subr.mxu0 0.0
    %142 = vmatpush1.msra.mxu0 0.0
    %143 = vmatprep.subr.mxu0 0.0
    %144 = vmatpush1.msra.mxu0 0.0
    %145 = vmatprep.subr.mxu0 0.0
    %146 = vmatpush1.msra.mxu0 0.0
    %147 = vmatprep.subr.mxu0 0.0
    %148 = vmatpush1.msra.mxu0 0.0
    %149 = vmatprep.subr.mxu0 0.0
    %150 = vmatpush1.msra.mxu0 0.0
    %151 = vmatprep.subr.mxu0 0.0
    %152 = vmatpush1.msra.mxu0 0.0
    %153 = vmatprep.subr.mxu0 0.0
    %154 = vmatpush1.msra.mxu0 0.0
    %155 = vmatprep.mubr.f32.mxu0 %v89
    %156 = vmatmul.mubr.f32.gmra.mrb[0].mxu0 %v85
    %v157 = vpop.f32.mrb[0].mxu0
    %v158 = vadd.f32 0.0, %v157
    %v159 = vpop.f32.mrb[0].mxu0
    %160 = vdwg.mxu0
    %v162 = vcombine.high %v21, %v21
    %v164 = vunpack.c.l.s4 1983009808
    %v165 = vunpack.c.0.s8 %v164
    %v166 = vlaneseq
    %v167 = vshrl.u32 %v166, 7
    %v168 = vsub.s32 %v165, %v167
    %v169 = vrot.slane %v21, %v168
    %v171 = vunpack.c.l.s4 1983009808
    %v172 = vunpack.c.0.s8 %v171
    %v173 = vlaneseq
    %v174 = vshrl.u32 %v173, 7
    %v175 = vsub.s32 %v172, %v174
    %v176 = vrot.slane %v162, %v175
    %v177 = vcombine.high %v169, %v169
    %vm180 = vcmask 195584
    %v181 = vsel %vm180, %v176, 0
    %183 = vmatprep.subr.mxu0 0.0
    %184 = vmatpush1.msra.mxu0 %v22
    %185 = vmatprep.subr.mxu0 0.0
    %186 = vmatpush1.msra.mxu0 %v23
    %187 = vmatprep.subr.mxu0 0.0
    %188 = vmatpush1.msra.mxu0 %v24
    %189 = vmatprep.subr.mxu0 0.0
    %190 = vmatpush1.msra.mxu0 %v25
    %191 = vmatprep.subr.mxu0 0.0
    %192 = vmatpush1.msra.mxu0 %v26
    %193 = vmatprep.subr.mxu0 0.0
    %194 = vmatpush1.msra.mxu0 %v27
    %195 = vmatprep.subr.mxu0 0.0
    %196 = vmatpush1.msra.mxu0 %v28
    %197 = vmatprep.subr.mxu0 0.0
    %198 = vmatpush1.msra.mxu0 %v29
    %199 = vmatprep.subr.mxu0 0.0
    %200 = vmatpush1.msra.mxu0 %v30
    %201 = vmatprep.subr.mxu0 0.0
    %202 = vmatpush1.msra.mxu0 %v31
    %203 = vmatprep.subr.mxu0 0.0
    %204 = vmatpush1.msra.mxu0 %v32
    %205 = vmatprep.subr.mxu0 0.0
    %206 = vmatpush1.msra.mxu0 %v33
    %207 = vmatprep.subr.mxu0 0.0
    %208 = vmatpush1.msra.mxu0 %v34
    %209 = vmatprep.subr.mxu0 0.0
    %210 = vmatpush1.msra.mxu0 %v35
    %211 = vmatprep.subr.mxu0 0.0
    %212 = vmatpush1.msra.mxu0 %v36
    %213 = vmatprep.subr.mxu0 0.0
    %214 = vmatpush1.msra.mxu0 %v37
    %215 = vmatprep.subr.mxu0 0.0
    %216 = vmatpush1.msra.mxu0 %v38
    %217 = vmatprep.subr.mxu0 0.0
    %218 = vmatpush1.msra.mxu0 %v39
    %219 = vmatprep.subr.mxu0 0.0
    %220 = vmatpush1.msra.mxu0 %v40
    %221 = vmatprep.subr.mxu0 0.0
    %222 = vmatpush1.msra.mxu0 %v41
    %223 = vmatprep.subr.mxu0 0.0
    %224 = vmatpush1.msra.mxu0 %v42
    %225 = vmatprep.subr.mxu0 0.0
    %226 = vmatpush1.msra.mxu0 %v43
    %227 = vmatprep.subr.mxu0 0.0
    %228 = vmatpush1.msra.mxu0 %v44
    %229 = vmatprep.subr.mxu0 0.0
    %230 = vmatpush1.msra.mxu0 %v45
    %231 = vmatprep.subr.mxu0 0.0
    %232 = vmatpush1.msra.mxu0 %v46
    %233 = vmatprep.subr.mxu0 0.0
    %234 = vmatpush1.msra.mxu0 %v47
    %235 = vmatprep.subr.mxu0 0.0
    %236 = vmatpush1.msra.mxu0 %v48
    %237 = vmatprep.subr.mxu0 0.0
    %238 = vmatpush1.msra.mxu0 %v49
    %239 = vmatprep.subr.mxu0 0.0
    %240 = vmatpush1.msra.mxu0 %v50
    %241 = vmatprep.subr.mxu0 0.0
    %242 = vmatpush1.msra.mxu0 %v51
    %243 = vmatprep.subr.mxu0 0.0
    %244 = vmatpush1.msra.mxu0 %v52
    %245 = vmatprep.subr.mxu0 0.0
    %246 = vmatpush1.msra.mxu0 %v53
    %247 = vmatprep.mubr.f32.mxu0 %v177
    %248 = vmatmul.mubr.f32.gmra.mrb[0].mxu0 %v169
    %v249 = vpop.f32.mrb[0].mxu0
    %v250 = vadd.f32 %v158, %v249
    %v251 = vpop.f32.mrb[0].mxu0
    %252 = vdwg.mxu0
    %253 = vmatprep.subr.mxu0 0.0
    %254 = vmatpush1.msra.mxu0 %v54
    %255 = vmatprep.subr.mxu0 0.0
    %256 = vmatpush1.msra.mxu0 %v55
    %257 = vmatprep.subr.mxu0 0.0
    %258 = vmatpush1.msra.mxu0 %v56
    %259 = vmatprep.subr.mxu0 0.0
    %260 = vmatpush1.msra.mxu0 0.0
    %261 = vmatprep.subr.mxu0 0.0
    %262 = vmatpush1.msra.mxu0 0.0
    %263 = vmatprep.subr.mxu0 0.0
    %264 = vmatpush1.msra.mxu0 0.0
    %265 = vmatprep.subr.mxu0 0.0
    %266 = vmatpush1.msra.mxu0 0.0
    %267 = vmatprep.subr.mxu0 0.0
    %268 = vmatpush1.msra.mxu0 0.0
    %269 = vmatprep.subr.mxu0 0.0
    %270 = vmatpush1.msra.mxu0 0.0
    %271 = vmatprep.subr.mxu0 0.0
    %272 = vmatpush1.msra.mxu0 0.0
    %273 = vmatprep.subr.mxu0 0.0
    %274 = vmatpush1.msra.mxu0 0.0
    %275 = vmatprep.subr.mxu0 0.0
    %276 = vmatpush1.msra.mxu0 0.0
    %277 = vmatprep.subr.mxu0 0.0
    %278 = vmatpush1.msra.mxu0 0.0
    %279 = vmatprep.subr.mxu0 0.0
    %280 = vmatpush1.msra.mxu0 0.0
    %281 = vmatprep.subr.mxu0 0.0
    %282 = vmatpush1.msra.mxu0 0.0
    %283 = vmatprep.subr.mxu0 0.0
    %284 = vmatpush1.msra.mxu0 0.0
    %285 = vmatprep.subr.mxu0 0.0
    %286 = vmatpush1.msra.mxu0 0.0
    %287 = vmatprep.subr.mxu0 0.0
    %288 = vmatpush1.msra.mxu0 0.0
    %289 = vmatprep.subr.mxu0 0.0
    %290 = vmatpush1.msra.mxu0 0.0
    %291 = vmatprep.subr.mxu0 0.0
    %292 = vmatpush1.msra.mxu0 0.0
    %293 = vmatprep.subr.mxu0 0.0
    %294 = vmatpush1.msra.mxu0 0.0
    %295 = vmatprep.subr.mxu0 0.0
    %296 = vmatpush1.msra.mxu0 0.0
    %297 = vmatprep.subr.mxu0 0.0
    %298 = vmatpush1.msra.mxu0 0.0
    %299 = vmatprep.subr.mxu0 0.0
    %300 = vmatpush1.msra.mxu0 0.0
    %301 = vmatprep.subr.mxu0 0.0
    %302 = vmatpush1.msra.mxu0 0.0
    %303 = vmatprep.subr.mxu0 0.0
    %304 = vmatpush1.msra.mxu0 0.0
    %305 = vmatprep.subr.mxu0 0.0
    %306 = vmatpush1.msra.mxu0 0.0
    %307 = vmatprep.subr.mxu0 0.0
    %308 = vmatpush1.msra.mxu0 0.0
    %309 = vmatprep.subr.mxu0 0.0
    %310 = vmatpush1.msra.mxu0 0.0
    %311 = vmatprep.subr.mxu0 0.0
    %312 = vmatpush1.msra.mxu0 0.0
    %313 = vmatprep.subr.mxu0 0.0
    %314 = vmatpush1.msra.mxu0 0.0
    %315 = vmatprep.subr.mxu0 0.0
    %316 = vmatpush1.msra.mxu0 0.0
    %317 = vmatprep.mubr.f32.mxu0 0.0
    %318 = vmatmul.mubr.f32.gmra.mrb[0].mxu0 %v181
    %v319 = vpop.f32.mrb[0].mxu0
    %v320 = vadd.f32 %v250, %v319
    %v321 = vpop.f32.mrb[0].mxu0
    %322 = vdwg.mxu0
    %v323 = vld [vmem:[%s4] sm:$0x1]
    %v325 = vlaneseq
    %v326 = vshrl.u32 %v325, 7
    %v327 = vsub.s32 0, %v326
    %v328 = vrot.slane %v323, %v327
    %v330 = vadd.f32 %v320, %v328
    %vm331 = vcmask 123904
    %v332 = vsel %vm331, %v330, -inf
    %333 = vmax.xlane.f32.xlu0 %v332
    %v334 = vpop.xlane.xlu0 %333
    %v335 = vsub.f32 %v330, %v334
    %v336 = vmul.f32 %v335, 1.442695
    %v337 = vpow.pop %v336
    %v338 = vsel %vm331, %v337, 0.0
    %339 = vadd.xlane.f32.xlu0 %v338
    %v340 = vpop.xlane.xlu0 %339
    %v341 = vrcp.pop %v340
    %v342 = vmul.f32 %v337, %v341
    %343 = vst.msk [vmem:[#allocation2] sm:$0x3] %vm331, %v342
    // Predicated region
    $region22: #{encoder_forward.13} parent=1 // pred_check
      _
    $region23: #{encoder_forward.13} parent=1 // pred_check_branch
      %345 = sbr.rel (0) target = $region25
    $region24: #{encoder_forward.13} parent=1 // pred_region
      %s347 = ssub.s32 32, 32
      %348 = vsyncadd [#allocation3], %s347
      %s350 = sshll.u32 [#allocation2], 4
      %s351 = int_to_ptr.vmem [resolvable:$true] %s350
      %353 = dma.vmem_to_hbm [thread:$0]  %s351, 32, %s5, [#allocation3]
    $region25: #{encoder_forward.13} parent=1 // pred_fallthru
      _
    // Predicated region
    $region26: #{encoder_forward.13} parent=1 // pred_check
      _
    $region27: #{encoder_forward.13} parent=1 // pred_check_branch
      %355 = sbr.rel (0) target = $region29
    $region28: #{encoder_forward.13} parent=1 // pred_region
      %356 = dma.done [#allocation3], 32
    $region29: #{encoder_forward.13} parent=1 // pred_fallthru
      _
    %357 = vsyncpa [#allocation3], 1

// kernel: encoder_forward.7
$region0: #{encoder_forward.7}
  #allocation0 [shape = 'u32[]', space=smem, size = 0x4, offset = 0x4, fixed_abs, tag = 'smem constant byte address 0x4 - core index']
  #allocation1 [shape = 'u32[144,128]{1,0:T(1,128)}', space=vmem, size = 0x12000, scoped, tag = 'internal scratch']
  %s0 = inlined_call_operand.vmem [shape: f32[20,6], index: 0, kind: input, shape index: {}]
  %s1 = inlined_call_operand.vmem [shape: f32[6,64], index: 1, kind: input, shape index: {}]
  %s2 = inlined_call_operand.vmem [shape: f32[16,64], index: 2, kind: input, shape index: {}]
  %s3 = inlined_call_operand.vmem [shape: f32[1,64], index: 3, kind: input, shape index: {}]
  %s4 = inlined_call_operand.vmem [shape: f32[20,16], index: 4, kind: output, shape index: {}]
  %s5 = sld [smem:[#allocation0]]
  $region26: #{encoder_forward.7} parent=0
    _
  %s7 = ssub.s32 1, %s5
  %s8 = scalar_select 0, %s7, %s5
  // Predicated region
  $region2: #{encoder_forward.7} parent=0 // pred_check
    _
  $region3: #{encoder_forward.7} parent=0 // pred_check_branch
    %10 = sbr.rel (0) target = $region5
  $region4: #{encoder_forward.7} parent=0 // pred_region
    _
  $region5: #{encoder_forward.7} parent=0 // pred_fallthru
    _
  // Predicated region
  $region6: #{encoder_forward.7} parent=0 // pred_check
    _
  $region7: #{encoder_forward.7} parent=0 // pred_check_branch
    %12 = sbr.rel (0) target = $region9
  $region8: #{encoder_forward.7} parent=0 // pred_region
    _
  $region9: #{encoder_forward.7} parent=0 // pred_fallthru
    _
  // Predicated region
  $region10: #{encoder_forward.7} parent=0 // pred_check
    _
  $region11: #{encoder_forward.7} parent=0 // pred_check_branch
    %14 = sbr.rel (0) target = $region13
  $region12: #{encoder_forward.7} parent=0 // pred_region
    _
  $region13: #{encoder_forward.7} parent=0 // pred_fallthru
    _
  // Predicated region
  $region14: #{encoder_forward.7} parent=0 // pred_check
    _
  $region15: #{encoder_forward.7} parent=0 // pred_check_branch
    %16 = sbr.rel (0) target = $region17
  $region16: #{encoder_forward.7} parent=0 // pred_region
    _
  $region17: #{encoder_forward.7} parent=0 // pred_fallthru
    _
  %v17 = vld [vmem:[%s0] sm:$0xff]
  %v18 = vld [vmem:[%s0 + $0x8] sm:$0xff]
  %v19 = vld [vmem:[%s0 + $0x10] sm:$0xf]
  %v20 = vld [vmem:[%s1] sm:$0x3f]
  %v21 = vld [vmem:[%s3] sm:$0x1]
  %v23 = vlaneseq
  %v24 = vshrl.u32 %v23, 7
  %v25 = vsub.s32 0, %v24
  %v26 = vrot.slane %v21, %v25
  %vm28 = vcmask 48128
  %v30 = vsel %vm28, %v17, 0
  %v33 = vsel %vm28, %v18, 0
  %v36 = vsel %vm28, %v19, 0
  %vm38 = vcmask 1045504
  %v40 = vsel %vm38, %v20, 0
  %42 = vmatprep.subr.mxu0 0.0
  %43 = vmatpush1.msra.mxu0 %v40
  %44 = vmatprep.subr.mxu0 0.0
  %45 = vmatpush1.msra.mxu0 0.0
  %46 = vmatprep.subr.mxu0 0.0
  %47 = vmatpush1.msra.mxu0 0.0
  %48 = vmatprep.subr.mxu0 0.0
  %49 = vmatpush1.msra.mxu0 0.0
  %50 = vmatprep.subr.mxu0 0.0
  %51 = vmatpush1.msra.mxu0 0.0
  %52 = vmatprep.subr.mxu0 0.0
  %53 = vmatpush1.msra.mxu0 0.0
  %54 = vmatprep.subr.mxu0 0.0
  %55 = vmatpush1.msra.mxu0 0.0
  %56 = vmatprep.subr.mxu0 0.0
  %57 = vmatpush1.msra.mxu0 0.0
  %58 = vmatprep.subr.mxu0 0.0
  %59 = vmatpush1.msra.mxu0 0.0
  %60 = vmatprep.subr.mxu0 0.0
  %61 = vmatpush1.msra.mxu0 0.0
  %62 = vmatprep.subr.mxu0 0.0
  %63 = vmatpush1.msra.mxu0 0.0
  %64 = vmatprep.subr.mxu0 0.0
  %65 = vmatpush1.msra.mxu0 0.0
  %66 = vmatprep.subr.mxu0 0.0
  %67 = vmatpush1.msra.mxu0 0.0
  %68 = vmatprep.subr.mxu0 0.0
  %69 = vmatpush1.msra.mxu0 0.0
  %70 = vmatprep.subr.mxu0 0.0
  %71 = vmatpush1.msra.mxu0 0.0
  %72 = vmatprep.subr.mxu0 0.0
  %73 = vmatpush1.msra.mxu0 0.0
  %74 = vmatprep.subr.mxu0 0.0
  %75 = vmatpush1.msra.mxu0 0.0
  %76 = vmatprep.subr.mxu0 0.0
  %77 = vmatpush1.msra.mxu0 0.0
  %78 = vmatprep.subr.mxu0 0.0
  %79 = vmatpush1.msra.mxu0 0.0
  %80 = vmatprep.subr.mxu0 0.0
  %81 = vmatpush1.msra.mxu0 0.0
  %82 = vmatprep.subr.mxu0 0.0
  %83 = vmatpush1.msra.mxu0 0.0
  %84 = vmatprep.subr.mxu0 0.0
  %85 = vmatpush1.msra.mxu0 0.0
  %86 = vmatprep.subr.mxu0 0.0
  %87 = vmatpush1.msra.mxu0 0.0
  %88 = vmatprep.subr.mxu0 0.0
  %89 = vmatpush1.msra.mxu0 0.0
  %90 = vmatprep.subr.mxu0 0.0
  %91 = vmatpush1.msra.mxu0 0.0
  %92 = vmatprep.subr.mxu0 0.0
  %93 = vmatpush1.msra.mxu0 0.0
  %94 = vmatprep.subr.mxu0 0.0
  %95 = vmatpush1.msra.mxu0 0.0
  %96 = vmatprep.subr.mxu0 0.0
  %97 = vmatpush1.msra.mxu0 0.0
  %98 = vmatprep.subr.mxu0 0.0
  %99 = vmatpush1.msra.mxu0 0.0
  %100 = vmatprep.subr.mxu0 0.0
  %101 = vmatpush1.msra.mxu0 0.0
  %102 = vmatprep.subr.mxu0 0.0
  %103 = vmatpush1.msra.mxu0 0.0
  %104 = vmatprep.subr.mxu0 0.0
  %105 = vmatpush1.msra.mxu0 0.0
  %106 = vmatprep.mubr.f32.mxu0 0.0
  %107 = vmatmul.mubr.f32.gmra.mrb[0].mxu0 %v30
  %v108 = vpop.f32.mrb[0].mxu0
  %v109 = vadd.f32 %v26, %v108
  %v110 = vpop.f32.mrb[0].mxu0
  %111 = vmatprep.mubr.f32.mxu0 0.0
  %112 = vmatmul.mubr.f32.gmra.mrb[0].mxu0 %v33
  %v113 = vpop.f32.mrb[0].mxu0
  %v114 = vadd.f32 %v26, %v113
  %v115 = vpop.f32.mrb[0].mxu0
  %116 = vmatprep.mubr.f32.mxu0 0.0
  %117 = vmatmul.mubr.f32.gmra.mrb[0].mxu0 %v36
  %v118 = vpop.f32.mrb[0].mxu0
  %v119 = vadd.f32 %v26, %v118
  %v120 = vpop.f32.mrb[0].mxu0
  %121 = vdwg.mxu0
  %v122 = vld [vmem:[%s2] sm:$0xff]
  %v123 = vld [vmem:[%s2 + $0x8] sm:$0xff]
  %vm124 = vcmask 130048
  %v126 = vsel %vm124, 0.0, 0
  %128 = vmatprep.subr.mxu0 0.0
  %129 = vmatpush1.msra.mxu0 %v122
  %130 = vmatprep.subr.mxu0 0.0
  %131 = vmatpush1.msra.mxu0 %v123
  %132 = vmatprep.subr.mxu0 0.0
  %133 = vmatpush1.msra.mxu0 0.0
  %134 = vmatprep.subr.mxu0 0.0
  %135 = vmatpush1.msra.mxu0 0.0
  %136 = vmatprep.subr.mxu0 0.0
  %137 = vmatpush1.msra.mxu0 0.0
  %138 = vmatprep.subr.mxu0 0.0
  %139 = vmatpush1.msra.mxu0 0.0
  %140 = vmatprep.subr.mxu0 0.0
  %141 = vmatpush1.msra.mxu0 0.0
  %142 = vmatprep.subr.mxu0 0.0
  %143 = vmatpush1.msra.mxu0 0.0
  %144 = vmatprep.subr.mxu0 0.0
  %145 = vmatpush1.msra.mxu0 0.0
  %146 = vmatprep.subr.mxu0 0.0
  %147 = vmatpush1.msra.mxu0 0.0
  %148 = vmatprep.subr.mxu0 0.0
  %149 = vmatpush1.msra.mxu0 0.0
  %150 = vmatprep.subr.mxu0 0.0
  %151 = vmatpush1.msra.mxu0 0.0
  %152 = vmatprep.subr.mxu0 0.0
  %153 = vmatpush1.msra.mxu0 0.0
  %154 = vmatprep.subr.mxu0 0.0
  %155 = vmatpush1.msra.mxu0 0.0
  %156 = vmatprep.subr.mxu0 0.0
  %157 = vmatpush1.msra.mxu0 0.0
  %158 = vmatprep.subr.mxu0 0.0
  %159 = vmatpush1.msra.mxu0 0.0
  %160 = vmatprep.subr.mxu0 0.0
  %161 = vmatpush1.msra.mxu0 0.0
  %162 = vmatprep.subr.mxu0 0.0
  %163 = vmatpush1.msra.mxu0 0.0
  %164 = vmatprep.subr.mxu0 0.0
  %165 = vmatpush1.msra.mxu0 0.0
  %166 = vmatprep.subr.mxu0 0.0
  %167 = vmatpush1.msra.mxu0 0.0
  %168 = vmatprep.subr.mxu0 0.0
  %169 = vmatpush1.msra.mxu0 0.0
  %170 = vmatprep.subr.mxu0 0.0
  %171 = vmatpush1.msra.mxu0 0.0
  %172 = vmatprep.subr.mxu0 0.0
  %173 = vmatpush1.msra.mxu0 0.0
  %174 = vmatprep.subr.mxu0 0.0
  %175 = vmatpush1.msra.mxu0 0.0
  %176 = vmatprep.subr.mxu0 0.0
  %177 = vmatpush1.msra.mxu0 0.0
  %178 = vmatprep.subr.mxu0 0.0
  %179 = vmatpush1.msra.mxu0 0.0
  %180 = vmatprep.subr.mxu0 0.0
  %181 = vmatpush1.msra.mxu0 0.0
  %182 = vmatprep.subr.mxu0 0.0
  %183 = vmatpush1.msra.mxu0 0.0
  %184 = vmatprep.subr.mxu0 0.0
  %185 = vmatpush1.msra.mxu0 0.0
  %186 = vmatprep.subr.mxu0 0.0
  %187 = vmatpush1.msra.mxu0 0.0
  %188 = vmatprep.subr.mxu0 0.0
  %189 = vmatpush1.msra.mxu0 0.0
  %190 = vmatprep.subr.mxu0 0.0
  %191 = vmatpush1.msra.mxu0 0.0
  %192 = vmatprep.mubr.f32.mxu0 0.0
  %193 = vmatmul.mubr.f32.gmra.mrb[0].mxu0 %v126
  %v194 = vpop.f32.mrb[0].mxu0
  %v195 = vadd.f32 0.0, %v194
  %v196 = vpop.f32.mrb[0].mxu0
  %197 = vdwg.mxu0
  %v198 = vadd.f32 %v109, %v195
  %v199 = vxor.u32 %v198, 2147483648
  %v200 = vmul.f32 %v199, 1.442695
  %v201 = vpow.pop %v200
  %v202 = vadd.f32 %v201, 1.0
  %v203 = vrcp.pop %v202
  %v204 = vmul.f32 1.0, %v203
  %v205 = vtanh.pop %v198
  %v206 = vmul.f32 %v204, 0.0
  %208 = vrot.lane.b32.xlu0 %v205, 96
  %v209 = vpop.permute.xlu0 %208
  %v211 = vmul.f32 %v204, %v209
  %213 = vrot.lane.b32.xlu0 %v211, 16
  %v214 = vpop.permute.xlu0 %213
  %v216 = vadd.f32 %v206, %v214
  %v217 = vtanh.pop %v216
  %219 = vrot.lane.b32.xlu0 %v217, 32
  %v220 = vpop.permute.xlu0 %219
  %v222 = vmul.f32 %v204, %v220
  %224 = vrot.lane.b32.xlu0 %v222, 80
  %v225 = vpop.permute.xlu0 %224
  %vm227 = vcmask 123904
  %228 = vst.msk [vmem:[%s4] sm:$0x3] %vm227, %v225
  %v229 = vsel %vm124, %v225, 0
  %231 = vmatprep.subr.mxu0 0.0
  %232 = vmatpush1.msra.mxu0 %v122
  %233 = vmatprep.subr.mxu0 0.0
  %234 = vmatpush1.msra.mxu0 %v123
  %235 = vmatprep.subr.mxu0 0.0
  %236 = vmatpush1.msra.mxu0 0.0
  %237 = vmatprep.subr.mxu0 0.0
  %238 = vmatpush1.msra.mxu0 0.0
  %239 = vmatprep.subr.mxu0 0.0
  %240 = vmatpush1.msra.mxu0 0.0
  %241 = vmatprep.subr.mxu0 0.0
  %242 = vmatpush1.msra.mxu0 0.0
  %243 = vmatprep.subr.mxu0 0.0
  %244 = vmatpush1.msra.mxu0 0.0
  %245 = vmatprep.subr.mxu0 0.0
  %246 = vmatpush1.msra.mxu0 0.0
  %247 = vmatprep.subr.mxu0 0.0
  %248 = vmatpush1.msra.mxu0 0.0
  %249 = vmatprep.subr.mxu0 0.0
  %250 = vmatpush1.msra.mxu0 0.0
  %251 = vmatprep.subr.mxu0 0.0
  %252 = vmatpush1.msra.mxu0 0.0
  %253 = vmatprep.subr.mxu0 0.0
  %254 = vmatpush1.msra.mxu0 0.0
  %255 = vmatprep.subr.mxu0 0.0
  %256 = vmatpush1.msra.mxu0 0.0
  %257 = vmatprep.subr.mxu0 0.0
  %258 = vmatpush1.msra.mxu0 0.0
  %259 = vmatprep.subr.mxu0 0.0
  %260 = vmatpush1.msra.mxu0 0.0
  %261 = vmatprep.subr.mxu0 0.0
  %262 = vmatpush1.msra.mxu0 0.0
  %263 = vmatprep.subr.mxu0 0.0
  %264 = vmatpush1.msra.mxu0 0.0
  %265 = vmatprep.subr.mxu0 0.0
  %266 = vmatpush1.msra.mxu0 0.0
  %267 = vmatprep.subr.mxu0 0.0
  %268 = vmatpush1.msra.mxu0 0.0
  %269 = vmatprep.subr.mxu0 0.0
  %270 = vmatpush1.msra.mxu0 0.0
  %271 = vmatprep.subr.mxu0 0.0
  %272 = vmatpush1.msra.mxu0 0.0
  %273 = vmatprep.subr.mxu0 0.0
  %274 = vmatpush1.msra.mxu0 0.0
  %275 = vmatprep.subr.mxu0 0.0
  %276 = vmatpush1.msra.mxu0 0.0
  %277 = vmatprep.subr.mxu0 0.0
  %278 = vmatpush1.msra.mxu0 0.0
  %279 = vmatprep.subr.mxu0 0.0
  %280 = vmatpush1.msra.mxu0 0.0
  %281 = vmatprep.subr.mxu0 0.0
  %282 = vmatpush1.msra.mxu0 0.0
  %283 = vmatprep.subr.mxu0 0.0
  %284 = vmatpush1.msra.mxu0 0.0
  %285 = vmatprep.subr.mxu0 0.0
  %286 = vmatpush1.msra.mxu0 0.0
  %287 = vmatprep.subr.mxu0 0.0
  %288 = vmatpush1.msra.mxu0 0.0
  %289 = vmatprep.subr.mxu0 0.0
  %290 = vmatpush1.msra.mxu0 0.0
  %291 = vmatprep.subr.mxu0 0.0
  %292 = vmatpush1.msra.mxu0 0.0
  %293 = vmatprep.subr.mxu0 0.0
  %294 = vmatpush1.msra.mxu0 0.0
  %295 = vmatprep.mubr.f32.mxu0 0.0
  %296 = vmatmul.mubr.f32.gmra.mrb[0].mxu0 %v229
  %v297 = vpop.f32.mrb[0].mxu0
  %v298 = vadd.f32 0.0, %v297
  %v299 = vpop.f32.mrb[0].mxu0
  %300 = vdwg.mxu0
  %v302 = vrot.slane %v298, 6
  %v304 = vadd.f32 %v109, %v302
  %v305 = vxor.u32 %v304, 2147483648
  %v306 = vmul.f32 %v305, 1.442695
  %v307 = vpow.pop %v306
  %v308 = vadd.f32 %v307, 1.0
  %v309 = vrcp.pop %v308
  %v310 = vmul.f32 1.0, %v309
  %v311 = vtanh.pop %v304
  %v313 = vrot.slane %v216, 6
  %v315 = vmul.f32 %v310, %v313
  %317 = vrot.lane.b32.xlu0 %v311, 96
  %v318 = vpop.permute.xlu0 %317
  %v320 = vmul.f32 %v310, %v318
  %322 = vrot.lane.b32.xlu0 %v320, 16
  %v323 = vpop.permute.xlu0 %322
  %v325 = vadd.f32 %v315, %v323
  %v326 = vtanh.pop %v325
  %328 = vrot.lane.b32.xlu0 %v326, 32
  %v329 = vpop.permute.xlu0 %328
  %v331 = vmul.f32 %v310, %v329
  %333 = vrot.lane.b32.xlu0 %v331, 80
  %v334 = vpop.permute.xlu0 %333
  %vm336 = vcmask 125954
  %337 = vst.msk [vmem:[%s4] sm:$0xc] %vm336, %v334
  %v338 = vrot.slane %v331, 2
  %339 = vrot.lane.b32.xlu0 %v338, 80
  %v340 = vpop.permute.xlu0 %339
  %v341 = vsel %vm124, %v340, 0
  %343 = vmatprep.subr.mxu0 0.0
  %344 = vmatpush1.msra.mxu0 %v122
  %345 = vmatprep.subr.mxu0 0.0
  %346 = vmatpush1.msra.mxu0 %v123
  %347 = vmatprep.subr.mxu0 0.0
  %348 = vmatpush1.msra.mxu0 0.0
  %349 = vmatprep.subr.mxu0 0.0
  %350 = vmatpush1.msra.mxu0 0.0
  %351 = vmatprep.subr.mxu0 0.0
  %352 = vmatpush1.msra.mxu0 0.0
  %353 = vmatprep.subr.mxu0 0.0
  %354 = vmatpush1.msra.mxu0 0.0
  %355 = vmatprep.subr.mxu0 0.0
  %356 = vmatpush1.msra.mxu0 0.0
  %357 = vmatprep.subr.mxu0 0.0
  %358 = vmatpush1.msra.mxu0 0.0
  %359 = vmatprep.subr.mxu0 0.0
  %360 = vmatpush1.msra.mxu0 0.0
  %361 = vmatprep.subr.mxu0 0.0
  %362 = vmatpush1.msra.mxu0 0.0
  %363 = vmatprep.subr.mxu0 0.0
  %364 = vmatpush1.msra.mxu0 0.0
  %365 = vmatprep.subr.mxu0 0.0
  %366 = vmatpush1.msra.mxu0 0.0
  %367 = vmatprep.subr.mxu0 0.0
  %368 = vmatpush1.msra.mxu0 0.0
  %369 = vmatprep.subr.mxu0 0.0
  %370 = vmatpush1.msra.mxu0 0.0
  %371 = vmatprep.subr.mxu0 0.0
  %372 = vmatpush1.msra.mxu0 0.0
  %373 = vmatprep.subr.mxu0 0.0
  %374 = vmatpush1.msra.mxu0 0.0
  %375 = vmatprep.subr.mxu0 0.0
  %376 = vmatpush1.msra.mxu0 0.0
  %377 = vmatprep.subr.mxu0 0.0
  %378 = vmatpush1.msra.mxu0 0.0
  %379 = vmatprep.subr.mxu0 0.0
  %380 = vmatpush1.msra.mxu0 0.0
  %381 = vmatprep.subr.mxu0 0.0
  %382 = vmatpush1.msra.mxu0 0.0
  %383 = vmatprep.subr.mxu0 0.0
  %384 = vmatpush1.msra.mxu0 0.0
  %385 = vmatprep.subr.mxu0 0.0
  %386 = vmatpush1.msra.mxu0 0.0
  %387 = vmatprep.subr.mxu0 0.0
  %388 = vmatpush1.msra.mxu0 0.0
  %389 = vmatprep.subr.mxu0 0.0
  %390 = vmatpush1.msra.mxu0 0.0
  %391 = vmatprep.subr.mxu0 0.0
  %392 = vmatpush1.msra.mxu0 0.0
  %393 = vmatprep.subr.mxu0 0.0
  %394 = vmatpush1.msra.mxu0 0.0
  %395 = vmatprep.subr.mxu0 0.0
  %396 = vmatpush1.msra.mxu0 0.0
  %397 = vmatprep.subr.mxu0 0.0
  %398 = vmatpush1.msra.mxu0 0.0
  %399 = vmatprep.subr.mxu0 0.0
  %400 = vmatpush1.msra.mxu0 0.0
  %401 = vmatprep.subr.mxu0 0.0
  %402 = vmatpush1.msra.mxu0 0.0
  %403 = vmatprep.subr.mxu0 0.0
  %404 = vmatpush1.msra.mxu0 0.0
  %405 = vmatprep.subr.mxu0 0.0
  %406 = vmatpush1.msra.mxu0 0.0
  %407 = vmatprep.mubr.f32.mxu0 0.0
  %408 = vmatmul.mubr.f32.gmra.mrb[0].mxu0 %v341
  %v409 = vpop.f32.mrb[0].mxu0
  %v410 = vadd.f32 0.0, %v409
  %v411 = vpop.f32.mrb[0].mxu0
  %412 = vdwg.mxu0
  %v414 = vrot.slane %v410, 4
  %v416 = vadd.f32 %v109, %v414
  %v417 = vxor.u32 %v416, 2147483648
  %v418 = vmul.f32 %v417, 1.442695
  %v419 = vpow.pop %v418
  %v420 = vadd.f32 %v419, 1.0
  %v421 = vrcp.pop %v420
  %v422 = vmul.f32 1.0, %v421
  %v423 = vtanh.pop %v416
  %v425 = vrot.slane %v325, 6
  %v427 = vmul.f32 %v422, %v425
  %429 = vrot.lane.b32.xlu0 %v423, 96
  %v430 = vpop.permute.xlu0 %429
  %v432 = vmul.f32 %v422, %v430
  %434 = vrot.lane.b32.xlu0 %v432, 16
  %v435 = vpop.permute.xlu0 %434
  %v437 = vadd.f32 %v427, %v435
  %v438 = vtanh.pop %v437
  %440 = vrot.lane.b32.xlu0 %v438, 32
  %v441 = vpop.permute.xlu0 %440
  %v443 = vmul.f32 %v422, %v441
  %445 = vrot.lane.b32.xlu0 %v443, 80
  %v446 = vpop.permute.xlu0 %445
  %vm448 = vcmask 128004
  %449 = vst.msk [vmem:[%s4] sm:$0x30] %vm448, %v446
  %v450 = vrot.slane %v443, 4
  %451 = vrot.lane.b32.xlu0 %v450, 80
  %v452 = vpop.permute.xlu0 %451
  %v453 = vsel %vm124, %v452, 0
  %455 = vmatprep.subr.mxu0 0.0
  %456 = vmatpush1.msra.mxu0 %v122
  %457 = vmatprep.subr.mxu0 0.0
  %458 = vmatpush1.msra.mxu0 %v123
  %459 = vmatprep.subr.mxu0 0.0
  %460 = vmatpush1.msra.mxu0 0.0
  %461 = vmatprep.subr.mxu0 0.0
  %462 = vmatpush1.msra.mxu0 0.0
  %463 = vmatprep.subr.mxu0 0.0
  %464 = vmatpush1.msra.mxu0 0.0
  %465 = vmatprep.subr.mxu0 0.0
  %466 = vmatpush1.msra.mxu0 0.0
  %467 = vmatprep.subr.mxu0 0.0
  %468 = vmatpush1.msra.mxu0 0.0
  %469 = vmatprep.subr.mxu0 0.0
  %470 = vmatpush1.msra.mxu0 0.0
  %471 = vmatprep.subr.mxu0 0.0
  %472 = vmatpush1.msra.mxu0 0.0
  %473 = vmatprep.subr.mxu0 0.0
  %474 = vmatpush1.msra.mxu0 0.0
  %475 = vmatprep.subr.mxu0 0.0
  %476 = vmatpush1.msra.mxu0 0.0
  %477 = vmatprep.subr.mxu0 0.0
  %478 = vmatpush1.msra.mxu0 0.0
  %479 = vmatprep.subr.mxu0 0.0
  %480 = vmatpush1.msra.mxu0 0.0
  %481 = vmatprep.subr.mxu0 0.0
  %482 = vmatpush1.msra.mxu0 0.0
  %483 = vmatprep.subr.mxu0 0.0
  %484 = vmatpush1.msra.mxu0 0.0
  %485 = vmatprep.subr.mxu0 0.0
  %486 = vmatpush1.msra.mxu0 0.0
  %487 = vmatprep.subr.mxu0 0.0
  %488 = vmatpush1.msra.mxu0 0.0
  %489 = vmatprep.subr.mxu0 0.0
  %490 = vmatpush1.msra.mxu0 0.0
  %491 = vmatprep.subr.mxu0 0.0
  %492 = vmatpush1.msra.mxu0 0.0
  %493 = vmatprep.subr.mxu0 0.0
  %494 = vmatpush1.msra.mxu0 0.0
  %495 = vmatprep.subr.mxu0 0.0
  %496 = vmatpush1.msra.mxu0 0.0
  %497 = vmatprep.subr.mxu0 0.0
  %498 = vmatpush1.msra.mxu0 0.0
  %499 = vmatprep.subr.mxu0 0.0
  %500 = vmatpush1.msra.mxu0 0.0
  %501 = vmatprep.subr.mxu0 0.0
  %502 = vmatpush1.msra.mxu0 0.0
  %503 = vmatprep.subr.mxu0 0.0
  %504 = vmatpush1.msra.mxu0 0.0
  %505 = vmatprep.subr.mxu0 0.0
  %506 = vmatpush1.msra.mxu0 0.0
  %507 = vmatprep.subr.mxu0 0.0
  %508 = vmatpush1.msra.mxu0 0.0
  %509 = vmatprep.subr.mxu0 0.0
  %510 = vmatpush1.msra.mxu0 0.0
  %511 = vmatprep.subr.mxu0 0.0
  %512 = vmatpush1.msra.mxu0 0.0
  %513 = vmatprep.subr.mxu0 0.0
  %514 = vmatpush1.msra.mxu0 0.0
  %515 = vmatprep.subr.mxu0 0.0
  %516 = vmatpush1.msra.mxu0 0.0
  %517 = vmatprep.subr.mxu0 0.0
  %518 = vmatpush1.msra.mxu0 0.0
  %519 = vmatprep.mubr.f32.mxu0 0.0
  %520 = vmatmul.mubr.f32.gmra.mrb[0].mxu0 %v453
  %v521 = vpop.f32.mrb[0].mxu0
  %v522 = vadd.f32 0.0, %v521
  %v523 = vpop.f32.mrb[0].mxu0
  %524 = vdwg.mxu0
  %v526 = vrot.slane %v522, 2
  %v528 = vadd.f32 %v109, %v526
  %v529 = vxor.u32 %v528, 2147483648
  %v530 = vmul.f32 %v529, 1.442695
  %v531 = vpow.pop %v530
  %v532 = vadd.f32 %v531, 1.0
  %v533 = vrcp.pop %v532
  %v534 = vmul.f32 1.0, %v533
  %v535 = vtanh.pop %v528
  %v537 = vrot.slane %v437, 6
  %v539 = vmul.f32 %v534, %v537
  %541 = vrot.lane.b32.xlu0 %v535, 96
  %v542 = vpop.permute.xlu0 %541
  %v544 = vmul.f32 %v534, %v542
  %546 = vrot.lane.b32.xlu0 %v544, 16
  %v547 = vpop.permute.xlu0 %546
  %v549 = vadd.f32 %v539, %v547
  %v550 = vtanh.pop %v549
  %552 = vrot.lane.b32.xlu0 %v550, 32
  %v553 = vpop.permute.xlu0 %552
  %v555 = vmul.f32 %v534, %v553
  %557 = vrot.lane.b32.xlu0 %v555, 80
  %v558 = vpop.permute.xlu0 %557
  %vm560 = vcmask 130054
  %561 = vst.msk [vmem:[%s4] sm:$0xc0] %vm560, %v558
  %v562 = vrot.slane %v555, 6
  %563 = vrot.lane.b32.xlu0 %v562, 80
  %v564 = vpop.permute.xlu0 %563
  %v565 = vsel %vm124, %v564, 0
  %567 = vmatprep.subr.mxu0 0.0
  %568 = vmatpush1.msra.mxu0 %v122
  %569 = vmatprep.subr.mxu0 0.0
  %570 = vmatpush1.msra.mxu0 %v123
  %571 = vmatprep.subr.mxu0 0.0
  %572 = vmatpush1.msra.mxu0 0.0
  %573 = vmatprep.subr.mxu0 0.0
  %574 = vmatpush1.msra.mxu0 0.0
  %575 = vmatprep.subr.mxu0 0.0
  %576 = vmatpush1.msra.mxu0 0.0
  %577 = vmatprep.subr.mxu0 0.0
  %578 = vmatpush1.msra.mxu0 0.0
  %579 = vmatprep.subr.mxu0 0.0
  %580 = vmatpush1.msra.mxu0 0.0
  %581 = vmatprep.subr.mxu0 0.0
  %582 = vmatpush1.msra.mxu0 0.0
  %583 = vmatprep.subr.mxu0 0.0
  %584 = vmatpush1.msra.mxu0 0.0
  %585 = vmatprep.subr.mxu0 0.0
  %586 = vmatpush1.msra.mxu0 0.0
  %587 = vmatprep.subr.mxu0 0.0
  %588 = vmatpush1.msra.mxu0 0.0
  %589 = vmatprep.subr.mxu0 0.0
  %590 = vmatpush1.msra.mxu0 0.0
  %591 = vmatprep.subr.mxu0 0.0
  %592 = vmatpush1.msra.mxu0 0.0
  %593 = vmatprep.subr.mxu0 0.0
  %594 = vmatpush1.msra.mxu0 0.0
  %595 = vmatprep.subr.mxu0 0.0
  %596 = vmatpush1.msra.mxu0 0.0
  %597 = vmatprep.subr.mxu0 0.0
  %598 = vmatpush1.msra.mxu0 0.0
  %599 = vmatprep.subr.mxu0 0.0
  %600 = vmatpush1.msra.mxu0 0.0
  %601 = vmatprep.subr.mxu0 0.0
  %602 = vmatpush1.msra.mxu0 0.0
  %603 = vmatprep.subr.mxu0 0.0
  %604 = vmatpush1.msra.mxu0 0.0
  %605 = vmatprep.subr.mxu0 0.0
  %606 = vmatpush1.msra.mxu0 0.0
  %607 = vmatprep.subr.mxu0 0.0
  %608 = vmatpush1.msra.mxu0 0.0
  %609 = vmatprep.subr.mxu0 0.0
  %610 = vmatpush1.msra.mxu0 0.0
  %611 = vmatprep.subr.mxu0 0.0
  %612 = vmatpush1.msra.mxu0 0.0
  %613 = vmatprep.subr.mxu0 0.0
  %614 = vmatpush1.msra.mxu0 0.0
  %615 = vmatprep.subr.mxu0 0.0
  %616 = vmatpush1.msra.mxu0 0.0
  %617 = vmatprep.subr.mxu0 0.0
  %618 = vmatpush1.msra.mxu0 0.0
  %619 = vmatprep.subr.mxu0 0.0
  %620 = vmatpush1.msra.mxu0 0.0
  %621 = vmatprep.subr.mxu0 0.0
  %622 = vmatpush1.msra.mxu0 0.0
  %623 = vmatprep.subr.mxu0 0.0
  %624 = vmatpush1.msra.mxu0 0.0
  %625 = vmatprep.subr.mxu0 0.0
  %626 = vmatpush1.msra.mxu0 0.0
  %627 = vmatprep.subr.mxu0 0.0
  %628 = vmatpush1.msra.mxu0 0.0
  %629 = vmatprep.subr.mxu0 0.0
  %630 = vmatpush1.msra.mxu0 0.0
  %631 = vmatprep.mubr.f32.mxu0 0.0
  %632 = vmatmul.mubr.f32.gmra.mrb[0].mxu0 %v565
  %v633 = vpop.f32.mrb[0].mxu0
  %v634 = vadd.f32 0.0, %v633
  %v635 = vpop.f32.mrb[0].mxu0
  %636 = vdwg.mxu0
  %v637 = vadd.f32 %v114, %v634
  %v638 = vxor.u32 %v637, 2147483648
  %v639 = vmul.f32 %v638, 1.442695
  %v640 = vpow.pop %v639
  %v641 = vadd.f32 %v640, 1.0
  %v642 = vrcp.pop %v641
  %v643 = vmul.f32 1.0, %v642
  %v644 = vtanh.pop %v637
  %v646 = vrot.slane %v549, 6
  %v648 = vmul.f32 %v643, %v646
  %650 = vrot.lane.b32.xlu0 %v644, 96
  %v651 = vpop.permute.xlu0 %650
  %v653 = vmul.f32 %v643, %v651
  %655 = vrot.lane.b32.xlu0 %v653, 16
  %v656 = vpop.permute.xlu0 %655
  %v658 = vadd.f32 %v648, %v656
  %v659 = vtanh.pop %v658
  %661 = vrot.lane.b32.xlu0 %v659, 32
  %v662 = vpop.permute.xlu0 %661
  %v664 = vmul.f32 %v643, %v662
  %666 = vrot.lane.b32.xlu0 %v664, 80
  %v667 = vpop.permute.xlu0 %666
  %669 = vst.msk [vmem:[%s4 + $0x8] sm:$0x3] %vm227, %v667
  %v670 = vsel %vm124, %v667, 0
  %672 = vmatprep.subr.mxu0 0.0
  %673 = vmatpush1.msra.mxu0 %v122
  %674 = vmatprep.subr.mxu0 0.0
  %675 = vmatpush1.msra.mxu0 %v123
  %676 = vmatprep.subr.mxu0 0.0
  %677 = vmatpush1.msra.mxu0 0.0
  %678 = vmatprep.subr.mxu0 0.0
  %679 = vmatpush1.msra.mxu0 0.0
  %680 = vmatprep.subr.mxu0 0.0
  %681 = vmatpush1.msra.mxu0 0.0
  %682 = vmatprep.subr.mxu0 0.0
  %683 = vmatpush1.msra.mxu0 0.0
  %684 = vmatprep.subr.mxu0 0.0
  %685 = vmatpush1.msra.mxu0 0.0
  %686 = vmatprep.subr.mxu0 0.0
  %687 = vmatpush1.msra.mxu0 0.0
  %688 = vmatprep.subr.mxu0 0.0
  %689 = vmatpush1.msra.mxu0 0.0
  %690 = vmatprep.subr.mxu0 0.0
  %691 = vmatpush1.msra.mxu0 0.0
  %692 = vmatprep.subr.mxu0 0.0
  %693 = vmatpush1.msra.mxu0 0.0
  %694 = vmatprep.subr.mxu0 0.0
  %695 = vmatpush1.msra.mxu0 0.0
  %696 = vmatprep.subr.mxu0 0.0
  %697 = vmatpush1.msra.mxu0 0.0
  %698 = vmatprep.subr.mxu0 0.0
  %699 = vmatpush1.msra.mxu0 0.0
  %700 = vmatprep.subr.mxu0 0.0
  %701 = vmatpush1.msra.mxu0 0.0
  %702 = vmatprep.subr.mxu0 0.0
  %703 = vmatpush1.msra.mxu0 0.0
  %704 = vmatprep.subr.mxu0 0.0
  %705 = vmatpush1.msra.mxu0 0.0
  %706 = vmatprep.subr.mxu0 0.0
  %707 = vmatpush1.msra.mxu0 0.0
  %708 = vmatprep.subr.mxu0 0.0
  %709 = vmatpush1.msra.mxu0 0.0
  %710 = vmatprep.subr.mxu0 0.0
  %711 = vmatpush1.msra.mxu0 0.0
  %712 = vmatprep.subr.mxu0 0.0
  %713 = vmatpush1.msra.mxu0 0.0
  %714 = vmatprep.subr.mxu0 0.0
  %715 = vmatpush1.msra.mxu0 0.0
  %716 = vmatprep.subr.mxu0 0.0
  %717 = vmatpush1.msra.mxu0 0.0
  %718 = vmatprep.subr.mxu0 0.0
  %719 = vmatpush1.msra.mxu0 0.0
  %720 = vmatprep.subr.mxu0 0.0
  %721 = vmatpush1.msra.mxu0 0.0
  %722 = vmatprep.subr.mxu0 0.0
  %723 = vmatpush1.msra.mxu0 0.0
  %724 = vmatprep.subr.mxu0 0.0
  %725 = vmatpush1.msra.mxu0 0.0
  %726 = vmatprep.subr.mxu0 0.0
  %727 = vmatpush1.msra.mxu0 0.0
  %728 = vmatprep.subr.mxu0 0.0
  %729 = vmatpush1.msra.mxu0 0.0
  %730 = vmatprep.subr.mxu0 0.0
  %731 = vmatpush1.msra.mxu0 0.0
  %732 = vmatprep.subr.mxu0 0.0
  %733 = vmatpush1.msra.mxu0 0.0
  %734 = vmatprep.subr.mxu0 0.0
  %735 = vmatpush1.msra.mxu0 0.0
  %736 = vmatprep.mubr.f32.mxu0 0.0
  %737 = vmatmul.mubr.f32.gmra.mrb[0].mxu0 %v670
  %v738 = vpop.f32.mrb[0].mxu0
  %v739 = vadd.f32 0.0, %v738
  %v740 = vpop.f32.mrb[0].mxu0
  %741 = vdwg.mxu0
  %v743 = vrot.slane %v739, 6
  %v745 = vadd.f32 %v114, %v743
  %v746 = vxor.u32 %v745, 2147483648
  %v747 = vmul.f32 %v746, 1.442695
  %v748 = vpow.pop %v747
  %v749 = vadd.f32 %v748, 1.0
  %v750 = vrcp.pop %v749
  %v751 = vmul.f32 1.0, %v750
  %v752 = vtanh.pop %v745
  %v754 = vrot.slane %v658, 6
  %v756 = vmul.f32 %v751, %v754
  %758 = vrot.lane.b32.xlu0 %v752, 96
  %v759 = vpop.permute.xlu0 %758
  %v761 = vmul.f32 %v751, %v759
  %763 = vrot.lane.b32.xlu0 %v761, 16
  %v764 = vpop.permute.xlu0 %763
  %v766 = vadd.f32 %v756, %v764
  %v767 = vtanh.pop %v766
  %769 = vrot.lane.b32.xlu0 %v767, 32
  %v770 = vpop.permute.xlu0 %769
  %v772 = vmul.f32 %v751, %v770
  %774 = vrot.lane.b32.xlu0 %v772, 80
  %v775 = vpop.permute.xlu0 %774
  %777 = vst.msk [vmem:[%s4 + $0x8] sm:$0xc] %vm336, %v775
  %v778 = vrot.slane %v772, 2
  %779 = vrot.lane.b32.xlu0 %v778, 80
  %v780 = vpop.permute.xlu0 %779
  %v781 = vsel %vm124, %v780, 0
  %783 = vmatprep.subr.mxu0 0.0
  %784 = vmatpush1.msra.mxu0 %v122
  %785 = vmatprep.subr.mxu0 0.0
  %786 = vmatpush1.msra.mxu0 %v123
  %787 = vmatprep.subr.mxu0 0.0
  %788 = vmatpush1.msra.mxu0 0.0
  %789 = vmatprep.subr.mxu0 0.0
  %790 = vmatpush1.msra.mxu0 0.0
  %791 = vmatprep.subr.mxu0 0.0
  %792 = vmatpush1.msra.mxu0 0.0
  %793 = vmatprep.subr.mxu0 0.0
  %794 = vmatpush1.msra.mxu0 0.0
  %795 = vmatprep.subr.mxu0 0.0
  %796 = vmatpush1.msra.mxu0 0.0
  %797 = vmatprep.subr.mxu0 0.0
  %798 = vmatpush1.msra.mxu0 0.0
  %799 = vmatprep.subr.mxu0 0.0
  %800 = vmatpush1.msra.mxu0 0.0
  %801 = vmatprep.subr.mxu0 0.0
  %802 = vmatpush1.msra.mxu0 0.0
  %803 = vmatprep.subr.mxu0 0.0
  %804 = vmatpush1.msra.mxu0 0.0
  %805 = vmatprep.subr.mxu0 0.0
  %806 = vmatpush1.msra.mxu0 0.0
  %807 = vmatprep.subr.mxu0 0.0
  %808 = vmatpush1.msra.mxu0 0.0
  %809 = vmatprep.subr.mxu0 0.0
  %810 = vmatpush1.msra.mxu0 0.0
  %811 = vmatprep.subr.mxu0 0.0
  %812 = vmatpush1.msra.mxu0 0.0
  %813 = vmatprep.subr.mxu0 0.0
  %814 = vmatpush1.msra.mxu0 0.0
  %815 = vmatprep.subr.mxu0 0.0
  %816 = vmatpush1.msra.mxu0 0.0
  %817 = vmatprep.subr.mxu0 0.0
  %818 = vmatpush1.msra.mxu0 0.0
  %819 = vmatprep.subr.mxu0 0.0
  %820 = vmatpush1.msra.mxu0 0.0
  %821 = vmatprep.subr.mxu0 0.0
  %822 = vmatpush1.msra.mxu0 0.0
  %823 = vmatprep.subr.mxu0 0.0
  %824 = vmatpush1.msra.mxu0 0.0
  %825 = vmatprep.subr.mxu0 0.0
  %826 = vmatpush1.msra.mxu0 0.0
  %827 = vmatprep.subr.mxu0 0.0
  %828 = vmatpush1.msra.mxu0 0.0
  %829 = vmatprep.subr.mxu0 0.0
  %830 = vmatpush1.msra.mxu0 0.0
  %831 = vmatprep.subr.mxu0 0.0
  %832 = vmatpush1.msra.mxu0 0.0
  %833 = vmatprep.subr.mxu0 0.0
  %834 = vmatpush1.msra.mxu0 0.0
  %835 = vmatprep.subr.mxu0 0.0
  %836 = vmatpush1.msra.mxu0 0.0
  %837 = vmatprep.subr.mxu0 0.0
  %838 = vmatpush1.msra.mxu0 0.0
  %839 = vmatprep.subr.mxu0 0.0
  %840 = vmatpush1.msra.mxu0 0.0
  %841 = vmatprep.subr.mxu0 0.0
  %842 = vmatpush1.msra.mxu0 0.0
  %843 = vmatprep.subr.mxu0 0.0
  %844 = vmatpush1.msra.mxu0 0.0
  %845 = vmatprep.subr.mxu0 0.0
  %846 = vmatpush1.msra.mxu0 0.0
  %847 = vmatprep.mubr.f32.mxu0 0.0
  %848 = vmatmul.mubr.f32.gmra.mrb[0].mxu0 %v781
  %v849 = vpop.f32.mrb[0].mxu0
  %v850 = vadd.f32 0.0, %v849
  %v851 = vpop.f32.mrb[0].mxu0
  %852 = vdwg.mxu0
  %v854 = vrot.slane %v850, 4
  %v856 = vadd.f32 %v114, %v854
  %v857 = vxor.u32 %v856, 2147483648
  %v858 = vmul.f32 %v857, 1.442695
  %v859 = vpow.pop %v858
  %v860 = vadd.f32 %v859, 1.0
  %v861 = vrcp.pop %v860
  %v862 = vmul.f32 1.0, %v861
  %v863 = vtanh.pop %v856
  %v865 = vrot.slane %v766, 6
  %v867 = vmul.f32 %v862, %v865
  %869 = vrot.lane.b32.xlu0 %v863, 96
  %v870 = vpop.permute.xlu0 %869
  %v872 = vmul.f32 %v862, %v870
  %874 = vrot.lane.b32.xlu0 %v872, 16
  %v875 = vpop.permute.xlu0 %874
  %v877 = vadd.f32 %v867, %v875
  %v878 = vtanh.pop %v877
  %880 = vrot.lane.b32.xlu0 %v878, 32
  %v881 = vpop.permute.xlu0 %880
  %v883 = vmul.f32 %v862, %v881
  %885 = vrot.lane.b32.xlu0 %v883, 80
  %v886 = vpop.permute.xlu0 %885
  %888 = vst.msk [vmem:[%s4 + $0x8] sm:$0x30] %vm448, %v886
  %v889 = vrot.slane %v883, 4
  %890 = vrot.lane.b32.xlu0 %v889, 80
  %v891 = vpop.permute.xlu0 %890
  %v892 = vsel %vm124, %v891, 0
  %894 = vmatprep.subr.mxu0 0.0
  %895 = vmatpush1.msra.mxu0 %v122
  %896 = vmatprep.subr.mxu0 0.0
  %897 = vmatpush1.msra.mxu0 %v123
  %898 = vmatprep.subr.mxu0 0.0
  %899 = vmatpush1.msra.mxu0 0.0
  %900 = vmatprep.subr.mxu0 0.0
  %901 = vmatpush1.msra.mxu0 0.0
  %902 = vmatprep.subr.mxu0 0.0
  %903 = vmatpush1.msra.mxu0 0.0
  %904 = vmatprep.subr.mxu0 0.0
  %905 = vmatpush1.msra.mxu0 0.0
  %906 = vmatprep.subr.mxu0 0.0
  %907 = vmatpush1.msra.mxu0 0.0
  %908 = vmatprep.subr.mxu0 0.0
  %909 = vmatpush1.msra.mxu0 0.0
  %910 = vmatprep.subr.mxu0 0.0
  %911 = vmatpush1.msra.mxu0 0.0
  %912 = vmatprep.subr.mxu0 0.0
  %913 = vmatpush1.msra.mxu0 0.0
  %914 = vmatprep.subr.mxu0 0.0
  %915 = vmatpush1.msra.mxu0 0.0
  %916 = vmatprep.subr.mxu0 0.0
  %917 = vmatpush1.msra.mxu0 0.0
  %918 = vmatprep.subr.mxu0 0.0
  %919 = vmatpush1.msra.mxu0 0.0
  %920 = vmatprep.subr.mxu0 0.0
  %921 = vmatpush1.msra.mxu0 0.0
  %922 = vmatprep.subr.mxu0 0.0
  %923 = vmatpush1.msra.mxu0 0.0
  %924 = vmatprep.subr.mxu0 0.0
  %925 = vmatpush1.msra.mxu0 0.0
  %926 = vmatprep.subr.mxu0 0.0
  %927 = vmatpush1.msra.mxu0 0.0
  %928 = vmatprep.subr.mxu0 0.0
  %929 = vmatpush1.msra.mxu0 0.0
  %930 = vmatprep.subr.mxu0 0.0
  %931 = vmatpush1.msra.mxu0 0.0
  %932 = vmatprep.subr.mxu0 0.0
  %933 = vmatpush1.msra.mxu0 0.0
  %934 = vmatprep.subr.mxu0 0.0
  %935 = vmatpush1.msra.mxu0 0.0
  %936 = vmatprep.subr.mxu0 0.0
  %937 = vmatpush1.msra.mxu0 0.0
  %938 = vmatprep.subr.mxu0 0.0
  %939 = vmatpush1.msra.mxu0 0.0
  %940 = vmatprep.subr.mxu0 0.0
  %941 = vmatpush1.msra.mxu0 0.0
  %942 = vmatprep.subr.mxu0 0.0
  %943 = vmatpush1.msra.mxu0 0.0
  %944 = vmatprep.subr.mxu0 0.0
  %945 = vmatpush1.msra.mxu0 0.0
  %946 = vmatprep.subr.mxu0 0.0
  %947 = vmatpush1.msra.mxu0 0.0
  %948 = vmatprep.subr.mxu0 0.0
  %949 = vmatpush1.msra.mxu0 0.0
  %950 = vmatprep.subr.mxu0 0.0
  %951 = vmatpush1.msra.mxu0 0.0
  %952 = vmatprep.subr.mxu0 0.0
  %953 = vmatpush1.msra.mxu0 0.0
  %954 = vmatprep.subr.mxu0 0.0
  %955 = vmatpush1.msra.mxu0 0.0
  %956 = vmatprep.subr.mxu0 0.0
  %957 = vmatpush1.msra.mxu0 0.0
  %958 = vmatprep.mubr.f32.mxu0 0.0
  %959 = vmatmul.mubr.f32.gmra.mrb[0].mxu0 %v892
  %v960 = vpop.f32.mrb[0].mxu0
  %v961 = vadd.f32 0.0, %v960
  %v962 = vpop.f32.mrb[0].mxu0
  %963 = vdwg.mxu0
  %v965 = vrot.slane %v961, 2
  %v967 = vadd.f32 %v114, %v965
  %v968 = vxor.u32 %v967, 2147483648
  %v969 = vmul.f32 %v968, 1.442695
  %v970 = vpow.pop %v969
  %v971 = vadd.f32 %v970, 1.0
  %v972 = vrcp.pop %v971
  %v973 = vmul.f32 1.0, %v972
  %v974 = vtanh.pop %v967
  %v976 = vrot.slane %v877, 6
  %v978 = vmul.f32 %v973, %v976
  %980 = vrot.lane.b32.xlu0 %v974, 96
  %v981 = vpop.permute.xlu0 %980
  %v983 = vmul.f32 %v973, %v981
  %985 = vrot.lane.b32.xlu0 %v983, 16
  %v986 = vpop.permute.xlu0 %985
  %v988 = vadd.f32 %v978, %v986
  %v989 = vtanh.pop %v988
  %991 = vrot.lane.b32.xlu0 %v989, 32
  %v992 = vpop.permute.xlu0 %991
  %v994 = vmul.f32 %v973, %v992
  %996 = vrot.lane.b32.xlu0 %v994, 80
  %v997 = vpop.permute.xlu0 %996
  %999 = vst.msk [vmem:[%s4 + $0x8] sm:$0xc0] %vm560, %v997
  %v1000 = vrot.slane %v994, 6
  %1001 = vrot.lane.b32.xlu0 %v1000, 80
  %v1002 = vpop.permute.xlu0 %1001
  %v1003 = vsel %vm124, %v1002, 0
  %1005 = vmatprep.subr.mxu0 0.0
  %1006 = vmatpush1.msra.mxu0 %v122
  %1007 = vmatprep.subr.mxu0 0.0
  %1008 = vmatpush1.msra.mxu0 %v123
  %1009 = vmatprep.subr.mxu0 0.0
  %1010 = vmatpush1.msra.mxu0 0.0
  %1011 = vmatprep.subr.mxu0 0.0
  %1012 = vmatpush1.msra.mxu0 0.0
  %1013 = vmatprep.subr.mxu0 0.0
  %1014 = vmatpush1.msra.mxu0 0.0
  %1015 = vmatprep.subr.mxu0 0.0
  %1016 = vmatpush1.msra.mxu0 0.0
  %1017 = vmatprep.subr.mxu0 0.0
  %1018 = vmatpush1.msra.mxu0 0.0
  %1019 = vmatprep.subr.mxu0 0.0
  %1020 = vmatpush1.msra.mxu0 0.0
  %1021 = vmatprep.subr.mxu0 0.0
  %1022 = vmatpush1.msra.mxu0 0.0
  %1023 = vmatprep.subr.mxu0 0.0
  %1024 = vmatpush1.msra.mxu0 0.0
  %1025 = vmatprep.subr.mxu0 0.0
  %1026 = vmatpush1.msra.mxu0 0.0
  %1027 = vmatprep.subr.mxu0 0.0
  %1028 = vmatpush1.msra.mxu0 0.0
  %1029 = vmatprep.subr.mxu0 0.0
  %1030 = vmatpush1.msra.mxu0 0.0
  %1031 = vmatprep.subr.mxu0 0.0
  %1032 = vmatpush1.msra.mxu0 0.0
  %1033 = vmatprep.subr.mxu0 0.0
  %1034 = vmatpush1.msra.mxu0 0.0
  %1035 = vmatprep.subr.mxu0 0.0
  %1036 = vmatpush1.msra.mxu0 0.0
  %1037 = vmatprep.subr.mxu0 0.0
  %1038 = vmatpush1.msra.mxu0 0.0
  %1039 = vmatprep.subr.mxu0 0.0
  %1040 = vmatpush1.msra.mxu0 0.0
  %1041 = vmatprep.subr.mxu0 0.0
  %1042 = vmatpush1.msra.mxu0 0.0
  %1043 = vmatprep.subr.mxu0 0.0
  %1044 = vmatpush1.msra.mxu0 0.0
  %1045 = vmatprep.subr.mxu0 0.0
  %1046 = vmatpush1.msra.mxu0 0.0
  %1047 = vmatprep.subr.mxu0 0.0
  %1048 = vmatpush1.msra.mxu0 0.0
  %1049 = vmatprep.subr.mxu0 0.0
  %1050 = vmatpush1.msra.mxu0 0.0
  %1051 = vmatprep.subr.mxu0 0.0
  %1052 = vmatpush1.msra.mxu0 0.0
  %1053 = vmatprep.subr.mxu0 0.0
  %1054 = vmatpush1.msra.mxu0 0.0
  %1055 = vmatprep.subr.mxu0 0.0
  %1056 = vmatpush1.msra.mxu0 0.0
  %1057 = vmatprep.subr.mxu0 0.0
  %1058 = vmatpush1.msra.mxu0 0.0
  %1059 = vmatprep.subr.mxu0 0.0
  %1060 = vmatpush1.msra.mxu0 0.0
  %1061 = vmatprep.subr.mxu0 0.0
  %1062 = vmatpush1.msra.mxu0 0.0
  %1063 = vmatprep.subr.mxu0 0.0
  %1064 = vmatpush1.msra.mxu0 0.0
  %1065 = vmatprep.subr.mxu0 0.0
  %1066 = vmatpush1.msra.mxu0 0.0
  %1067 = vmatprep.subr.mxu0 0.0
  %1068 = vmatpush1.msra.mxu0 0.0
  %1069 = vmatprep.mubr.f32.mxu0 0.0
  %1070 = vmatmul.mubr.f32.gmra.mrb[0].mxu0 %v1003
  %v1071 = vpop.f32.mrb[0].mxu0
  %v1072 = vadd.f32 0.0, %v1071
  %v1073 = vpop.f32.mrb[0].mxu0
  %1074 = vdwg.mxu0
  %v1075 = vadd.f32 %v119, %v1072
  %v1076 = vxor.u32 %v1075, 2147483648
  %v1077 = vmul.f32 %v1076, 1.442695
  %v1078 = vpow.pop %v1077
  %v1079 = vadd.f32 %v1078, 1.0
  %v1080 = vrcp.pop %v1079
  %v1081 = vmul.f32 1.0, %v1080
  %v1082 = vtanh.pop %v1075
  %v1084 = vrot.slane %v988, 6
  %v1086 = vmul.f32 %v1081, %v1084
  %1088 = vrot.lane.b32.xlu0 %v1082, 96
  %v1089 = vpop.permute.xlu0 %1088
  %v1091 = vmul.f32 %v1081, %v1089
  %1093 = vrot.lane.b32.xlu0 %v1091, 16
  %v1094 = vpop.permute.xlu0 %1093
  %v1096 = vadd.f32 %v1086, %v1094
  %v1097 = vtanh.pop %v1096
  %1099 = vrot.lane.b32.xlu0 %v1097, 32
  %v1100 = vpop.permute.xlu0 %1099
  %v1102 = vmul.f32 %v1081, %v1100
  %1104 = vrot.lane.b32.xlu0 %v1102, 80
  %v1105 = vpop.permute.xlu0 %1104
  %1107 = vst.msk [vmem:[%s4 + $0x10] sm:$0x3] %vm227, %v1105
  %v1108 = vsel %vm124, %v1105, 0
  %1110 = vmatprep.subr.mxu0 0.0
  %1111 = vmatpush1.msra.mxu0 %v122
  %1112 = vmatprep.subr.mxu0 0.0
  %1113 = vmatpush1.msra.mxu0 %v123
  %1114 = vmatprep.subr.mxu0 0.0
  %1115 = vmatpush1.msra.mxu0 0.0
  %1116 = vmatprep.subr.mxu0 0.0
  %1117 = vmatpush1.msra.mxu0 0.0
  %1118 = vmatprep.subr.mxu0 0.0
  %1119 = vmatpush1.msra.mxu0 0.0
  %1120 = vmatprep.subr.mxu0 0.0
  %1121 = vmatpush1.msra.mxu0 0.0
  %1122 = vmatprep.subr.mxu0 0.0
  %1123 = vmatpush1.msra.mxu0 0.0
  %1124 = vmatprep.subr.mxu0 0.0
  %1125 = vmatpush1.msra.mxu0 0.0
  %1126 = vmatprep.subr.mxu0 0.0
  %1127 = vmatpush1.msra.mxu0 0.0
  %1128 = vmatprep.subr.mxu0 0.0
  %1129 = vmatpush1.msra.mxu0 0.0
  %1130 = vmatprep.subr.mxu0 0.0
  %1131 = vmatpush1.msra.mxu0 0.0
  %1132 = vmatprep.subr.mxu0 0.0
  %1133 = vmatpush1.msra.mxu0 0.0
  %1134 = vmatprep.subr.mxu0 0.0
  %1135 = vmatpush1.msra.mxu0 0.0
  %1136 = vmatprep.subr.mxu0 0.0
  %1137 = vmatpush1.msra.mxu0 0.0
  %1138 = vmatprep.subr.mxu0 0.0
  %1139 = vmatpush1.msra.mxu0 0.0
  %1140 = vmatprep.subr.mxu0 0.0
  %1141 = vmatpush1.msra.mxu0 0.0
  %1142 = vmatprep.subr.mxu0 0.0
  %1143 = vmatpush1.msra.mxu0 0.0
  %1144 = vmatprep.subr.mxu0 0.0
  %1145 = vmatpush1.msra.mxu0 0.0
  %1146 = vmatprep.subr.mxu0 0.0
  %1147 = vmatpush1.msra.mxu0 0.0
  %1148 = vmatprep.subr.mxu0 0.0
  %1149 = vmatpush1.msra.mxu0 0.0
  %1150 = vmatprep.subr.mxu0 0.0
  %1151 = vmatpush1.msra.mxu0 0.0
  %1152 = vmatprep.subr.mxu0 0.0
  %1153 = vmatpush1.msra.mxu0 0.0
  %1154 = vmatprep.subr.mxu0 0.0
  %1155 = vmatpush1.msra.mxu0 0.0
  %1156 = vmatprep.subr.mxu0 0.0
  %1157 = vmatpush1.msra.mxu0 0.0
  %1158 = vmatprep.subr.mxu0 0.0
  %1159 = vmatpush1.msra.mxu0 0.0
  %1160 = vmatprep.subr.mxu0 0.0
  %1161 = vmatpush1.msra.mxu0 0.0
  %1162 = vmatprep.subr.mxu0 0.0
  %1163 = vmatpush1.msra.mxu0 0.0
  %1164 = vmatprep.subr.mxu0 0.0
  %1165 = vmatpush1.msra.mxu0 0.0
  %1166 = vmatprep.subr.mxu0 0.0
  %1167 = vmatpush1.msra.mxu0 0.0
  %1168 = vmatprep.subr.mxu0 0.0
  %1169 = vmatpush1.msra.mxu0 0.0
  %1170 = vmatprep.subr.mxu0 0.0
  %1171 = vmatpush1.msra.mxu0 0.0
  %1172 = vmatprep.subr.mxu0 0.0
  %1173 = vmatpush1.msra.mxu0 0.0
  %1174 = vmatprep.mubr.f32.mxu0 0.0
  %1175 = vmatmul.mubr.f32.gmra.mrb[0].mxu0 %v1108
  %v1176 = vpop.f32.mrb[0].mxu0
  %v1177 = vadd.f32 0.0, %v1176
  %v1178 = vpop.f32.mrb[0].mxu0
  %1179 = vdwg.mxu0
  %v1181 = vrot.slane %v1177, 6
  %v1183 = vadd.f32 %v119, %v1181
  %v1184 = vxor.u32 %v1183, 2147483648
  %v1185 = vmul.f32 %v1184, 1.442695
  %v1186 = vpow.pop %v1185
  %v1187 = vadd.f32 %v1186, 1.0
  %v1188 = vrcp.pop %v1187
  %v1189 = vmul.f32 1.0, %v1188
  %v1190 = vtanh.pop %v1183
  %v1192 = vrot.slane %v1096, 6
  %v1194 = vmul.f32 %v1189, %v1192
  %1196 = vrot.lane.b32.xlu0 %v1190, 96
  %v1197 = vpop.permute.xlu0 %1196
  %v1199 = vmul.f32 %v1189, %v1197
  %1201 = vrot.lane.b32.xlu0 %v1199, 16
  %v1202 = vpop.permute.xlu0 %1201
  %v1204 = vadd.f32 %v1194, %v1202
  %v1205 = vtanh.pop %v1204
  %1207 = vrot.lane.b32.xlu0 %v1205, 32
  %v1208 = vpop.permute.xlu0 %1207
  %v1210 = vmul.f32 %v1189, %v1208
  %1212 = vrot.lane.b32.xlu0 %v1210, 80
  %v1213 = vpop.permute.xlu0 %1212
  %1215 = vst.msk [vmem:[%s4 + $0x10] sm:$0xc] %vm336, %v1213
  // Predicated region
  $region18: #{encoder_forward.7} parent=0 // pred_check
    _
  $region19: #{encoder_forward.7} parent=0 // pred_check_branch
    %1217 = sbr.rel (0) target = $region21
  $region20: #{encoder_forward.7} parent=0 // pred_region
    _
  $region21: #{encoder_forward.7} parent=0 // pred_fallthru
    _
  // Predicated region
  $region22: #{encoder_forward.7} parent=0 // pred_check
    _
  $region23: #{encoder_forward.7} parent=0 // pred_check_branch
    %1219 = sbr.rel (0) target = $region25
  $region24: #{encoder_forward.7} parent=0 // pred_region
    _
  $region25: #{encoder_forward.7} parent=0 // pred_fallthru
    _

</llo_original>
